<compile_context>
chip_gen: v6e
topology: v6e:2x2x1
jax: 0.10.0
libtpu: 0.0.40
codegen_flags: <defaults>
</compile_context>

<pallas_src>
import functools

import jax
import jax.numpy as jnp
from jax.experimental import pallas as pl
from jax.experimental.pallas import tpu as pltpu


def _largest_divisor_leq(n, cap):
    for k in range(min(cap, n), 0, -1):
        if n % k == 0:
            return k
    return 1


# ----------------------------------------------------------------------------
# Recurrent kernel: `steps_per_block` decode steps per grid iteration.
# grid = (batch_tiles, time_blocks); hidden state carried in VMEM scratch and
# in vregs (fori_loop carry) across the folded steps.
# ----------------------------------------------------------------------------
def decoder_steps_kernel(x_ref, gix_ref, ep_ref, enc_ref, maskb_ref, h0_ref,
                         wah_ref, v_ref, wiw_ref, wh_ref, bh_ref,
                         cat_ref, h_scr, *, hidden_size, embed_dim,
                         steps_per_block):
    H = hidden_size
    E = embed_dim
    tblk = pl.program_id(1)

    @pl.when(tblk == 0)
    def _():
        h_scr[...] = h0_ref[...]

    bt, S, _ = enc_ref.shape
    enc = enc_ref[...]                                   # (bt, S, 2H) bf16
    ep = ep_ref[...].astype(jnp.float32)                 # (bt, S, H)  f32
    mask_bias = maskb_ref[...]                           # (bt, S)     f32
    wah = wah_ref[...]                                   # (H, H)      bf16
    v_b = v_ref[...][None, :, :]                         # (1, 1, H)   f32
    wiw = wiw_ref[...]                                   # (2H, 3H)    bf16
    wh = wh_ref[...]                                     # (H, 3H)     bf16
    bh = bh_ref[...]                                     # (1, 3H)     f32

    def step(j, h):
        # ---- attention: softmax_s( v . tanh(h @ Wah + enc_proj) + pad_bias )
        h_proj = jnp.dot(h.astype(jnp.bfloat16), wah,
                         preferred_element_type=jnp.float32)              # (bt, H)
        energy = jnp.tanh(h_proj[:, None, :] + ep)                        # (bt, S, H)
        score = jnp.sum(energy * v_b, axis=-1)                            # (bt, S)
        score = score + mask_bias                                         # pad -> -1e30
        score = score - jnp.max(score, axis=-1, keepdims=True)
        p = jnp.exp(score)
        inv = pl.reciprocal(jnp.sum(p, axis=-1, keepdims=True), approx=True)
        attn = p * inv                                                    # (bt, S)

        # weighted context via a batched MXU contraction (not VPU*+XLU reduce)
        weighted = jnp.einsum('bqs,bsd->bqd',
                              attn[:, None, :].astype(jnp.bfloat16), enc,
                              preferred_element_type=jnp.float32)[:, 0, :]  # (bt, 2H)

        # ---- GRU cell (PyTorch gate order r, z, n); x@Wix + b_ih hoisted (gi_x)
        gi = gix_ref[j] + jnp.dot(weighted.astype(jnp.bfloat16), wiw,
                                  preferred_element_type=jnp.float32)     # (bt, 3H)
        gh = jnp.dot(h.astype(jnp.bfloat16), wh,
                     preferred_element_type=jnp.float32) + bh             # (bt, 3H)
        r = jax.nn.sigmoid(gi[:, 0:H] + gh[:, 0:H])
        z = jax.nn.sigmoid(gi[:, H:2 * H] + gh[:, H:2 * H])
        n = jnp.tanh(gi[:, 2 * H:3 * H] + r * gh[:, 2 * H:3 * H])
        h_new = (1.0 - z) * n + z * h                                     # (bt, H)

        # fused output operand [h | weighted | x] for the single K=3H+E GEMM
        cat_ref[j, :, 0:H] = h_new
        cat_ref[j, :, H:3 * H] = weighted
        cat_ref[j, :, 3 * H:3 * H + E] = x_ref[j]
        return h_new

    h_final = jax.lax.fori_loop(0, steps_per_block, step, h_scr[...],
                                unroll=True)
    h_scr[...] = h_final


# ----------------------------------------------------------------------------
# Fused vocab projection: one K=(3H+E) GEMM with M=(T-1)*B, tiled over V,
# writing the (T, B, V) output directly (row 0 zeroed in-kernel).
# ----------------------------------------------------------------------------
def out_proj_kernel(cat_ref, wo_ref, bo_ref, o_ref):
    T1, B, K = cat_ref.shape
    tn = o_ref.shape[-1]
    logits = (jnp.dot(cat_ref[...].reshape(T1 * B, K).astype(jnp.bfloat16),
                      wo_ref[...], preferred_element_type=jnp.float32)
              + bo_ref[...])                                              # (T1*B, tn)
    o_ref[pl.ds(0, 1)] = jnp.zeros((1, B, tn), jnp.float32)               # outputs[0] = 0
    o_ref[pl.ds(1, T1)] = logits.reshape(T1, B, tn)


def decoder_forward_pallas(trg_tokens, src_tokens, encoder_out, hidden, params, pad_id):
    """Mirrors Decoder.forward (eval mode, teacher_forcing_ratio=1.0).

    trg_tokens: (B, T) int32    src_tokens: (B, S) int32
    encoder_out: (S, B, 2H) f32 hidden: (B, H) f32
    Returns outputs: (T, B, V) f32, with outputs[0] == 0 (as in PyTorch).
    """
    B, T = trg_tokens.shape
    S = src_tokens.shape[1]
    H = hidden.shape[1]
    V, E = params['embed'].shape
    T1 = T - 1
    KD = 3 * H + E                      # fused output-GEMM contraction dim
    f32, bf16 = jnp.float32, jnp.bfloat16

    # ---- glue: embedding gather, layout permutes, pad-mask bias ----
    trg_t = trg_tokens.T                                                  # (T, B)
    x_emb = params['embed'][trg_t[:-1]].astype(f32)                       # (T1, B, E)
    enc_f32 = jnp.transpose(encoder_out, (1, 0, 2)).astype(f32)           # (B, S, 2H)
    mask_bias = jnp.where(src_tokens != pad_id, 0.0, -1e30).astype(f32)   # (B, S)
    h0 = hidden.astype(f32)

    # ---- split / transpose weights so every in-kernel matmul is plain x @ W
    Wa = params['attn_w']                       # (H, 3H), input cols: [hidden | enc]
    wah = Wa[:, :H].T.astype(bf16)              # (H, H)
    wae = Wa[:, H:].T                           # (2H, H) f32 (hoisted GEMM)
    ba = params['attn_b']                       # (H,)
    v_row = params['attn_v'][None, :].astype(f32)       # (1, H)

    Wih = params['gru_w_ih']                    # (3H, E+2H), input cols: [x | weighted]
    wix = Wih[:, :E].T                          # (E, 3H) f32 (hoisted GEMM)
    wiw = Wih[:, E:].T.astype(bf16)             # (2H, 3H)
    bi = params['gru_b_ih']                     # (3H,)
    wh = params['gru_w_hh'].T.astype(bf16)      # (H, 3H)
    bh = params['gru_b_hh'][None, :].astype(f32)

    wo = params['out_w'].T.astype(bf16)         # (3H+E, V), row order [h | weighted | x]
    bo = params['out_b'][None, :].astype(f32)   # (1, V)

    # ---- hoisted, time-invariant GEMMs (single big-M MXU calls) ----
    enc_proj = ((enc_f32.reshape(B * S, 2 * H) @ wae + ba)
                .reshape(B, S, H).astype(bf16))                           # (B, S, H)
    gi_x = (x_emb.reshape(T1 * B, E) @ wix + bi).reshape(T1, B, 3 * H)    # (T1,B,3H) f32
    enc = enc_f32.astype(bf16)                                            # (B, S, 2H)

    # ---- tiling ----
    # TODO(synk): at realistic sizes keep H a multiple of 128 and B a multiple
    #             of 8/16 so gate slices and h/weighted stores are lane-aligned.
    bt = B
    if B >= 16 and (B // 2) % 8 == 0:
        bt = B // 2                     # 2 batch tiles -> both v7x TensorCores busy
    n_bt = B // bt
    kfold = _largest_divisor_leq(T1, 8)         # decode steps folded per grid iter
    n_tb = T1 // kfold

    tmap3 = lambda b, g: (g, b, 0)      # time-stepped, batch-tiled
    bmap3 = lambda b, g: (b, 0, 0)      # batch-tiled, time-invariant
    bmap2 = lambda b, g: (b, 0)
    cmap2 = lambda b, g: (0, 0)         # fully invariant (weights)

    cat = pl.pallas_call(
        functools.partial(decoder_steps_kernel, hidden_size=H, embed_dim=E,
                          steps_per_block=kfold),
        out_shape=jax.ShapeDtypeStruct((T1, B, KD), f32),
        grid=(n_bt, n_tb),
        in_specs=[
            pl.BlockSpec((kfold, bt, E), tmap3),         # x_emb
            pl.BlockSpec((kfold, bt, 3 * H), tmap3),     # gi_x (hoisted x@Wix + b_ih)
            pl.BlockSpec((bt, S, H), bmap3),             # enc_proj (hoisted, bf16)
            pl.BlockSpec((bt, S, 2 * H), bmap3),         # enc (bf16)
            pl.BlockSpec((bt, S), bmap2),                # additive pad-mask bias
            pl.BlockSpec((bt, H), bmap2),                # h0
            pl.BlockSpec((H, H), cmap2),                 # wah (bf16)
            pl.BlockSpec((1, H), cmap2),                 # attention v
            pl.BlockSpec((2 * H, 3 * H), cmap2),         # wiw (bf16)
            pl.BlockSpec((H, 3 * H), cmap2),             # wh (bf16)
            pl.BlockSpec((1, 3 * H), cmap2),             # b_hh
        ],
        out_specs=pl.BlockSpec((kfold, bt, KD), tmap3),  # fused [h | weighted | x]
        scratch_shapes=[pltpu.VMEM((bt, H), f32)],       # recurrent hidden state
        compiler_params=pltpu.CompilerParams(
            dimension_semantics=("parallel", "arbitrary"),
            vmem_limit_bytes=48 * 1024 * 1024),
    )(x_emb, gi_x, enc_proj, enc, mask_bias, h0, wah, v_row, wiw, wh, bh)

    # ---- vocab projection, tiled over V (lane-dense multiples of 128 when big)
    if V <= 1024 or V % 128 != 0:
        tn = V
    else:
        tn = _largest_divisor_leq(V // 128, 1024 // 128) * 128
    n_vt = V // tn

    outputs = pl.pallas_call(
        out_proj_kernel,
        out_shape=jax.ShapeDtypeStruct((T, B, V), f32),
        grid=(n_vt,),
        in_specs=[
            pl.BlockSpec((T1, B, KD), lambda j: (0, 0, 0)),   # fused cat operand
            pl.BlockSpec((KD, tn), lambda j: (0, j)),         # Wo^T vocab tile (bf16)
            pl.BlockSpec((1, tn), lambda j: (0, j)),          # bias tile
        ],
        out_specs=pl.BlockSpec((T, B, tn), lambda j: (0, 0, j)),
        compiler_params=pltpu.CompilerParams(
            dimension_semantics=("parallel",),
            vmem_limit_bytes=48 * 1024 * 1024),
    )(cat, wo, bo)
    return outputs


def decoder_forward_reference(trg_tokens, src_tokens, encoder_out, hidden, params, pad_id):
    """Plain-JAX f32 reference matching the PyTorch module literally."""
    B, T = trg_tokens.shape
    H = hidden.shape[1]
    V, _ = params['embed'].shape
    trg_t = trg_tokens.T
    enc = jnp.transpose(encoder_out, (1, 0, 2)).astype(jnp.float32)
    mask = (src_tokens != pad_id)

    Wa, ba, v = params['attn_w'], params['attn_b'], params['attn_v']
    Wih, Whh = params['gru_w_ih'], params['gru_w_hh']
    bih, bhh = params['gru_b_ih'], params['gru_b_hh']
    Wo, bo = params['out_w'], params['out_b']

    h = hidden.astype(jnp.float32)
    outputs = [jnp.zeros((B, V), jnp.float32)]
    for i in range(1, T):
        x = params['embed'][trg_t[i - 1]]                          # (B, E)
        hid_rep = jnp.broadcast_to(h[:, None, :], (B, enc.shape[1], H))
        cat = jnp.concatenate([hid_rep, enc], axis=2)              # (B, S, 3H)
        energy = jnp.tanh(jnp.einsum('bsi,oi->bso', cat, Wa) + ba)
        score = jnp.einsum('bso,o->bs', energy, v)
        score = jnp.where(mask, score, -jnp.inf)
        attn = jax.nn.softmax(score, axis=1)
        weighted = jnp.einsum('bs,bsd->bd', attn, enc)
        rnn_in = jnp.concatenate([x, weighted], axis=1)
        gi = rnn_in @ Wih.T + bih
        gh = h @ Whh.T + bhh
        r = jax.nn.sigmoid(gi[:, :H] + gh[:, :H])
        z = jax.nn.sigmoid(gi[:, H:2 * H] + gh[:, H:2 * H])
        n = jnp.tanh(gi[:, 2 * H:] + r * gh[:, 2 * H:])
        h = (1.0 - z) * n + z * h
        cat_out = jnp.concatenate([h, weighted, x], axis=1)
        outputs.append(cat_out @ Wo.T + bo)
    return jnp.stack(outputs, axis=0)


if __name__ == "__main__":
    B, S, T = 2, 8, 8          # batch, src_len, trg_len
    V, E, H = 16, 16, 32       # vocab, embed_dim, hidden_size
    PAD, SOS = 0, 1

    key = jax.random.PRNGKey(0)
    ks = jax.random.split(key, 16)
    u = lambda k, shape: jax.random.uniform(k, shape, jnp.float32, -0.1, 0.1)
    params = {
        'embed': u(ks[0], (V, E)).at[PAD].set(0.0),                         # Embedding (pad row = 0)
        'attn_w': u(ks[1], (H, 3 * H)),                                     # Attention.linear.weight
        'attn_b': u(ks[2], (H,)),                                           # Attention.linear.bias
        'attn_v': jax.random.uniform(ks[3], (H,), jnp.float32, 0.0, 1.0),   # Attention.v
        'gru_w_ih': u(ks[4], (3 * H, E + 2 * H)),                           # GRU weight_ih_l0
        'gru_w_hh': u(ks[5], (3 * H, H)),                                   # GRU weight_hh_l0
        'gru_b_ih': u(ks[6], (3 * H,)),
        'gru_b_hh': u(ks[7], (3 * H,)),
        'out_w': u(ks[8], (V, 3 * H + E)),                                  # linear_out.weight
        'out_b': u(ks[9], (V,)),                                            # linear_out.bias
    }

    src_tokens = jax.random.randint(ks[10], (B, S), 2, V)
    src_tokens = src_tokens.at[0, S - 1].set(PAD)        # some padding to exercise the mask
    trg_tokens = jax.random.randint(ks[11], (B, T), 2, V)
    trg_tokens = trg_tokens.at[:, 0].set(SOS)
    encoder_out = 0.1 * jax.random.normal(ks[12], (S, B, 2 * H), jnp.float32)
    hidden = 0.1 * jax.random.normal(ks[13], (B, H), jnp.float32)

    out = decoder_forward_pallas(trg_tokens, src_tokens, encoder_out, hidden, params, PAD)
    out = jax.block_until_ready(out)

    ref = decoder_forward_reference(trg_tokens, src_tokens, encoder_out, hidden, params, PAD)
    assert out.shape == (T, B, V)
    max_err = float(jnp.max(jnp.abs(out - ref)))
    # bf16 MXU operands (enc / enc_proj / weights) + approx softmax reciprocal
    # -> compare against the f32 reference at bf16-appropriate tolerance.
    assert jnp.allclose(out, ref, atol=2e-2, rtol=2e-2), max_err
    print("KERNEL_OK")
</pallas_src>

<mosaic_0001>
module attributes {stable_mosaic.version = 11 : i64} {
  func.func @decoder_steps_kernel(%arg0: i32, %arg1: i32, %arg2: memref<7x2x16xf32, #tpu.memory_space<vmem>>, %arg3: memref<7x2x96xf32, #tpu.memory_space<vmem>>, %arg4: memref<2x8x32xbf16, #tpu.memory_space<vmem>>, %arg5: memref<2x8x64xbf16, #tpu.memory_space<vmem>>, %arg6: memref<2x8xf32, #tpu.memory_space<vmem>>, %arg7: memref<2x32xf32, #tpu.memory_space<vmem>>, %arg8: memref<32x32xbf16, #tpu.memory_space<vmem>>, %arg9: memref<1x32xf32, #tpu.memory_space<vmem>>, %arg10: memref<64x96xbf16, #tpu.memory_space<vmem>>, %arg11: memref<32x96xbf16, #tpu.memory_space<vmem>>, %arg12: memref<1x96xf32, #tpu.memory_space<vmem>>, %arg13: memref<7x2x112xf32, #tpu.memory_space<vmem>>, %arg14: memref<2x32xf32, #tpu.memory_space<vmem>>) attributes {dimension_semantics = [#tpu.dimension_semantics<parallel>, #tpu.dimension_semantics<arbitrary>], iteration_bounds = array<i64: 1, 1>, scalar_prefetch = 0 : i64, scratch_operands = 1 : i64, tpu.core_type = #tpu.core_type<tc>, window_params = [{transform_indices = @transform_0, window_bounds = array<i64: 7, 2, 16>}, {transform_indices = @transform_1, window_bounds = array<i64: 7, 2, 96>}, {transform_indices = @transform_2, window_bounds = array<i64: 2, 8, 32>}, {transform_indices = @transform_3, window_bounds = array<i64: 2, 8, 64>}, {transform_indices = @transform_4, window_bounds = array<i64: 2, 8>}, {transform_indices = @transform_5, window_bounds = array<i64: 2, 32>}, {pipeline_mode = #tpu.pipeline_mode<synchronous>, transform_indices = @transform_6, window_bounds = array<i64: 32, 32>}, {pipeline_mode = #tpu.pipeline_mode<synchronous>, transform_indices = @transform_7, window_bounds = array<i64: 1, 32>}, {pipeline_mode = #tpu.pipeline_mode<synchronous>, transform_indices = @transform_8, window_bounds = array<i64: 64, 96>}, {pipeline_mode = #tpu.pipeline_mode<synchronous>, transform_indices = @transform_9, window_bounds = array<i64: 32, 96>}, {pipeline_mode = #tpu.pipeline_mode<synchronous>, transform_indices = @transform_10, window_bounds = array<i64: 1, 96>}, {transform_indices = @transform_11, window_bounds = array<i64: 7, 2, 112>}]} {
    %c0_i32 = arith.constant 0 : i32
    %0 = arith.cmpi eq, %arg1, %c0_i32 : i32
    %1 = arith.extui %0 : i1 to i32
    %c0_i32_0 = arith.constant 0 : i32
    %2 = arith.cmpi ne, %1, %c0_i32_0 : i32
    scf.if %2 {
      %c0_160 = arith.constant 0 : index
      %c0_161 = arith.constant 0 : index
      %540 = vector.load %arg7[%c0_160, %c0_161] : memref<2x32xf32, #tpu.memory_space<vmem>>, vector<2x32xf32>
      %c0_162 = arith.constant 0 : index
      %c0_163 = arith.constant 0 : index
      %541 = vector.load %arg14[%c0_162, %c0_163] : memref<2x32xf32, #tpu.memory_space<vmem>>, vector<2x32xf32>
      tpu.vector_store %arg14[%c0_162, %c0_163], %540 {strides = array<i32>} : memref<2x32xf32, #tpu.memory_space<vmem>>, vector<2x32xf32>,
    } else {
    }
    %c0 = arith.constant 0 : index
    %c0_1 = arith.constant 0 : index
    %c0_2 = arith.constant 0 : index
    %3 = vector.load %arg5[%c0, %c0_1, %c0_2] : memref<2x8x64xbf16, #tpu.memory_space<vmem>>, vector<2x8x64xbf16>
    %c0_3 = arith.constant 0 : index
    %c0_4 = arith.constant 0 : index
    %c0_5 = arith.constant 0 : index
    %4 = vector.load %arg4[%c0_3, %c0_4, %c0_5] : memref<2x8x32xbf16, #tpu.memory_space<vmem>>, vector<2x8x32xbf16>
    %5 = arith.extf %4 : vector<2x8x32xbf16> to vector<2x8x32xf32>
    %c0_6 = arith.constant 0 : index
    %c0_7 = arith.constant 0 : index
    %6 = vector.load %arg6[%c0_6, %c0_7] : memref<2x8xf32, #tpu.memory_space<vmem>>, vector<2x8xf32>
    %c0_8 = arith.constant 0 : index
    %c0_9 = arith.constant 0 : index
    %7 = vector.load %arg8[%c0_8, %c0_9] : memref<32x32xbf16, #tpu.memory_space<vmem>>, vector<32x32xbf16>
    %c0_10 = arith.constant 0 : index
    %c0_11 = arith.constant 0 : index
    %8 = vector.load %arg9[%c0_10, %c0_11] : memref<1x32xf32, #tpu.memory_space<vmem>>, vector<1x32xf32>
    %9 = vector.shape_cast %8 : vector<1x32xf32> to vector<1x1x32xf32>
    %c0_12 = arith.constant 0 : index
    %c0_13 = arith.constant 0 : index
    %10 = vector.load %arg10[%c0_12, %c0_13] : memref<64x96xbf16, #tpu.memory_space<vmem>>, vector<64x96xbf16>
    %c0_14 = arith.constant 0 : index
    %c0_15 = arith.constant 0 : index
    %11 = vector.load %arg11[%c0_14, %c0_15] : memref<32x96xbf16, #tpu.memory_space<vmem>>, vector<32x96xbf16>
    %c0_16 = arith.constant 0 : index
    %c0_17 = arith.constant 0 : index
    %12 = vector.load %arg12[%c0_16, %c0_17] : memref<1x96xf32, #tpu.memory_space<vmem>>, vector<1x96xf32>
    %c0_18 = arith.constant 0 : index
    %c0_19 = arith.constant 0 : index
    %13 = vector.load %arg14[%c0_18, %c0_19] : memref<2x32xf32, #tpu.memory_space<vmem>>, vector<2x32xf32>
    %c0_i32_20 = arith.constant 0 : i32
    %14 = arith.truncf %13 : vector<2x32xf32> to vector<2x32xbf16>
    %cst = arith.constant dense<0.000000e+00> : vector<2x32xf32>
    %15 = tpu.matmul %14, %7, %cst {dimension_numbers = #tpu.dot_dimension_numbers<[1], [0], [0], [1], [0, 0, 1, 1], [], []>} : vector<2x32xbf16>, vector<32x32xbf16>, vector<2x32xf32> -> vector<2x32xf32>
    %16 = vector.shape_cast %15 : vector<2x32xf32> to vector<2x1x32xf32>
    %17 = vector.broadcast %16 : vector<2x1x32xf32> to vector<2x8x32xf32>
    %18 = arith.addf %17, %5 : vector<2x8x32xf32>
    %19 = math.tanh %18 : vector<2x8x32xf32>
    %20 = vector.broadcast %9 : vector<1x1x32xf32> to vector<2x8x32xf32>
    %21 = arith.mulf %19, %20 : vector<2x8x32xf32>
    %cst_21 = arith.constant dense<0.000000e+00> : vector<2x8xf32>
    %22 = vector.multi_reduction <add>, %21, %cst_21 [2] : vector<2x8x32xf32> to vector<2x8xf32>
    %23 = arith.addf %22, %6 : vector<2x8xf32>
    %cst_22 = arith.constant dense<0xFF800000> : vector<2xf32>
    %24 = vector.multi_reduction <maximumf>, %23, %cst_22 [1] : vector<2x8xf32> to vector<2xf32>
    %25 = vector.shape_cast %24 : vector<2xf32> to vector<2x1xf32>
    %26 = vector.broadcast %25 : vector<2x1xf32> to vector<2x8xf32>
    %27 = arith.subf %23, %26 : vector<2x8xf32>
    %28 = math.exp %27 : vector<2x8xf32>
    %cst_23 = arith.constant dense<0.000000e+00> : vector<2xf32>
    %29 = vector.multi_reduction <add>, %28, %cst_23 [1] : vector<2x8xf32> to vector<2xf32>
    %30 = vector.shape_cast %29 : vector<2xf32> to vector<2x1xf32>
    %31 = tpu.reciprocal %30 {approx = true} : vector<2x1xf32> -> vector<2x1xf32>
    %32 = vector.broadcast %31 : vector<2x1xf32> to vector<2x8xf32>
    %33 = arith.mulf %28, %32 : vector<2x8xf32>
    %34 = vector.shape_cast %33 : vector<2x8xf32> to vector<2x1x8xf32>
    %35 = arith.truncf %34 : vector<2x1x8xf32> to vector<2x1x8xbf16>
    "tpu.trace_start"() <{level = 10 : i32, message = "bqs,bsd->bqd"}> : () -> ()
    %cst_24 = arith.constant dense<0.000000e+00> : vector<2x1x64xf32>
    %36 = tpu.matmul %35, %3, %cst_24 {dimension_numbers = #tpu.dot_dimension_numbers<[2], [1], [1], [2], [0, 0, 0, 1, 1, 2], [0], [0]>} : vector<2x1x8xbf16>, vector<2x8x64xbf16>, vector<2x1x64xf32> -> vector<2x1x64xf32>
    "tpu.trace_stop"() : () -> ()
    %37 = vector.shape_cast %36 : vector<2x1x64xf32> to vector<2x64xf32>
    %38 = arith.index_cast %c0_i32_20 : i32 to index
    %c0_25 = arith.constant 0 : index
    %c0_26 = arith.constant 0 : index
    %39 = vector.load %arg3[%38, %c0_25, %c0_26] : memref<7x2x96xf32, #tpu.memory_space<vmem>>, vector<1x2x96xf32>
    %40 = vector.shape_cast %39 : vector<1x2x96xf32> to vector<2x96xf32>
    %41 = arith.truncf %37 : vector<2x64xf32> to vector<2x64xbf16>
    %cst_27 = arith.constant dense<0.000000e+00> : vector<2x96xf32>
    %42 = tpu.matmul %41, %10, %cst_27 {dimension_numbers = #tpu.dot_dimension_numbers<[1], [0], [0], [1], [0, 0, 1, 1], [], []>} : vector<2x64xbf16>, vector<64x96xbf16>, vector<2x96xf32> -> vector<2x96xf32>
    %43 = arith.addf %40, %42 : vector<2x96xf32>
    %44 = arith.truncf %13 : vector<2x32xf32> to vector<2x32xbf16>
    %cst_28 = arith.constant dense<0.000000e+00> : vector<2x96xf32>
    %45 = tpu.matmul %44, %11, %cst_28 {dimension_numbers = #tpu.dot_dimension_numbers<[1], [0], [0], [1], [0, 0, 1, 1], [], []>} : vector<2x32xbf16>, vector<32x96xbf16>, vector<2x96xf32> -> vector<2x96xf32>
    %46 = vector.broadcast %12 : vector<1x96xf32> to vector<2x96xf32>
    %47 = arith.addf %45, %46 : vector<2x96xf32>
    %48 = vector.extract_strided_slice %43 {offsets = [0, 0], sizes = [2, 32], strides = [1, 1]} : vector<2x96xf32> to vector<2x32xf32>
    %49 = vector.extract_strided_slice %47 {offsets = [0, 0], sizes = [2, 32], strides = [1, 1]} : vector<2x96xf32> to vector<2x32xf32>
    %50 = arith.addf %48, %49 : vector<2x32xf32>
    %51 = arith.negf %50 : vector<2x32xf32>
    %52 = math.exp %51 : vector<2x32xf32>
    %cst_29 = arith.constant 1.000000e+00 : f32
    %53 = vector.broadcast %cst_29 : f32 to vector<2x32xf32>
    %54 = arith.addf %53, %52 : vector<2x32xf32>
    %55 = arith.divf %53, %54 : vector<2x32xf32>
    %56 = vector.extract_strided_slice %43 {offsets = [0, 32], sizes = [2, 32], strides = [1, 1]} : vector<2x96xf32> to vector<2x32xf32>
    %57 = vector.extract_strided_slice %47 {offsets = [0, 32], sizes = [2, 32], strides = [1, 1]} : vector<2x96xf32> to vector<2x32xf32>
    %58 = arith.addf %56, %57 : vector<2x32xf32>
    %59 = arith.negf %58 : vector<2x32xf32>
    %60 = math.exp %59 : vector<2x32xf32>
    %cst_30 = arith.constant 1.000000e+00 : f32
    %61 = vector.broadcast %cst_30 : f32 to vector<2x32xf32>
    %62 = arith.addf %61, %60 : vector<2x32xf32>
    %63 = arith.divf %61, %62 : vector<2x32xf32>
    %64 = vector.extract_strided_slice %43 {offsets = [0, 64], sizes = [2, 32], strides = [1, 1]} : vector<2x96xf32> to vector<2x32xf32>
    %65 = vector.extract_strided_slice %47 {offsets = [0, 64], sizes = [2, 32], strides = [1, 1]} : vector<2x96xf32> to vector<2x32xf32>
    %66 = arith.mulf %55, %65 : vector<2x32xf32>
    %67 = arith.addf %64, %66 : vector<2x32xf32>
    %68 = math.tanh %67 : vector<2x32xf32>
    %cst_31 = arith.constant 1.000000e+00 : f32
    %69 = vector.broadcast %cst_31 : f32 to vector<2x32xf32>
    %70 = arith.subf %69, %63 : vector<2x32xf32>
    %71 = arith.mulf %70, %68 : vector<2x32xf32>
    %72 = arith.mulf %63, %13 : vector<2x32xf32>
    %73 = arith.addf %71, %72 : vector<2x32xf32>
    %74 = arith.index_cast %c0_i32_20 : i32 to index
    %c0_32 = arith.constant 0 : index
    %c0_33 = arith.constant 0 : index
    %75 = vector.load %arg13[%74, %c0_32, %c0_33] : memref<7x2x112xf32, #tpu.memory_space<vmem>>, vector<1x2x32xf32>
    %76 = vector.shape_cast %75 : vector<1x2x32xf32> to vector<2x32xf32>
    %77 = vector.shape_cast %73 : vector<2x32xf32> to vector<1x2x32xf32>
    tpu.vector_store %arg13[%74, %c0_32, %c0_33], %77 {strides = array<i32>} : memref<7x2x112xf32, #tpu.memory_space<vmem>>, vector<1x2x32xf32>,
    %78 = arith.index_cast %c0_i32_20 : i32 to index
    %c0_34 = arith.constant 0 : index
    %c32 = arith.constant 32 : index
    %79 = vector.load %arg13[%78, %c0_34, %c32] : memref<7x2x112xf32, #tpu.memory_space<vmem>>, vector<1x2x64xf32>
    %80 = vector.shape_cast %79 : vector<1x2x64xf32> to vector<2x64xf32>
    %81 = vector.shape_cast %37 : vector<2x64xf32> to vector<1x2x64xf32>
    tpu.vector_store %arg13[%78, %c0_34, %c32], %81 {strides = array<i32>} : memref<7x2x112xf32, #tpu.memory_space<vmem>>, vector<1x2x64xf32>,
    %82 = arith.index_cast %c0_i32_20 : i32 to index
    %c0_35 = arith.constant 0 : index
    %c0_36 = arith.constant 0 : index
    %83 = vector.load %arg2[%82, %c0_35, %c0_36] : memref<7x2x16xf32, #tpu.memory_space<vmem>>, vector<1x2x16xf32>
    %84 = vector.shape_cast %83 : vector<1x2x16xf32> to vector<2x16xf32>
    %85 = arith.index_cast %c0_i32_20 : i32 to index
    %c0_37 = arith.constant 0 : index
    %c96 = arith.constant 96 : index
    %86 = vector.load %arg13[%85, %c0_37, %c96] : memref<7x2x112xf32, #tpu.memory_space<vmem>>, vector<1x2x16xf32>
    %87 = vector.shape_cast %86 : vector<1x2x16xf32> to vector<2x16xf32>
    %88 = vector.shape_cast %84 : vector<2x16xf32> to vector<1x2x16xf32>
    tpu.vector_store %arg13[%85, %c0_37, %c96], %88 {strides = array<i32>} : memref<7x2x112xf32, #tpu.memory_space<vmem>>, vector<1x2x16xf32>,
    %c1_i32 = arith.constant 1 : i32
    %89 = arith.truncf %73 : vector<2x32xf32> to vector<2x32xbf16>
    %cst_38 = arith.constant dense<0.000000e+00> : vector<2x32xf32>
    %90 = tpu.matmul %89, %7, %cst_38 {dimension_numbers = #tpu.dot_dimension_numbers<[1], [0], [0], [1], [0, 0, 1, 1], [], []>} : vector<2x32xbf16>, vector<32x32xbf16>, vector<2x32xf32> -> vector<2x32xf32>
    %91 = vector.shape_cast %90 : vector<2x32xf32> to vector<2x1x32xf32>
    %92 = vector.broadcast %91 : vector<2x1x32xf32> to vector<2x8x32xf32>
    %93 = arith.addf %92, %5 : vector<2x8x32xf32>
    %94 = math.tanh %93 : vector<2x8x32xf32>
    %95 = vector.broadcast %9 : vector<1x1x32xf32> to vector<2x8x32xf32>
    %96 = arith.mulf %94, %95 : vector<2x8x32xf32>
    %cst_39 = arith.constant dense<0.000000e+00> : vector<2x8xf32>
    %97 = vector.multi_reduction <add>, %96, %cst_39 [2] : vector<2x8x32xf32> to vector<2x8xf32>
    %98 = arith.addf %97, %6 : vector<2x8xf32>
    %cst_40 = arith.constant dense<0xFF800000> : vector<2xf32>
    %99 = vector.multi_reduction <maximumf>, %98, %cst_40 [1] : vector<2x8xf32> to vector<2xf32>
    %100 = vector.shape_cast %99 : vector<2xf32> to vector<2x1xf32>
    %101 = vector.broadcast %100 : vector<2x1xf32> to vector<2x8xf32>
    %102 = arith.subf %98, %101 : vector<2x8xf32>
    %103 = math.exp %102 : vector<2x8xf32>
    %cst_41 = arith.constant dense<0.000000e+00> : vector<2xf32>
    %104 = vector.multi_reduction <add>, %103, %cst_41 [1] : vector<2x8xf32> to vector<2xf32>
    %105 = vector.shape_cast %104 : vector<2xf32> to vector<2x1xf32>
    %106 = tpu.reciprocal %105 {approx = true} : vector<2x1xf32> -> vector<2x1xf32>
    %107 = vector.broadcast %106 : vector<2x1xf32> to vector<2x8xf32>
    %108 = arith.mulf %103, %107 : vector<2x8xf32>
    %109 = vector.shape_cast %108 : vector<2x8xf32> to vector<2x1x8xf32>
    %110 = arith.truncf %109 : vector<2x1x8xf32> to vector<2x1x8xbf16>
    "tpu.trace_start"() <{level = 10 : i32, message = "bqs,bsd->bqd"}> : () -> ()
    %cst_42 = arith.constant dense<0.000000e+00> : vector<2x1x64xf32>
    %111 = tpu.matmul %110, %3, %cst_42 {dimension_numbers = #tpu.dot_dimension_numbers<[2], [1], [1], [2], [0, 0, 0, 1, 1, 2], [0], [0]>} : vector<2x1x8xbf16>, vector<2x8x64xbf16>, vector<2x1x64xf32> -> vector<2x1x64xf32>
    "tpu.trace_stop"() : () -> ()
    %112 = vector.shape_cast %111 : vector<2x1x64xf32> to vector<2x64xf32>
    %113 = arith.index_cast %c1_i32 : i32 to index
    %c0_43 = arith.constant 0 : index
    %c0_44 = arith.constant 0 : index
    %114 = vector.load %arg3[%113, %c0_43, %c0_44] : memref<7x2x96xf32, #tpu.memory_space<vmem>>, vector<1x2x96xf32>
    %115 = vector.shape_cast %114 : vector<1x2x96xf32> to vector<2x96xf32>
    %116 = arith.truncf %112 : vector<2x64xf32> to vector<2x64xbf16>
    %cst_45 = arith.constant dense<0.000000e+00> : vector<2x96xf32>
    %117 = tpu.matmul %116, %10, %cst_45 {dimension_numbers = #tpu.dot_dimension_numbers<[1], [0], [0], [1], [0, 0, 1, 1], [], []>} : vector<2x64xbf16>, vector<64x96xbf16>, vector<2x96xf32> -> vector<2x96xf32>
    %118 = arith.addf %115, %117 : vector<2x96xf32>
    %119 = arith.truncf %73 : vector<2x32xf32> to vector<2x32xbf16>
    %cst_46 = arith.constant dense<0.000000e+00> : vector<2x96xf32>
    %120 = tpu.matmul %119, %11, %cst_46 {dimension_numbers = #tpu.dot_dimension_numbers<[1], [0], [0], [1], [0, 0, 1, 1], [], []>} : vector<2x32xbf16>, vector<32x96xbf16>, vector<2x96xf32> -> vector<2x96xf32>
    %121 = vector.broadcast %12 : vector<1x96xf32> to vector<2x96xf32>
    %122 = arith.addf %120, %121 : vector<2x96xf32>
    %123 = vector.extract_strided_slice %118 {offsets = [0, 0], sizes = [2, 32], strides = [1, 1]} : vector<2x96xf32> to vector<2x32xf32>
    %124 = vector.extract_strided_slice %122 {offsets = [0, 0], sizes = [2, 32], strides = [1, 1]} : vector<2x96xf32> to vector<2x32xf32>
    %125 = arith.addf %123, %124 : vector<2x32xf32>
    %126 = arith.negf %125 : vector<2x32xf32>
    %127 = math.exp %126 : vector<2x32xf32>
    %cst_47 = arith.constant 1.000000e+00 : f32
    %128 = vector.broadcast %cst_47 : f32 to vector<2x32xf32>
    %129 = arith.addf %128, %127 : vector<2x32xf32>
    %130 = arith.divf %128, %129 : vector<2x32xf32>
    %131 = vector.extract_strided_slice %118 {offsets = [0, 32], sizes = [2, 32], strides = [1, 1]} : vector<2x96xf32> to vector<2x32xf32>
    %132 = vector.extract_strided_slice %122 {offsets = [0, 32], sizes = [2, 32], strides = [1, 1]} : vector<2x96xf32> to vector<2x32xf32>
    %133 = arith.addf %131, %132 : vector<2x32xf32>
    %134 = arith.negf %133 : vector<2x32xf32>
    %135 = math.exp %134 : vector<2x32xf32>
    %cst_48 = arith.constant 1.000000e+00 : f32
    %136 = vector.broadcast %cst_48 : f32 to vector<2x32xf32>
    %137 = arith.addf %136, %135 : vector<2x32xf32>
    %138 = arith.divf %136, %137 : vector<2x32xf32>
    %139 = vector.extract_strided_slice %118 {offsets = [0, 64], sizes = [2, 32], strides = [1, 1]} : vector<2x96xf32> to vector<2x32xf32>
    %140 = vector.extract_strided_slice %122 {offsets = [0, 64], sizes = [2, 32], strides = [1, 1]} : vector<2x96xf32> to vector<2x32xf32>
    %141 = arith.mulf %130, %140 : vector<2x32xf32>
    %142 = arith.addf %139, %141 : vector<2x32xf32>
    %143 = math.tanh %142 : vector<2x32xf32>
    %cst_49 = arith.constant 1.000000e+00 : f32
    %144 = vector.broadcast %cst_49 : f32 to vector<2x32xf32>
    %145 = arith.subf %144, %138 : vector<2x32xf32>
    %146 = arith.mulf %145, %143 : vector<2x32xf32>
    %147 = arith.mulf %138, %73 : vector<2x32xf32>
    %148 = arith.addf %146, %147 : vector<2x32xf32>
    %149 = arith.index_cast %c1_i32 : i32 to index
    %c0_50 = arith.constant 0 : index
    %c0_51 = arith.constant 0 : index
    %150 = vector.load %arg13[%149, %c0_50, %c0_51] : memref<7x2x112xf32, #tpu.memory_space<vmem>>, vector<1x2x32xf32>
    %151 = vector.shape_cast %150 : vector<1x2x32xf32> to vector<2x32xf32>
    %152 = vector.shape_cast %148 : vector<2x32xf32> to vector<1x2x32xf32>
    tpu.vector_store %arg13[%149, %c0_50, %c0_51], %152 {strides = array<i32>} : memref<7x2x112xf32, #tpu.memory_space<vmem>>, vector<1x2x32xf32>,
    %153 = arith.index_cast %c1_i32 : i32 to index
    %c0_52 = arith.constant 0 : index
    %c32_53 = arith.constant 32 : index
    %154 = vector.load %arg13[%153, %c0_52, %c32_53] : memref<7x2x112xf32, #tpu.memory_space<vmem>>, vector<1x2x64xf32>
    %155 = vector.shape_cast %154 : vector<1x2x64xf32> to vector<2x64xf32>
    %156 = vector.shape_cast %112 : vector<2x64xf32> to vector<1x2x64xf32>
    tpu.vector_store %arg13[%153, %c0_52, %c32_53], %156 {strides = array<i32>} : memref<7x2x112xf32, #tpu.memory_space<vmem>>, vector<1x2x64xf32>,
    %157 = arith.index_cast %c1_i32 : i32 to index
    %c0_54 = arith.constant 0 : index
    %c0_55 = arith.constant 0 : index
    %158 = vector.load %arg2[%157, %c0_54, %c0_55] : memref<7x2x16xf32, #tpu.memory_space<vmem>>, vector<1x2x16xf32>
    %159 = vector.shape_cast %158 : vector<1x2x16xf32> to vector<2x16xf32>
    %160 = arith.index_cast %c1_i32 : i32 to index
    %c0_56 = arith.constant 0 : index
    %c96_57 = arith.constant 96 : index
    %161 = vector.load %arg13[%160, %c0_56, %c96_57] : memref<7x2x112xf32, #tpu.memory_space<vmem>>, vector<1x2x16xf32>
    %162 = vector.shape_cast %161 : vector<1x2x16xf32> to vector<2x16xf32>
    %163 = vector.shape_cast %159 : vector<2x16xf32> to vector<1x2x16xf32>
    tpu.vector_store %arg13[%160, %c0_56, %c96_57], %163 {strides = array<i32>} : memref<7x2x112xf32, #tpu.memory_space<vmem>>, vector<1x2x16xf32>,
    %c2_i32 = arith.constant 2 : i32
    %164 = arith.truncf %148 : vector<2x32xf32> to vector<2x32xbf16>
    %cst_58 = arith.constant dense<0.000000e+00> : vector<2x32xf32>
    %165 = tpu.matmul %164, %7, %cst_58 {dimension_numbers = #tpu.dot_dimension_numbers<[1], [0], [0], [1], [0, 0, 1, 1], [], []>} : vector<2x32xbf16>, vector<32x32xbf16>, vector<2x32xf32> -> vector<2x32xf32>
    %166 = vector.shape_cast %165 : vector<2x32xf32> to vector<2x1x32xf32>
    %167 = vector.broadcast %166 : vector<2x1x32xf32> to vector<2x8x32xf32>
    %168 = arith.addf %167, %5 : vector<2x8x32xf32>
    %169 = math.tanh %168 : vector<2x8x32xf32>
    %170 = vector.broadcast %9 : vector<1x1x32xf32> to vector<2x8x32xf32>
    %171 = arith.mulf %169, %170 : vector<2x8x32xf32>
    %cst_59 = arith.constant dense<0.000000e+00> : vector<2x8xf32>
    %172 = vector.multi_reduction <add>, %171, %cst_59 [2] : vector<2x8x32xf32> to vector<2x8xf32>
    %173 = arith.addf %172, %6 : vector<2x8xf32>
    %cst_60 = arith.constant dense<0xFF800000> : vector<2xf32>
    %174 = vector.multi_reduction <maximumf>, %173, %cst_60 [1] : vector<2x8xf32> to vector<2xf32>
    %175 = vector.shape_cast %174 : vector<2xf32> to vector<2x1xf32>
    %176 = vector.broadcast %175 : vector<2x1xf32> to vector<2x8xf32>
    %177 = arith.subf %173, %176 : vector<2x8xf32>
    %178 = math.exp %177 : vector<2x8xf32>
    %cst_61 = arith.constant dense<0.000000e+00> : vector<2xf32>
    %179 = vector.multi_reduction <add>, %178, %cst_61 [1] : vector<2x8xf32> to vector<2xf32>
    %180 = vector.shape_cast %179 : vector<2xf32> to vector<2x1xf32>
    %181 = tpu.reciprocal %180 {approx = true} : vector<2x1xf32> -> vector<2x1xf32>
    %182 = vector.broadcast %181 : vector<2x1xf32> to vector<2x8xf32>
    %183 = arith.mulf %178, %182 : vector<2x8xf32>
    %184 = vector.shape_cast %183 : vector<2x8xf32> to vector<2x1x8xf32>
    %185 = arith.truncf %184 : vector<2x1x8xf32> to vector<2x1x8xbf16>
    "tpu.trace_start"() <{level = 10 : i32, message = "bqs,bsd->bqd"}> : () -> ()
    %cst_62 = arith.constant dense<0.000000e+00> : vector<2x1x64xf32>
    %186 = tpu.matmul %185, %3, %cst_62 {dimension_numbers = #tpu.dot_dimension_numbers<[2], [1], [1], [2], [0, 0, 0, 1, 1, 2], [0], [0]>} : vector<2x1x8xbf16>, vector<2x8x64xbf16>, vector<2x1x64xf32> -> vector<2x1x64xf32>
    "tpu.trace_stop"() : () -> ()
    %187 = vector.shape_cast %186 : vector<2x1x64xf32> to vector<2x64xf32>
    %188 = arith.index_cast %c2_i32 : i32 to index
    %c0_63 = arith.constant 0 : index
    %c0_64 = arith.constant 0 : index
    %189 = vector.load %arg3[%188, %c0_63, %c0_64] : memref<7x2x96xf32, #tpu.memory_space<vmem>>, vector<1x2x96xf32>
    %190 = vector.shape_cast %189 : vector<1x2x96xf32> to vector<2x96xf32>
    %191 = arith.truncf %187 : vector<2x64xf32> to vector<2x64xbf16>
    %cst_65 = arith.constant dense<0.000000e+00> : vector<2x96xf32>
    %192 = tpu.matmul %191, %10, %cst_65 {dimension_numbers = #tpu.dot_dimension_numbers<[1], [0], [0], [1], [0, 0, 1, 1], [], []>} : vector<2x64xbf16>, vector<64x96xbf16>, vector<2x96xf32> -> vector<2x96xf32>
    %193 = arith.addf %190, %192 : vector<2x96xf32>
    %194 = arith.truncf %148 : vector<2x32xf32> to vector<2x32xbf16>
    %cst_66 = arith.constant dense<0.000000e+00> : vector<2x96xf32>
    %195 = tpu.matmul %194, %11, %cst_66 {dimension_numbers = #tpu.dot_dimension_numbers<[1], [0], [0], [1], [0, 0, 1, 1], [], []>} : vector<2x32xbf16>, vector<32x96xbf16>, vector<2x96xf32> -> vector<2x96xf32>
    %196 = vector.broadcast %12 : vector<1x96xf32> to vector<2x96xf32>
    %197 = arith.addf %195, %196 : vector<2x96xf32>
    %198 = vector.extract_strided_slice %193 {offsets = [0, 0], sizes = [2, 32], strides = [1, 1]} : vector<2x96xf32> to vector<2x32xf32>
    %199 = vector.extract_strided_slice %197 {offsets = [0, 0], sizes = [2, 32], strides = [1, 1]} : vector<2x96xf32> to vector<2x32xf32>
    %200 = arith.addf %198, %199 : vector<2x32xf32>
    %201 = arith.negf %200 : vector<2x32xf32>
    %202 = math.exp %201 : vector<2x32xf32>
    %cst_67 = arith.constant 1.000000e+00 : f32
    %203 = vector.broadcast %cst_67 : f32 to vector<2x32xf32>
    %204 = arith.addf %203, %202 : vector<2x32xf32>
    %205 = arith.divf %203, %204 : vector<2x32xf32>
    %206 = vector.extract_strided_slice %193 {offsets = [0, 32], sizes = [2, 32], strides = [1, 1]} : vector<2x96xf32> to vector<2x32xf32>
    %207 = vector.extract_strided_slice %197 {offsets = [0, 32], sizes = [2, 32], strides = [1, 1]} : vector<2x96xf32> to vector<2x32xf32>
    %208 = arith.addf %206, %207 : vector<2x32xf32>
    %209 = arith.negf %208 : vector<2x32xf32>
    %210 = math.exp %209 : vector<2x32xf32>
    %cst_68 = arith.constant 1.000000e+00 : f32
    %211 = vector.broadcast %cst_68 : f32 to vector<2x32xf32>
    %212 = arith.addf %211, %210 : vector<2x32xf32>
    %213 = arith.divf %211, %212 : vector<2x32xf32>
    %214 = vector.extract_strided_slice %193 {offsets = [0, 64], sizes = [2, 32], strides = [1, 1]} : vector<2x96xf32> to vector<2x32xf32>
    %215 = vector.extract_strided_slice %197 {offsets = [0, 64], sizes = [2, 32], strides = [1, 1]} : vector<2x96xf32> to vector<2x32xf32>
    %216 = arith.mulf %205, %215 : vector<2x32xf32>
    %217 = arith.addf %214, %216 : vector<2x32xf32>
    %218 = math.tanh %217 : vector<2x32xf32>
    %cst_69 = arith.constant 1.000000e+00 : f32
    %219 = vector.broadcast %cst_69 : f32 to vector<2x32xf32>
    %220 = arith.subf %219, %213 : vector<2x32xf32>
    %221 = arith.mulf %220, %218 : vector<2x32xf32>
    %222 = arith.mulf %213, %148 : vector<2x32xf32>
    %223 = arith.addf %221, %222 : vector<2x32xf32>
    %224 = arith.index_cast %c2_i32 : i32 to index
    %c0_70 = arith.constant 0 : index
    %c0_71 = arith.constant 0 : index
    %225 = vector.load %arg13[%224, %c0_70, %c0_71] : memref<7x2x112xf32, #tpu.memory_space<vmem>>, vector<1x2x32xf32>
    %226 = vector.shape_cast %225 : vector<1x2x32xf32> to vector<2x32xf32>
    %227 = vector.shape_cast %223 : vector<2x32xf32> to vector<1x2x32xf32>
    tpu.vector_store %arg13[%224, %c0_70, %c0_71], %227 {strides = array<i32>} : memref<7x2x112xf32, #tpu.memory_space<vmem>>, vector<1x2x32xf32>,
    %228 = arith.index_cast %c2_i32 : i32 to index
    %c0_72 = arith.constant 0 : index
    %c32_73 = arith.constant 32 : index
    %229 = vector.load %arg13[%228, %c0_72, %c32_73] : memref<7x2x112xf32, #tpu.memory_space<vmem>>, vector<1x2x64xf32>
    %230 = vector.shape_cast %229 : vector<1x2x64xf32> to vector<2x64xf32>
    %231 = vector.shape_cast %187 : vector<2x64xf32> to vector<1x2x64xf32>
    tpu.vector_store %arg13[%228, %c0_72, %c32_73], %231 {strides = array<i32>} : memref<7x2x112xf32, #tpu.memory_space<vmem>>, vector<1x2x64xf32>,
    %232 = arith.index_cast %c2_i32 : i32 to index
    %c0_74 = arith.constant 0 : index
    %c0_75 = arith.constant 0 : index
    %233 = vector.load %arg2[%232, %c0_74, %c0_75] : memref<7x2x16xf32, #tpu.memory_space<vmem>>, vector<1x2x16xf32>
    %234 = vector.shape_cast %233 : vector<1x2x16xf32> to vector<2x16xf32>
    %235 = arith.index_cast %c2_i32 : i32 to index
    %c0_76 = arith.constant 0 : index
    %c96_77 = arith.constant 96 : index
    %236 = vector.load %arg13[%235, %c0_76, %c96_77] : memref<7x2x112xf32, #tpu.memory_space<vmem>>, vector<1x2x16xf32>
    %237 = vector.shape_cast %236 : vector<1x2x16xf32> to vector<2x16xf32>
    %238 = vector.shape_cast %234 : vector<2x16xf32> to vector<1x2x16xf32>
    tpu.vector_store %arg13[%235, %c0_76, %c96_77], %238 {strides = array<i32>} : memref<7x2x112xf32, #tpu.memory_space<vmem>>, vector<1x2x16xf32>,
    %c3_i32 = arith.constant 3 : i32
    %239 = arith.truncf %223 : vector<2x32xf32> to vector<2x32xbf16>
    %cst_78 = arith.constant dense<0.000000e+00> : vector<2x32xf32>
    %240 = tpu.matmul %239, %7, %cst_78 {dimension_numbers = #tpu.dot_dimension_numbers<[1], [0], [0], [1], [0, 0, 1, 1], [], []>} : vector<2x32xbf16>, vector<32x32xbf16>, vector<2x32xf32> -> vector<2x32xf32>
    %241 = vector.shape_cast %240 : vector<2x32xf32> to vector<2x1x32xf32>
    %242 = vector.broadcast %241 : vector<2x1x32xf32> to vector<2x8x32xf32>
    %243 = arith.addf %242, %5 : vector<2x8x32xf32>
    %244 = math.tanh %243 : vector<2x8x32xf32>
    %245 = vector.broadcast %9 : vector<1x1x32xf32> to vector<2x8x32xf32>
    %246 = arith.mulf %244, %245 : vector<2x8x32xf32>
    %cst_79 = arith.constant dense<0.000000e+00> : vector<2x8xf32>
    %247 = vector.multi_reduction <add>, %246, %cst_79 [2] : vector<2x8x32xf32> to vector<2x8xf32>
    %248 = arith.addf %247, %6 : vector<2x8xf32>
    %cst_80 = arith.constant dense<0xFF800000> : vector<2xf32>
    %249 = vector.multi_reduction <maximumf>, %248, %cst_80 [1] : vector<2x8xf32> to vector<2xf32>
    %250 = vector.shape_cast %249 : vector<2xf32> to vector<2x1xf32>
    %251 = vector.broadcast %250 : vector<2x1xf32> to vector<2x8xf32>
    %252 = arith.subf %248, %251 : vector<2x8xf32>
    %253 = math.exp %252 : vector<2x8xf32>
    %cst_81 = arith.constant dense<0.000000e+00> : vector<2xf32>
    %254 = vector.multi_reduction <add>, %253, %cst_81 [1] : vector<2x8xf32> to vector<2xf32>
    %255 = vector.shape_cast %254 : vector<2xf32> to vector<2x1xf32>
    %256 = tpu.reciprocal %255 {approx = true} : vector<2x1xf32> -> vector<2x1xf32>
    %257 = vector.broadcast %256 : vector<2x1xf32> to vector<2x8xf32>
    %258 = arith.mulf %253, %257 : vector<2x8xf32>
    %259 = vector.shape_cast %258 : vector<2x8xf32> to vector<2x1x8xf32>
    %260 = arith.truncf %259 : vector<2x1x8xf32> to vector<2x1x8xbf16>
    "tpu.trace_start"() <{level = 10 : i32, message = "bqs,bsd->bqd"}> : () -> ()
    %cst_82 = arith.constant dense<0.000000e+00> : vector<2x1x64xf32>
    %261 = tpu.matmul %260, %3, %cst_82 {dimension_numbers = #tpu.dot_dimension_numbers<[2], [1], [1], [2], [0, 0, 0, 1, 1, 2], [0], [0]>} : vector<2x1x8xbf16>, vector<2x8x64xbf16>, vector<2x1x64xf32> -> vector<2x1x64xf32>
    "tpu.trace_stop"() : () -> ()
    %262 = vector.shape_cast %261 : vector<2x1x64xf32> to vector<2x64xf32>
    %263 = arith.index_cast %c3_i32 : i32 to index
    %c0_83 = arith.constant 0 : index
    %c0_84 = arith.constant 0 : index
    %264 = vector.load %arg3[%263, %c0_83, %c0_84] : memref<7x2x96xf32, #tpu.memory_space<vmem>>, vector<1x2x96xf32>
    %265 = vector.shape_cast %264 : vector<1x2x96xf32> to vector<2x96xf32>
    %266 = arith.truncf %262 : vector<2x64xf32> to vector<2x64xbf16>
    %cst_85 = arith.constant dense<0.000000e+00> : vector<2x96xf32>
    %267 = tpu.matmul %266, %10, %cst_85 {dimension_numbers = #tpu.dot_dimension_numbers<[1], [0], [0], [1], [0, 0, 1, 1], [], []>} : vector<2x64xbf16>, vector<64x96xbf16>, vector<2x96xf32> -> vector<2x96xf32>
    %268 = arith.addf %265, %267 : vector<2x96xf32>
    %269 = arith.truncf %223 : vector<2x32xf32> to vector<2x32xbf16>
    %cst_86 = arith.constant dense<0.000000e+00> : vector<2x96xf32>
    %270 = tpu.matmul %269, %11, %cst_86 {dimension_numbers = #tpu.dot_dimension_numbers<[1], [0], [0], [1], [0, 0, 1, 1], [], []>} : vector<2x32xbf16>, vector<32x96xbf16>, vector<2x96xf32> -> vector<2x96xf32>
    %271 = vector.broadcast %12 : vector<1x96xf32> to vector<2x96xf32>
    %272 = arith.addf %270, %271 : vector<2x96xf32>
    %273 = vector.extract_strided_slice %268 {offsets = [0, 0], sizes = [2, 32], strides = [1, 1]} : vector<2x96xf32> to vector<2x32xf32>
    %274 = vector.extract_strided_slice %272 {offsets = [0, 0], sizes = [2, 32], strides = [1, 1]} : vector<2x96xf32> to vector<2x32xf32>
    %275 = arith.addf %273, %274 : vector<2x32xf32>
    %276 = arith.negf %275 : vector<2x32xf32>
    %277 = math.exp %276 : vector<2x32xf32>
    %cst_87 = arith.constant 1.000000e+00 : f32
    %278 = vector.broadcast %cst_87 : f32 to vector<2x32xf32>
    %279 = arith.addf %278, %277 : vector<2x32xf32>
    %280 = arith.divf %278, %279 : vector<2x32xf32>
    %281 = vector.extract_strided_slice %268 {offsets = [0, 32], sizes = [2, 32], strides = [1, 1]} : vector<2x96xf32> to vector<2x32xf32>
    %282 = vector.extract_strided_slice %272 {offsets = [0, 32], sizes = [2, 32], strides = [1, 1]} : vector<2x96xf32> to vector<2x32xf32>
    %283 = arith.addf %281, %282 : vector<2x32xf32>
    %284 = arith.negf %283 : vector<2x32xf32>
    %285 = math.exp %284 : vector<2x32xf32>
    %cst_88 = arith.constant 1.000000e+00 : f32
    %286 = vector.broadcast %cst_88 : f32 to vector<2x32xf32>
    %287 = arith.addf %286, %285 : vector<2x32xf32>
    %288 = arith.divf %286, %287 : vector<2x32xf32>
    %289 = vector.extract_strided_slice %268 {offsets = [0, 64], sizes = [2, 32], strides = [1, 1]} : vector<2x96xf32> to vector<2x32xf32>
    %290 = vector.extract_strided_slice %272 {offsets = [0, 64], sizes = [2, 32], strides = [1, 1]} : vector<2x96xf32> to vector<2x32xf32>
    %291 = arith.mulf %280, %290 : vector<2x32xf32>
    %292 = arith.addf %289, %291 : vector<2x32xf32>
    %293 = math.tanh %292 : vector<2x32xf32>
    %cst_89 = arith.constant 1.000000e+00 : f32
    %294 = vector.broadcast %cst_89 : f32 to vector<2x32xf32>
    %295 = arith.subf %294, %288 : vector<2x32xf32>
    %296 = arith.mulf %295, %293 : vector<2x32xf32>
    %297 = arith.mulf %288, %223 : vector<2x32xf32>
    %298 = arith.addf %296, %297 : vector<2x32xf32>
    %299 = arith.index_cast %c3_i32 : i32 to index
    %c0_90 = arith.constant 0 : index
    %c0_91 = arith.constant 0 : index
    %300 = vector.load %arg13[%299, %c0_90, %c0_91] : memref<7x2x112xf32, #tpu.memory_space<vmem>>, vector<1x2x32xf32>
    %301 = vector.shape_cast %300 : vector<1x2x32xf32> to vector<2x32xf32>
    %302 = vector.shape_cast %298 : vector<2x32xf32> to vector<1x2x32xf32>
    tpu.vector_store %arg13[%299, %c0_90, %c0_91], %302 {strides = array<i32>} : memref<7x2x112xf32, #tpu.memory_space<vmem>>, vector<1x2x32xf32>,
    %303 = arith.index_cast %c3_i32 : i32 to index
    %c0_92 = arith.constant 0 : index
    %c32_93 = arith.constant 32 : index
    %304 = vector.load %arg13[%303, %c0_92, %c32_93] : memref<7x2x112xf32, #tpu.memory_space<vmem>>, vector<1x2x64xf32>
    %305 = vector.shape_cast %304 : vector<1x2x64xf32> to vector<2x64xf32>
    %306 = vector.shape_cast %262 : vector<2x64xf32> to vector<1x2x64xf32>
    tpu.vector_store %arg13[%303, %c0_92, %c32_93], %306 {strides = array<i32>} : memref<7x2x112xf32, #tpu.memory_space<vmem>>, vector<1x2x64xf32>,
    %307 = arith.index_cast %c3_i32 : i32 to index
    %c0_94 = arith.constant 0 : index
    %c0_95 = arith.constant 0 : index
    %308 = vector.load %arg2[%307, %c0_94, %c0_95] : memref<7x2x16xf32, #tpu.memory_space<vmem>>, vector<1x2x16xf32>
    %309 = vector.shape_cast %308 : vector<1x2x16xf32> to vector<2x16xf32>
    %310 = arith.index_cast %c3_i32 : i32 to index
    %c0_96 = arith.constant 0 : index
    %c96_97 = arith.constant 96 : index
    %311 = vector.load %arg13[%310, %c0_96, %c96_97] : memref<7x2x112xf32, #tpu.memory_space<vmem>>, vector<1x2x16xf32>
    %312 = vector.shape_cast %311 : vector<1x2x16xf32> to vector<2x16xf32>
    %313 = vector.shape_cast %309 : vector<2x16xf32> to vector<1x2x16xf32>
    tpu.vector_store %arg13[%310, %c0_96, %c96_97], %313 {strides = array<i32>} : memref<7x2x112xf32, #tpu.memory_space<vmem>>, vector<1x2x16xf32>,
    %c4_i32 = arith.constant 4 : i32
    %314 = arith.truncf %298 : vector<2x32xf32> to vector<2x32xbf16>
    %cst_98 = arith.constant dense<0.000000e+00> : vector<2x32xf32>
    %315 = tpu.matmul %314, %7, %cst_98 {dimension_numbers = #tpu.dot_dimension_numbers<[1], [0], [0], [1], [0, 0, 1, 1], [], []>} : vector<2x32xbf16>, vector<32x32xbf16>, vector<2x32xf32> -> vector<2x32xf32>
    %316 = vector.shape_cast %315 : vector<2x32xf32> to vector<2x1x32xf32>
    %317 = vector.broadcast %316 : vector<2x1x32xf32> to vector<2x8x32xf32>
    %318 = arith.addf %317, %5 : vector<2x8x32xf32>
    %319 = math.tanh %318 : vector<2x8x32xf32>
    %320 = vector.broadcast %9 : vector<1x1x32xf32> to vector<2x8x32xf32>
    %321 = arith.mulf %319, %320 : vector<2x8x32xf32>
    %cst_99 = arith.constant dense<0.000000e+00> : vector<2x8xf32>
    %322 = vector.multi_reduction <add>, %321, %cst_99 [2] : vector<2x8x32xf32> to vector<2x8xf32>
    %323 = arith.addf %322, %6 : vector<2x8xf32>
    %cst_100 = arith.constant dense<0xFF800000> : vector<2xf32>
    %324 = vector.multi_reduction <maximumf>, %323, %cst_100 [1] : vector<2x8xf32> to vector<2xf32>
    %325 = vector.shape_cast %324 : vector<2xf32> to vector<2x1xf32>
    %326 = vector.broadcast %325 : vector<2x1xf32> to vector<2x8xf32>
    %327 = arith.subf %323, %326 : vector<2x8xf32>
    %328 = math.exp %327 : vector<2x8xf32>
    %cst_101 = arith.constant dense<0.000000e+00> : vector<2xf32>
    %329 = vector.multi_reduction <add>, %328, %cst_101 [1] : vector<2x8xf32> to vector<2xf32>
    %330 = vector.shape_cast %329 : vector<2xf32> to vector<2x1xf32>
    %331 = tpu.reciprocal %330 {approx = true} : vector<2x1xf32> -> vector<2x1xf32>
    %332 = vector.broadcast %331 : vector<2x1xf32> to vector<2x8xf32>
    %333 = arith.mulf %328, %332 : vector<2x8xf32>
    %334 = vector.shape_cast %333 : vector<2x8xf32> to vector<2x1x8xf32>
    %335 = arith.truncf %334 : vector<2x1x8xf32> to vector<2x1x8xbf16>
    "tpu.trace_start"() <{level = 10 : i32, message = "bqs,bsd->bqd"}> : () -> ()
    %cst_102 = arith.constant dense<0.000000e+00> : vector<2x1x64xf32>
    %336 = tpu.matmul %335, %3, %cst_102 {dimension_numbers = #tpu.dot_dimension_numbers<[2], [1], [1], [2], [0, 0, 0, 1, 1, 2], [0], [0]>} : vector<2x1x8xbf16>, vector<2x8x64xbf16>, vector<2x1x64xf32> -> vector<2x1x64xf32>
    "tpu.trace_stop"() : () -> ()
    %337 = vector.shape_cast %336 : vector<2x1x64xf32> to vector<2x64xf32>
    %338 = arith.index_cast %c4_i32 : i32 to index
    %c0_103 = arith.constant 0 : index
    %c0_104 = arith.constant 0 : index
    %339 = vector.load %arg3[%338, %c0_103, %c0_104] : memref<7x2x96xf32, #tpu.memory_space<vmem>>, vector<1x2x96xf32>
    %340 = vector.shape_cast %339 : vector<1x2x96xf32> to vector<2x96xf32>
    %341 = arith.truncf %337 : vector<2x64xf32> to vector<2x64xbf16>
    %cst_105 = arith.constant dense<0.000000e+00> : vector<2x96xf32>
    %342 = tpu.matmul %341, %10, %cst_105 {dimension_numbers = #tpu.dot_dimension_numbers<[1], [0], [0], [1], [0, 0, 1, 1], [], []>} : vector<2x64xbf16>, vector<64x96xbf16>, vector<2x96xf32> -> vector<2x96xf32>
    %343 = arith.addf %340, %342 : vector<2x96xf32>
    %344 = arith.truncf %298 : vector<2x32xf32> to vector<2x32xbf16>
    %cst_106 = arith.constant dense<0.000000e+00> : vector<2x96xf32>
    %345 = tpu.matmul %344, %11, %cst_106 {dimension_numbers = #tpu.dot_dimension_numbers<[1], [0], [0], [1], [0, 0, 1, 1], [], []>} : vector<2x32xbf16>, vector<32x96xbf16>, vector<2x96xf32> -> vector<2x96xf32>
    %346 = vector.broadcast %12 : vector<1x96xf32> to vector<2x96xf32>
    %347 = arith.addf %345, %346 : vector<2x96xf32>
    %348 = vector.extract_strided_slice %343 {offsets = [0, 0], sizes = [2, 32], strides = [1, 1]} : vector<2x96xf32> to vector<2x32xf32>
    %349 = vector.extract_strided_slice %347 {offsets = [0, 0], sizes = [2, 32], strides = [1, 1]} : vector<2x96xf32> to vector<2x32xf32>
    %350 = arith.addf %348, %349 : vector<2x32xf32>
    %351 = arith.negf %350 : vector<2x32xf32>
    %352 = math.exp %351 : vector<2x32xf32>
    %cst_107 = arith.constant 1.000000e+00 : f32
    %353 = vector.broadcast %cst_107 : f32 to vector<2x32xf32>
    %354 = arith.addf %353, %352 : vector<2x32xf32>
    %355 = arith.divf %353, %354 : vector<2x32xf32>
    %356 = vector.extract_strided_slice %343 {offsets = [0, 32], sizes = [2, 32], strides = [1, 1]} : vector<2x96xf32> to vector<2x32xf32>
    %357 = vector.extract_strided_slice %347 {offsets = [0, 32], sizes = [2, 32], strides = [1, 1]} : vector<2x96xf32> to vector<2x32xf32>
    %358 = arith.addf %356, %357 : vector<2x32xf32>
    %359 = arith.negf %358 : vector<2x32xf32>
    %360 = math.exp %359 : vector<2x32xf32>
    %cst_108 = arith.constant 1.000000e+00 : f32
    %361 = vector.broadcast %cst_108 : f32 to vector<2x32xf32>
    %362 = arith.addf %361, %360 : vector<2x32xf32>
    %363 = arith.divf %361, %362 : vector<2x32xf32>
    %364 = vector.extract_strided_slice %343 {offsets = [0, 64], sizes = [2, 32], strides = [1, 1]} : vector<2x96xf32> to vector<2x32xf32>
    %365 = vector.extract_strided_slice %347 {offsets = [0, 64], sizes = [2, 32], strides = [1, 1]} : vector<2x96xf32> to vector<2x32xf32>
    %366 = arith.mulf %355, %365 : vector<2x32xf32>
    %367 = arith.addf %364, %366 : vector<2x32xf32>
    %368 = math.tanh %367 : vector<2x32xf32>
    %cst_109 = arith.constant 1.000000e+00 : f32
    %369 = vector.broadcast %cst_109 : f32 to vector<2x32xf32>
    %370 = arith.subf %369, %363 : vector<2x32xf32>
    %371 = arith.mulf %370, %368 : vector<2x32xf32>
    %372 = arith.mulf %363, %298 : vector<2x32xf32>
    %373 = arith.addf %371, %372 : vector<2x32xf32>
    %374 = arith.index_cast %c4_i32 : i32 to index
    %c0_110 = arith.constant 0 : index
    %c0_111 = arith.constant 0 : index
    %375 = vector.load %arg13[%374, %c0_110, %c0_111] : memref<7x2x112xf32, #tpu.memory_space<vmem>>, vector<1x2x32xf32>
    %376 = vector.shape_cast %375 : vector<1x2x32xf32> to vector<2x32xf32>
    %377 = vector.shape_cast %373 : vector<2x32xf32> to vector<1x2x32xf32>
    tpu.vector_store %arg13[%374, %c0_110, %c0_111], %377 {strides = array<i32>} : memref<7x2x112xf32, #tpu.memory_space<vmem>>, vector<1x2x32xf32>,
    %378 = arith.index_cast %c4_i32 : i32 to index
    %c0_112 = arith.constant 0 : index
    %c32_113 = arith.constant 32 : index
    %379 = vector.load %arg13[%378, %c0_112, %c32_113] : memref<7x2x112xf32, #tpu.memory_space<vmem>>, vector<1x2x64xf32>
    %380 = vector.shape_cast %379 : vector<1x2x64xf32> to vector<2x64xf32>
    %381 = vector.shape_cast %337 : vector<2x64xf32> to vector<1x2x64xf32>
    tpu.vector_store %arg13[%378, %c0_112, %c32_113], %381 {strides = array<i32>} : memref<7x2x112xf32, #tpu.memory_space<vmem>>, vector<1x2x64xf32>,
    %382 = arith.index_cast %c4_i32 : i32 to index
    %c0_114 = arith.constant 0 : index
    %c0_115 = arith.constant 0 : index
    %383 = vector.load %arg2[%382, %c0_114, %c0_115] : memref<7x2x16xf32, #tpu.memory_space<vmem>>, vector<1x2x16xf32>
    %384 = vector.shape_cast %383 : vector<1x2x16xf32> to vector<2x16xf32>
    %385 = arith.index_cast %c4_i32 : i32 to index
    %c0_116 = arith.constant 0 : index
    %c96_117 = arith.constant 96 : index
    %386 = vector.load %arg13[%385, %c0_116, %c96_117] : memref<7x2x112xf32, #tpu.memory_space<vmem>>, vector<1x2x16xf32>
    %387 = vector.shape_cast %386 : vector<1x2x16xf32> to vector<2x16xf32>
    %388 = vector.shape_cast %384 : vector<2x16xf32> to vector<1x2x16xf32>
    tpu.vector_store %arg13[%385, %c0_116, %c96_117], %388 {strides = array<i32>} : memref<7x2x112xf32, #tpu.memory_space<vmem>>, vector<1x2x16xf32>,
    %c5_i32 = arith.constant 5 : i32
    %389 = arith.truncf %373 : vector<2x32xf32> to vector<2x32xbf16>
    %cst_118 = arith.constant dense<0.000000e+00> : vector<2x32xf32>
    %390 = tpu.matmul %389, %7, %cst_118 {dimension_numbers = #tpu.dot_dimension_numbers<[1], [0], [0], [1], [0, 0, 1, 1], [], []>} : vector<2x32xbf16>, vector<32x32xbf16>, vector<2x32xf32> -> vector<2x32xf32>
    %391 = vector.shape_cast %390 : vector<2x32xf32> to vector<2x1x32xf32>
    %392 = vector.broadcast %391 : vector<2x1x32xf32> to vector<2x8x32xf32>
    %393 = arith.addf %392, %5 : vector<2x8x32xf32>
    %394 = math.tanh %393 : vector<2x8x32xf32>
    %395 = vector.broadcast %9 : vector<1x1x32xf32> to vector<2x8x32xf32>
    %396 = arith.mulf %394, %395 : vector<2x8x32xf32>
    %cst_119 = arith.constant dense<0.000000e+00> : vector<2x8xf32>
    %397 = vector.multi_reduction <add>, %396, %cst_119 [2] : vector<2x8x32xf32> to vector<2x8xf32>
    %398 = arith.addf %397, %6 : vector<2x8xf32>
    %cst_120 = arith.constant dense<0xFF800000> : vector<2xf32>
    %399 = vector.multi_reduction <maximumf>, %398, %cst_120 [1] : vector<2x8xf32> to vector<2xf32>
    %400 = vector.shape_cast %399 : vector<2xf32> to vector<2x1xf32>
    %401 = vector.broadcast %400 : vector<2x1xf32> to vector<2x8xf32>
    %402 = arith.subf %398, %401 : vector<2x8xf32>
    %403 = math.exp %402 : vector<2x8xf32>
    %cst_121 = arith.constant dense<0.000000e+00> : vector<2xf32>
    %404 = vector.multi_reduction <add>, %403, %cst_121 [1] : vector<2x8xf32> to vector<2xf32>
    %405 = vector.shape_cast %404 : vector<2xf32> to vector<2x1xf32>
    %406 = tpu.reciprocal %405 {approx = true} : vector<2x1xf32> -> vector<2x1xf32>
    %407 = vector.broadcast %406 : vector<2x1xf32> to vector<2x8xf32>
    %408 = arith.mulf %403, %407 : vector<2x8xf32>
    %409 = vector.shape_cast %408 : vector<2x8xf32> to vector<2x1x8xf32>
    %410 = arith.truncf %409 : vector<2x1x8xf32> to vector<2x1x8xbf16>
    "tpu.trace_start"() <{level = 10 : i32, message = "bqs,bsd->bqd"}> : () -> ()
    %cst_122 = arith.constant dense<0.000000e+00> : vector<2x1x64xf32>
    %411 = tpu.matmul %410, %3, %cst_122 {dimension_numbers = #tpu.dot_dimension_numbers<[2], [1], [1], [2], [0, 0, 0, 1, 1, 2], [0], [0]>} : vector<2x1x8xbf16>, vector<2x8x64xbf16>, vector<2x1x64xf32> -> vector<2x1x64xf32>
    "tpu.trace_stop"() : () -> ()
    %412 = vector.shape_cast %411 : vector<2x1x64xf32> to vector<2x64xf32>
    %413 = arith.index_cast %c5_i32 : i32 to index
    %c0_123 = arith.constant 0 : index
    %c0_124 = arith.constant 0 : index
    %414 = vector.load %arg3[%413, %c0_123, %c0_124] : memref<7x2x96xf32, #tpu.memory_space<vmem>>, vector<1x2x96xf32>
    %415 = vector.shape_cast %414 : vector<1x2x96xf32> to vector<2x96xf32>
    %416 = arith.truncf %412 : vector<2x64xf32> to vector<2x64xbf16>
    %cst_125 = arith.constant dense<0.000000e+00> : vector<2x96xf32>
    %417 = tpu.matmul %416, %10, %cst_125 {dimension_numbers = #tpu.dot_dimension_numbers<[1], [0], [0], [1], [0, 0, 1, 1], [], []>} : vector<2x64xbf16>, vector<64x96xbf16>, vector<2x96xf32> -> vector<2x96xf32>
    %418 = arith.addf %415, %417 : vector<2x96xf32>
    %419 = arith.truncf %373 : vector<2x32xf32> to vector<2x32xbf16>
    %cst_126 = arith.constant dense<0.000000e+00> : vector<2x96xf32>
    %420 = tpu.matmul %419, %11, %cst_126 {dimension_numbers = #tpu.dot_dimension_numbers<[1], [0], [0], [1], [0, 0, 1, 1], [], []>} : vector<2x32xbf16>, vector<32x96xbf16>, vector<2x96xf32> -> vector<2x96xf32>
    %421 = vector.broadcast %12 : vector<1x96xf32> to vector<2x96xf32>
    %422 = arith.addf %420, %421 : vector<2x96xf32>
    %423 = vector.extract_strided_slice %418 {offsets = [0, 0], sizes = [2, 32], strides = [1, 1]} : vector<2x96xf32> to vector<2x32xf32>
    %424 = vector.extract_strided_slice %422 {offsets = [0, 0], sizes = [2, 32], strides = [1, 1]} : vector<2x96xf32> to vector<2x32xf32>
    %425 = arith.addf %423, %424 : vector<2x32xf32>
    %426 = arith.negf %425 : vector<2x32xf32>
    %427 = math.exp %426 : vector<2x32xf32>
    %cst_127 = arith.constant 1.000000e+00 : f32
    %428 = vector.broadcast %cst_127 : f32 to vector<2x32xf32>
    %429 = arith.addf %428, %427 : vector<2x32xf32>
    %430 = arith.divf %428, %429 : vector<2x32xf32>
    %431 = vector.extract_strided_slice %418 {offsets = [0, 32], sizes = [2, 32], strides = [1, 1]} : vector<2x96xf32> to vector<2x32xf32>
    %432 = vector.extract_strided_slice %422 {offsets = [0, 32], sizes = [2, 32], strides = [1, 1]} : vector<2x96xf32> to vector<2x32xf32>
    %433 = arith.addf %431, %432 : vector<2x32xf32>
    %434 = arith.negf %433 : vector<2x32xf32>
    %435 = math.exp %434 : vector<2x32xf32>
    %cst_128 = arith.constant 1.000000e+00 : f32
    %436 = vector.broadcast %cst_128 : f32 to vector<2x32xf32>
    %437 = arith.addf %436, %435 : vector<2x32xf32>
    %438 = arith.divf %436, %437 : vector<2x32xf32>
    %439 = vector.extract_strided_slice %418 {offsets = [0, 64], sizes = [2, 32], strides = [1, 1]} : vector<2x96xf32> to vector<2x32xf32>
    %440 = vector.extract_strided_slice %422 {offsets = [0, 64], sizes = [2, 32], strides = [1, 1]} : vector<2x96xf32> to vector<2x32xf32>
    %441 = arith.mulf %430, %440 : vector<2x32xf32>
    %442 = arith.addf %439, %441 : vector<2x32xf32>
    %443 = math.tanh %442 : vector<2x32xf32>
    %cst_129 = arith.constant 1.000000e+00 : f32
    %444 = vector.broadcast %cst_129 : f32 to vector<2x32xf32>
    %445 = arith.subf %444, %438 : vector<2x32xf32>
    %446 = arith.mulf %445, %443 : vector<2x32xf32>
    %447 = arith.mulf %438, %373 : vector<2x32xf32>
    %448 = arith.addf %446, %447 : vector<2x32xf32>
    %449 = arith.index_cast %c5_i32 : i32 to index
    %c0_130 = arith.constant 0 : index
    %c0_131 = arith.constant 0 : index
    %450 = vector.load %arg13[%449, %c0_130, %c0_131] : memref<7x2x112xf32, #tpu.memory_space<vmem>>, vector<1x2x32xf32>
    %451 = vector.shape_cast %450 : vector<1x2x32xf32> to vector<2x32xf32>
    %452 = vector.shape_cast %448 : vector<2x32xf32> to vector<1x2x32xf32>
    tpu.vector_store %arg13[%449, %c0_130, %c0_131], %452 {strides = array<i32>} : memref<7x2x112xf32, #tpu.memory_space<vmem>>, vector<1x2x32xf32>,
    %453 = arith.index_cast %c5_i32 : i32 to index
    %c0_132 = arith.constant 0 : index
    %c32_133 = arith.constant 32 : index
    %454 = vector.load %arg13[%453, %c0_132, %c32_133] : memref<7x2x112xf32, #tpu.memory_space<vmem>>, vector<1x2x64xf32>
    %455 = vector.shape_cast %454 : vector<1x2x64xf32> to vector<2x64xf32>
    %456 = vector.shape_cast %412 : vector<2x64xf32> to vector<1x2x64xf32>
    tpu.vector_store %arg13[%453, %c0_132, %c32_133], %456 {strides = array<i32>} : memref<7x2x112xf32, #tpu.memory_space<vmem>>, vector<1x2x64xf32>,
    %457 = arith.index_cast %c5_i32 : i32 to index
    %c0_134 = arith.constant 0 : index
    %c0_135 = arith.constant 0 : index
    %458 = vector.load %arg2[%457, %c0_134, %c0_135] : memref<7x2x16xf32, #tpu.memory_space<vmem>>, vector<1x2x16xf32>
    %459 = vector.shape_cast %458 : vector<1x2x16xf32> to vector<2x16xf32>
    %460 = arith.index_cast %c5_i32 : i32 to index
    %c0_136 = arith.constant 0 : index
    %c96_137 = arith.constant 96 : index
    %461 = vector.load %arg13[%460, %c0_136, %c96_137] : memref<7x2x112xf32, #tpu.memory_space<vmem>>, vector<1x2x16xf32>
    %462 = vector.shape_cast %461 : vector<1x2x16xf32> to vector<2x16xf32>
    %463 = vector.shape_cast %459 : vector<2x16xf32> to vector<1x2x16xf32>
    tpu.vector_store %arg13[%460, %c0_136, %c96_137], %463 {strides = array<i32>} : memref<7x2x112xf32, #tpu.memory_space<vmem>>, vector<1x2x16xf32>,
    %c6_i32 = arith.constant 6 : i32
    %464 = arith.truncf %448 : vector<2x32xf32> to vector<2x32xbf16>
    %cst_138 = arith.constant dense<0.000000e+00> : vector<2x32xf32>
    %465 = tpu.matmul %464, %7, %cst_138 {dimension_numbers = #tpu.dot_dimension_numbers<[1], [0], [0], [1], [0, 0, 1, 1], [], []>} : vector<2x32xbf16>, vector<32x32xbf16>, vector<2x32xf32> -> vector<2x32xf32>
    %466 = vector.shape_cast %465 : vector<2x32xf32> to vector<2x1x32xf32>
    %467 = vector.broadcast %466 : vector<2x1x32xf32> to vector<2x8x32xf32>
    %468 = arith.addf %467, %5 : vector<2x8x32xf32>
    %469 = math.tanh %468 : vector<2x8x32xf32>
    %470 = vector.broadcast %9 : vector<1x1x32xf32> to vector<2x8x32xf32>
    %471 = arith.mulf %469, %470 : vector<2x8x32xf32>
    %cst_139 = arith.constant dense<0.000000e+00> : vector<2x8xf32>
    %472 = vector.multi_reduction <add>, %471, %cst_139 [2] : vector<2x8x32xf32> to vector<2x8xf32>
    %473 = arith.addf %472, %6 : vector<2x8xf32>
    %cst_140 = arith.constant dense<0xFF800000> : vector<2xf32>
    %474 = vector.multi_reduction <maximumf>, %473, %cst_140 [1] : vector<2x8xf32> to vector<2xf32>
    %475 = vector.shape_cast %474 : vector<2xf32> to vector<2x1xf32>
    %476 = vector.broadcast %475 : vector<2x1xf32> to vector<2x8xf32>
    %477 = arith.subf %473, %476 : vector<2x8xf32>
    %478 = math.exp %477 : vector<2x8xf32>
    %cst_141 = arith.constant dense<0.000000e+00> : vector<2xf32>
    %479 = vector.multi_reduction <add>, %478, %cst_141 [1] : vector<2x8xf32> to vector<2xf32>
    %480 = vector.shape_cast %479 : vector<2xf32> to vector<2x1xf32>
    %481 = tpu.reciprocal %480 {approx = true} : vector<2x1xf32> -> vector<2x1xf32>
    %482 = vector.broadcast %481 : vector<2x1xf32> to vector<2x8xf32>
    %483 = arith.mulf %478, %482 : vector<2x8xf32>
    %484 = vector.shape_cast %483 : vector<2x8xf32> to vector<2x1x8xf32>
    %485 = arith.truncf %484 : vector<2x1x8xf32> to vector<2x1x8xbf16>
    "tpu.trace_start"() <{level = 10 : i32, message = "bqs,bsd->bqd"}> : () -> ()
    %cst_142 = arith.constant dense<0.000000e+00> : vector<2x1x64xf32>
    %486 = tpu.matmul %485, %3, %cst_142 {dimension_numbers = #tpu.dot_dimension_numbers<[2], [1], [1], [2], [0, 0, 0, 1, 1, 2], [0], [0]>} : vector<2x1x8xbf16>, vector<2x8x64xbf16>, vector<2x1x64xf32> -> vector<2x1x64xf32>
    "tpu.trace_stop"() : () -> ()
    %487 = vector.shape_cast %486 : vector<2x1x64xf32> to vector<2x64xf32>
    %488 = arith.index_cast %c6_i32 : i32 to index
    %c0_143 = arith.constant 0 : index
    %c0_144 = arith.constant 0 : index
    %489 = vector.load %arg3[%488, %c0_143, %c0_144] : memref<7x2x96xf32, #tpu.memory_space<vmem>>, vector<1x2x96xf32>
    %490 = vector.shape_cast %489 : vector<1x2x96xf32> to vector<2x96xf32>
    %491 = arith.truncf %487 : vector<2x64xf32> to vector<2x64xbf16>
    %cst_145 = arith.constant dense<0.000000e+00> : vector<2x96xf32>
    %492 = tpu.matmul %491, %10, %cst_145 {dimension_numbers = #tpu.dot_dimension_numbers<[1], [0], [0], [1], [0, 0, 1, 1], [], []>} : vector<2x64xbf16>, vector<64x96xbf16>, vector<2x96xf32> -> vector<2x96xf32>
    %493 = arith.addf %490, %492 : vector<2x96xf32>
    %494 = arith.truncf %448 : vector<2x32xf32> to vector<2x32xbf16>
    %cst_146 = arith.constant dense<0.000000e+00> : vector<2x96xf32>
    %495 = tpu.matmul %494, %11, %cst_146 {dimension_numbers = #tpu.dot_dimension_numbers<[1], [0], [0], [1], [0, 0, 1, 1], [], []>} : vector<2x32xbf16>, vector<32x96xbf16>, vector<2x96xf32> -> vector<2x96xf32>
    %496 = vector.broadcast %12 : vector<1x96xf32> to vector<2x96xf32>
    %497 = arith.addf %495, %496 : vector<2x96xf32>
    %498 = vector.extract_strided_slice %493 {offsets = [0, 0], sizes = [2, 32], strides = [1, 1]} : vector<2x96xf32> to vector<2x32xf32>
    %499 = vector.extract_strided_slice %497 {offsets = [0, 0], sizes = [2, 32], strides = [1, 1]} : vector<2x96xf32> to vector<2x32xf32>
    %500 = arith.addf %498, %499 : vector<2x32xf32>
    %501 = arith.negf %500 : vector<2x32xf32>
    %502 = math.exp %501 : vector<2x32xf32>
    %cst_147 = arith.constant 1.000000e+00 : f32
    %503 = vector.broadcast %cst_147 : f32 to vector<2x32xf32>
    %504 = arith.addf %503, %502 : vector<2x32xf32>
    %505 = arith.divf %503, %504 : vector<2x32xf32>
    %506 = vector.extract_strided_slice %493 {offsets = [0, 32], sizes = [2, 32], strides = [1, 1]} : vector<2x96xf32> to vector<2x32xf32>
    %507 = vector.extract_strided_slice %497 {offsets = [0, 32], sizes = [2, 32], strides = [1, 1]} : vector<2x96xf32> to vector<2x32xf32>
    %508 = arith.addf %506, %507 : vector<2x32xf32>
    %509 = arith.negf %508 : vector<2x32xf32>
    %510 = math.exp %509 : vector<2x32xf32>
    %cst_148 = arith.constant 1.000000e+00 : f32
    %511 = vector.broadcast %cst_148 : f32 to vector<2x32xf32>
    %512 = arith.addf %511, %510 : vector<2x32xf32>
    %513 = arith.divf %511, %512 : vector<2x32xf32>
    %514 = vector.extract_strided_slice %493 {offsets = [0, 64], sizes = [2, 32], strides = [1, 1]} : vector<2x96xf32> to vector<2x32xf32>
    %515 = vector.extract_strided_slice %497 {offsets = [0, 64], sizes = [2, 32], strides = [1, 1]} : vector<2x96xf32> to vector<2x32xf32>
    %516 = arith.mulf %505, %515 : vector<2x32xf32>
    %517 = arith.addf %514, %516 : vector<2x32xf32>
    %518 = math.tanh %517 : vector<2x32xf32>
    %cst_149 = arith.constant 1.000000e+00 : f32
    %519 = vector.broadcast %cst_149 : f32 to vector<2x32xf32>
    %520 = arith.subf %519, %513 : vector<2x32xf32>
    %521 = arith.mulf %520, %518 : vector<2x32xf32>
    %522 = arith.mulf %513, %448 : vector<2x32xf32>
    %523 = arith.addf %521, %522 : vector<2x32xf32>
    %524 = arith.index_cast %c6_i32 : i32 to index
    %c0_150 = arith.constant 0 : index
    %c0_151 = arith.constant 0 : index
    %525 = vector.load %arg13[%524, %c0_150, %c0_151] : memref<7x2x112xf32, #tpu.memory_space<vmem>>, vector<1x2x32xf32>
    %526 = vector.shape_cast %525 : vector<1x2x32xf32> to vector<2x32xf32>
    %527 = vector.shape_cast %523 : vector<2x32xf32> to vector<1x2x32xf32>
    tpu.vector_store %arg13[%524, %c0_150, %c0_151], %527 {strides = array<i32>} : memref<7x2x112xf32, #tpu.memory_space<vmem>>, vector<1x2x32xf32>,
    %528 = arith.index_cast %c6_i32 : i32 to index
    %c0_152 = arith.constant 0 : index
    %c32_153 = arith.constant 32 : index
    %529 = vector.load %arg13[%528, %c0_152, %c32_153] : memref<7x2x112xf32, #tpu.memory_space<vmem>>, vector<1x2x64xf32>
    %530 = vector.shape_cast %529 : vector<1x2x64xf32> to vector<2x64xf32>
    %531 = vector.shape_cast %487 : vector<2x64xf32> to vector<1x2x64xf32>
    tpu.vector_store %arg13[%528, %c0_152, %c32_153], %531 {strides = array<i32>} : memref<7x2x112xf32, #tpu.memory_space<vmem>>, vector<1x2x64xf32>,
    %532 = arith.index_cast %c6_i32 : i32 to index
    %c0_154 = arith.constant 0 : index
    %c0_155 = arith.constant 0 : index
    %533 = vector.load %arg2[%532, %c0_154, %c0_155] : memref<7x2x16xf32, #tpu.memory_space<vmem>>, vector<1x2x16xf32>
    %534 = vector.shape_cast %533 : vector<1x2x16xf32> to vector<2x16xf32>
    %535 = arith.index_cast %c6_i32 : i32 to index
    %c0_156 = arith.constant 0 : index
    %c96_157 = arith.constant 96 : index
    %536 = vector.load %arg13[%535, %c0_156, %c96_157] : memref<7x2x112xf32, #tpu.memory_space<vmem>>, vector<1x2x16xf32>
    %537 = vector.shape_cast %536 : vector<1x2x16xf32> to vector<2x16xf32>
    %538 = vector.shape_cast %534 : vector<2x16xf32> to vector<1x2x16xf32>
    tpu.vector_store %arg13[%535, %c0_156, %c96_157], %538 {strides = array<i32>} : memref<7x2x112xf32, #tpu.memory_space<vmem>>, vector<1x2x16xf32>,
    %c7_i32 = arith.constant 7 : i32
    %c0_158 = arith.constant 0 : index
    %c0_159 = arith.constant 0 : index
    %539 = vector.load %arg14[%c0_158, %c0_159] : memref<2x32xf32, #tpu.memory_space<vmem>>, vector<2x32xf32>
    tpu.vector_store %arg14[%c0_158, %c0_159], %523 {strides = array<i32>} : memref<2x32xf32, #tpu.memory_space<vmem>>, vector<2x32xf32>,
    return
  }
  func.func @transform_0(%arg0: i32, %arg1: i32) -> (i32, i32, i32) {
    %c0_i32 = arith.constant 0 : i32
    %c0_i32_0 = arith.constant 0 : i32
    return %arg1, %arg0, %c0_i32 : i32, i32, i32
  }
  func.func @transform_1(%arg0: i32, %arg1: i32) -> (i32, i32, i32) {
    %c0_i32 = arith.constant 0 : i32
    %c0_i32_0 = arith.constant 0 : i32
    return %arg1, %arg0, %c0_i32 : i32, i32, i32
  }
  func.func @transform_2(%arg0: i32, %arg1: i32) -> (i32, i32, i32) {
    %c0_i32 = arith.constant 0 : i32
    %c0_i32_0 = arith.constant 0 : i32
    %c0_i32_1 = arith.constant 0 : i32
    return %arg0, %c0_i32, %c0_i32_0 : i32, i32, i32
  }
  func.func @transform_3(%arg0: i32, %arg1: i32) -> (i32, i32, i32) {
    %c0_i32 = arith.constant 0 : i32
    %c0_i32_0 = arith.constant 0 : i32
    %c0_i32_1 = arith.constant 0 : i32
    return %arg0, %c0_i32, %c0_i32_0 : i32, i32, i32
  }
  func.func @transform_4(%arg0: i32, %arg1: i32) -> (i32, i32) {
    %c0_i32 = arith.constant 0 : i32
    %c0_i32_0 = arith.constant 0 : i32
    return %arg0, %c0_i32 : i32, i32
  }
  func.func @transform_5(%arg0: i32, %arg1: i32) -> (i32, i32) {
    %c0_i32 = arith.constant 0 : i32
    %c0_i32_0 = arith.constant 0 : i32
    return %arg0, %c0_i32 : i32, i32
  }
  func.func @transform_6(%arg0: i32, %arg1: i32) -> (i32, i32) {
    %c0_i32 = arith.constant 0 : i32
    %c0_i32_0 = arith.constant 0 : i32
    %c0_i32_1 = arith.constant 0 : i32
    return %c0_i32, %c0_i32_0 : i32, i32
  }
  func.func @transform_7(%arg0: i32, %arg1: i32) -> (i32, i32) {
    %c0_i32 = arith.constant 0 : i32
    %c0_i32_0 = arith.constant 0 : i32
    %c0_i32_1 = arith.constant 0 : i32
    return %c0_i32, %c0_i32_0 : i32, i32
  }
  func.func @transform_8(%arg0: i32, %arg1: i32) -> (i32, i32) {
    %c0_i32 = arith.constant 0 : i32
    %c0_i32_0 = arith.constant 0 : i32
    %c0_i32_1 = arith.constant 0 : i32
    return %c0_i32, %c0_i32_0 : i32, i32
  }
  func.func @transform_9(%arg0: i32, %arg1: i32) -> (i32, i32) {
    %c0_i32 = arith.constant 0 : i32
    %c0_i32_0 = arith.constant 0 : i32
    %c0_i32_1 = arith.constant 0 : i32
    return %c0_i32, %c0_i32_0 : i32, i32
  }
  func.func @transform_10(%arg0: i32, %arg1: i32) -> (i32, i32) {
    %c0_i32 = arith.constant 0 : i32
    %c0_i32_0 = arith.constant 0 : i32
    %c0_i32_1 = arith.constant 0 : i32
    return %c0_i32, %c0_i32_0 : i32, i32
  }
  func.func @transform_11(%arg0: i32, %arg1: i32) -> (i32, i32, i32) {
    %c0_i32 = arith.constant 0 : i32
    %c0_i32_0 = arith.constant 0 : i32
    return %arg1, %arg0, %c0_i32 : i32, i32, i32
  }
}

</mosaic_0001>

<llo_original>
// kernel: tpu_custom_call.1
$region0: #{tpu_custom_call.1}
  #allocation0 [shape = 'u32[]', space=smem, size = 0x4, offset = 0x4, fixed_abs, tag = 'smem constant byte address 0x4 - core index']
  #allocation1 [shape = 'u32[144,128]{1,0:T(1,128)}', space=vmem, size = 0x12000, scoped, tag = 'internal scratch']
  #allocation2 [shape = 'f32[2,32]{1,0:T(2,128)}', space=vmem, size = 0x400, scoped, tag = 'scratch operand']
  %s0 = inlined_call_operand.hbm [shape: f32[7,2,16], index: 0, kind: input, shape index: {}]
  %s1 = inlined_call_operand.hbm [shape: f32[7,2,96], index: 1, kind: input, shape index: {}]
  %s2 = inlined_call_operand.hbm [shape: bf16[2,8,32], index: 2, kind: input, shape index: {}]
  %s3 = inlined_call_operand.hbm [shape: bf16[2,8,64], index: 3, kind: input, shape index: {}]
  %s4 = inlined_call_operand.hbm [shape: f32[2,8], index: 4, kind: input, shape index: {}]
  %s5 = inlined_call_operand.hbm [shape: f32[2,32], index: 5, kind: input, shape index: {}]
  %s6 = inlined_call_operand.hbm [shape: bf16[32,32], index: 6, kind: input, shape index: {}]
  %s7 = inlined_call_operand.hbm [shape: f32[1,32], index: 7, kind: input, shape index: {}]
  %s8 = inlined_call_operand.hbm [shape: bf16[64,96], index: 8, kind: input, shape index: {}]
  %s9 = inlined_call_operand.vmem [shape: bf16[32,96], index: 9, kind: input, shape index: {}]
  %s10 = inlined_call_operand.vmem [shape: f32[1,96], index: 10, kind: input, shape index: {}]
  %s11 = inlined_call_operand.hbm [shape: f32[7,2,112], index: 11, kind: output, shape index: {}]
  %s12 = sld [smem:[#allocation0]]
  $region94: #{tpu_custom_call.1} parent=0
    _
  %s14 = ssub.s32 1, %s12
  %s15 = scalar_select 0, %s14, %s12
  $region1: #{tpu_custom_call.1} parent=0
    #allocation3 [shape = 'u8[7168]{0}', space=vmem, size = 0x1c00, scoped, tag = 'input window, operand 0, single buffered']
    #allocation4 [shape = 's32[1]{0}', space=sflag, size = 0x4, scoped, tag = 'scoped memory for tpu_custom_call.1']
    #allocation5 [shape = 's32[1]{0}', space=sflag, size = 0x4, scoped, tag = 'scoped memory for tpu_custom_call.1']
    #allocation6 [shape = 'u8[7168]{0}', space=vmem, size = 0x1c00, scoped, tag = 'input window, operand 1, single buffered']
    #allocation7 [shape = 's32[1]{0}', space=sflag, size = 0x4, scoped, tag = 'scoped memory for tpu_custom_call.1']
    #allocation8 [shape = 'u8[4096]{0}', space=vmem, size = 0x1000, scoped, tag = 'input window, operand 2, single buffered']
    #allocation9 [shape = 'u8[4096]{0}', space=vmem, size = 0x1000, scoped, tag = 'input window, operand 3, single buffered']
    #allocation10 [shape = 's32[1]{0}', space=sflag, size = 0x4, scoped, tag = 'scoped memory for tpu_custom_call.1']
    #allocation11 [shape = 'u8[1024]{0}', space=vmem, size = 0x400, scoped, tag = 'input window, operand 4, single buffered']
    #allocation12 [shape = 'u8[1024]{0}', space=vmem, size = 0x400, scoped, tag = 'input window, operand 5, single buffered']
    #allocation13 [shape = 's32[1]{0}', space=sflag, size = 0x4, scoped, tag = 'scoped memory for tpu_custom_call.1']
    #allocation14 [shape = 'u8[8192]{0}', space=vmem, size = 0x2000, scoped, tag = 'input window, operand 6, single buffered']
    #allocation15 [shape = 'u8[512]{0}', space=vmem, size = 0x400, scoped, tag = 'input window, operand 7, single buffered']
    #allocation16 [shape = 's32[1]{0}', space=sflag, size = 0x4, scoped, tag = 'scoped memory for tpu_custom_call.1']
    #allocation17 [shape = 'u8[16384]{0}', space=vmem, size = 0x4000, scoped, tag = 'input window, operand 8, single buffered']
    #allocation18 [shape = 'u8[7168]{0}', space=vmem, size = 0x1c00, scoped, tag = 'output window, operand 0, single buffered']
    %16 = vsyncpa [#allocation4], 0
    %17 = vsyncpa [#allocation7], 0
    %18 = vsyncpa [#allocation10], 0
    %19 = vsyncpa [#allocation13], 0
    %20 = vsyncpa [#allocation16], 0
    %21 = vsyncpa [#allocation5], 0
    // Predicated region
    $region2: #{tpu_custom_call.1} parent=1 // pred_check
      _
    $region3: #{tpu_custom_call.1} parent=1 // pred_check_branch
      %23 = sbr.rel (0) target = $region5
    $region4: #{tpu_custom_call.1} parent=1 // pred_region
      %s25 = ssub.s32 224, 224
      %26 = vsyncadd [#allocation4], %s25
      %s27 = sshll.u32 [#allocation3], 4
      %s28 = int_to_ptr.vmem [resolvable:$true] %s27
      %33 = dma.hbm_to_vmem [thread:$0]  %s0, 224, %s28, [#allocation4], 32, 32, 2
    $region5: #{tpu_custom_call.1} parent=1 // pred_fallthru
      _
    // Predicated region
    $region6: #{tpu_custom_call.1} parent=1 // pred_check
      _
    $region7: #{tpu_custom_call.1} parent=1 // pred_check_branch
      %35 = sbr.rel (0) target = $region9
    $region8: #{tpu_custom_call.1} parent=1 // pred_region
      %s37 = ssub.s32 224, 224
      %38 = vsyncadd [#allocation7], %s37
      %s39 = sshll.u32 [#allocation6], 4
      %s40 = int_to_ptr.vmem [resolvable:$true] %s39
      %45 = dma.hbm_to_vmem [thread:$0]  %s1, 224, %s40, [#allocation7], 32, 32, 2
    $region9: #{tpu_custom_call.1} parent=1 // pred_fallthru
      _
    // Predicated region
    $region10: #{tpu_custom_call.1} parent=1 // pred_check
      _
    $region11: #{tpu_custom_call.1} parent=1 // pred_check_branch
      %47 = sbr.rel (0) target = $region13
    $region12: #{tpu_custom_call.1} parent=1 // pred_region
      %s49 = ssub.s32 128, 128
      %50 = vsyncadd [#allocation7], %s49
      %s51 = sshll.u32 [#allocation8], 4
      %s52 = int_to_ptr.vmem [resolvable:$true] %s51
      %57 = dma.hbm_to_vmem [thread:$0]  %s2, 128, %s52, [#allocation7], 64, 64, 4
    $region13: #{tpu_custom_call.1} parent=1 // pred_fallthru
      _
    // Predicated region
    $region14: #{tpu_custom_call.1} parent=1 // pred_check
      _
    $region15: #{tpu_custom_call.1} parent=1 // pred_check_branch
      %59 = sbr.rel (0) target = $region17
    $region16: #{tpu_custom_call.1} parent=1 // pred_region
      %s61 = ssub.s32 128, 128
      %62 = vsyncadd [#allocation10], %s61
      %s63 = sshll.u32 [#allocation9], 4
      %s64 = int_to_ptr.vmem [resolvable:$true] %s63
      %69 = dma.hbm_to_vmem [thread:$0]  %s3, 128, %s64, [#allocation10], 64, 64, 4
    $region17: #{tpu_custom_call.1} parent=1 // pred_fallthru
      _
    // Predicated region
    $region18: #{tpu_custom_call.1} parent=1 // pred_check
      _
    $region19: #{tpu_custom_call.1} parent=1 // pred_check_branch
      %71 = sbr.rel (0) target = $region21
    $region20: #{tpu_custom_call.1} parent=1 // pred_region
      %s73 = ssub.s32 32, 32
      %74 = vsyncadd [#allocation10], %s73
      %s76 = sshll.u32 [#allocation11], 4
      %s77 = int_to_ptr.vmem [resolvable:$true] %s76
      %79 = dma.hbm_to_vmem [thread:$0]  %s4, 32, %s77, [#allocation10]
    $region21: #{tpu_custom_call.1} parent=1 // pred_fallthru
      _
    // Predicated region
    $region22: #{tpu_custom_call.1} parent=1 // pred_check
      _
    $region23: #{tpu_custom_call.1} parent=1 // pred_check_branch
      %81 = sbr.rel (0) target = $region25
    $region24: #{tpu_custom_call.1} parent=1 // pred_region
      %s83 = ssub.s32 32, 32
      %84 = vsyncadd [#allocation13], %s83
      %s86 = sshll.u32 [#allocation12], 4
      %s87 = int_to_ptr.vmem [resolvable:$true] %s86
      %89 = dma.hbm_to_vmem [thread:$0]  %s5, 32, %s87, [#allocation13]
    $region25: #{tpu_custom_call.1} parent=1 // pred_fallthru
      _
    // Predicated region
    $region26: #{tpu_custom_call.1} parent=1 // pred_check
      _
    $region27: #{tpu_custom_call.1} parent=1 // pred_check_branch
      %91 = sbr.rel (0) target = $region29
    $region28: #{tpu_custom_call.1} parent=1 // pred_region
      %s93 = ssub.s32 256, 256
      %94 = vsyncadd [#allocation13], %s93
      %s95 = sshll.u32 [#allocation14], 4
      %s96 = int_to_ptr.vmem [resolvable:$true] %s95
      %101 = dma.hbm_to_vmem [thread:$0]  %s6, 256, %s96, [#allocation13], 64, 64, 4
    $region29: #{tpu_custom_call.1} parent=1 // pred_fallthru
      _
    // Predicated region
    $region30: #{tpu_custom_call.1} parent=1 // pred_check
      _
    $region31: #{tpu_custom_call.1} parent=1 // pred_check_branch
      %103 = sbr.rel (0) target = $region33
    $region32: #{tpu_custom_call.1} parent=1 // pred_region
      %s105 = ssub.s32 16, 16
      %106 = vsyncadd [#allocation16], %s105
      %s108 = sshll.u32 [#allocation15], 4
      %s109 = int_to_ptr.vmem [resolvable:$true] %s108
      %111 = dma.hbm_to_vmem [thread:$0]  %s7, 16, %s109, [#allocation16]
    $region33: #{tpu_custom_call.1} parent=1 // pred_fallthru
      _
    // Predicated region
    $region34: #{tpu_custom_call.1} parent=1 // pred_check
      _
    $region35: #{tpu_custom_call.1} parent=1 // pred_check_branch
      %113 = sbr.rel (0) target = $region37
    $region36: #{tpu_custom_call.1} parent=1 // pred_region
      %s115 = ssub.s32 512, 512
      %116 = vsyncadd [#allocation16], %s115
      %s117 = sshll.u32 [#allocation17], 4
      %s118 = int_to_ptr.vmem [resolvable:$true] %s117
      %123 = dma.hbm_to_vmem [thread:$0]  %s8, 512, %s118, [#allocation16], 64, 64, 4
    $region37: #{tpu_custom_call.1} parent=1 // pred_fallthru
      _
    // Predicated region
    $region38: #{tpu_custom_call.1} parent=1 // pred_check
      _
    $region39: #{tpu_custom_call.1} parent=1 // pred_check_branch
      %125 = sbr.rel (0) target = $region41
    $region40: #{tpu_custom_call.1} parent=1 // pred_region
      _
    $region41: #{tpu_custom_call.1} parent=1 // pred_fallthru
      _
    // Predicated region
    $region42: #{tpu_custom_call.1} parent=1 // pred_check
      _
    $region43: #{tpu_custom_call.1} parent=1 // pred_check_branch
      %127 = sbr.rel (0) target = $region45
    $region44: #{tpu_custom_call.1} parent=1 // pred_region
      _
    $region45: #{tpu_custom_call.1} parent=1 // pred_fallthru
      _
    // Predicated region
    $region46: #{tpu_custom_call.1} parent=1 // pred_check
      _
    $region47: #{tpu_custom_call.1} parent=1 // pred_check_branch
      %129 = sbr.rel (0) target = $region49
    $region48: #{tpu_custom_call.1} parent=1 // pred_region
      %130 = dma.done [#allocation4], 224
    $region49: #{tpu_custom_call.1} parent=1 // pred_fallthru
      _
    // Predicated region
    $region50: #{tpu_custom_call.1} parent=1 // pred_check
      _
    $region51: #{tpu_custom_call.1} parent=1 // pred_check_branch
      %132 = sbr.rel (0) target = $region53
    $region52: #{tpu_custom_call.1} parent=1 // pred_region
      %133 = dma.done [#allocation7], 224
    $region53: #{tpu_custom_call.1} parent=1 // pred_fallthru
      _
    // Predicated region
    $region54: #{tpu_custom_call.1} parent=1 // pred_check
      _
    $region55: #{tpu_custom_call.1} parent=1 // pred_check_branch
      %135 = sbr.rel (0) target = $region57
    $region56: #{tpu_custom_call.1} parent=1 // pred_region
      %136 = dma.done [#allocation7], 128
    $region57: #{tpu_custom_call.1} parent=1 // pred_fallthru
      _
    // Predicated region
    $region58: #{tpu_custom_call.1} parent=1 // pred_check
      _
    $region59: #{tpu_custom_call.1} parent=1 // pred_check_branch
      %138 = sbr.rel (0) target = $region61
    $region60: #{tpu_custom_call.1} parent=1 // pred_region
      %139 = dma.done [#allocation10], 128
    $region61: #{tpu_custom_call.1} parent=1 // pred_fallthru
      _
    // Predicated region
    $region62: #{tpu_custom_call.1} parent=1 // pred_check
      _
    $region63: #{tpu_custom_call.1} parent=1 // pred_check_branch
      %141 = sbr.rel (0) target = $region65
    $region64: #{tpu_custom_call.1} parent=1 // pred_region
      %142 = dma.done [#allocation10], 32
    $region65: #{tpu_custom_call.1} parent=1 // pred_fallthru
      _
    // Predicated region
    $region66: #{tpu_custom_call.1} parent=1 // pred_check
      _
    $region67: #{tpu_custom_call.1} parent=1 // pred_check_branch
      %144 = sbr.rel (0) target = $region69
    $region68: #{tpu_custom_call.1} parent=1 // pred_region
      %145 = dma.done [#allocation13], 32
    $region69: #{tpu_custom_call.1} parent=1 // pred_fallthru
      _
    // Predicated region
    $region70: #{tpu_custom_call.1} parent=1 // pred_check
      _
    $region71: #{tpu_custom_call.1} parent=1 // pred_check_branch
      %147 = sbr.rel (0) target = $region73
    $region72: #{tpu_custom_call.1} parent=1 // pred_region
      %148 = dma.done [#allocation13], 256
    $region73: #{tpu_custom_call.1} parent=1 // pred_fallthru
      _
    // Predicated region
    $region74: #{tpu_custom_call.1} parent=1 // pred_check
      _
    $region75: #{tpu_custom_call.1} parent=1 // pred_check_branch
      %150 = sbr.rel (0) target = $region77
    $region76: #{tpu_custom_call.1} parent=1 // pred_region
      %151 = dma.done [#allocation16], 16
    $region77: #{tpu_custom_call.1} parent=1 // pred_fallthru
      _
    // Predicated region
    $region78: #{tpu_custom_call.1} parent=1 // pred_check
      _
    $region79: #{tpu_custom_call.1} parent=1 // pred_check_branch
      %153 = sbr.rel (0) target = $region81
    $region80: #{tpu_custom_call.1} parent=1 // pred_region
      %154 = dma.done [#allocation16], 512
    $region81: #{tpu_custom_call.1} parent=1 // pred_fallthru
      _
    %p156 = scmp.eq.s32.totalorder 0, 0
    // Predicated region
    $region82: #{tpu_custom_call.1} parent=1 // pred_check
      %p157 = pneg %p156
    $region83: #{tpu_custom_call.1} parent=1 // pred_check_branch
      %159 = sbr.rel (%p157) target = $region85
    $region84: #{tpu_custom_call.1} parent=1 // pred_region
      %v160 = vld [vmem:[#allocation12] sm:$0x3]
      %vm161 = vcmask 254976
      %162 = vst.msk [vmem:[#allocation2] sm:$0x3] %vm161, %v160
    $region85: #{tpu_custom_call.1} parent=1 // pred_fallthru
      _
    %v163 = vld [vmem:[#allocation9] sm:$0xf]
    %v164 = vld [vmem:[#allocation9 + $0x4] sm:$0xf]
    %v165 = vld [vmem:[#allocation8] sm:$0xf]
    %v166 = vld [vmem:[#allocation8 + $0x4] sm:$0xf]
    %v167 = vunpack.c.l.bf16 %v165
    %v168 = vunpack.c.l.bf16 %v166
    %v169 = vld [vmem:[#allocation11] sm:$0x3]
    %v170 = vld [vmem:[#allocation14] sm:$0xf]
    %v171 = vld [vmem:[#allocation14 + $0x4] sm:$0xf]
    %v172 = vld [vmem:[#allocation14 + $0x8] sm:$0xf]
    %v173 = vld [vmem:[#allocation14 + $0xc] sm:$0xf]
    %v174 = vld [vmem:[#allocation15] sm:$0x1]
    %v175 = vld [vmem:[#allocation17] sm:$0xf]
    %v176 = vld [vmem:[#allocation17 + $0x4] sm:$0xf]
    %v177 = vld [vmem:[#allocation17 + $0x8] sm:$0xf]
    %v178 = vld [vmem:[#allocation17 + $0xc] sm:$0xf]
    %v179 = vld [vmem:[#allocation17 + $0x10] sm:$0xf]
    %v180 = vld [vmem:[#allocation17 + $0x14] sm:$0xf]
    %v181 = vld [vmem:[#allocation17 + $0x18] sm:$0xf]
    %v182 = vld [vmem:[#allocation17 + $0x1c] sm:$0xf]
    %v183 = vld [vmem:[%s9] sm:$0xf]
    %v184 = vld [vmem:[%s9 + $0x4] sm:$0xf]
    %v185 = vld [vmem:[%s9 + $0x8] sm:$0xf]
    %v186 = vld [vmem:[%s9 + $0xc] sm:$0xf]
    %v187 = vld [vmem:[%s10] sm:$0x1]
    %v188 = vld [vmem:[#allocation2] sm:$0x3]
    %v189 = vpack.c.bf16 %v188, %v188
    %v194 = vunpack.c.l.b16 %v170
    %v195 = vunpack.c.l.b16 %v171
    %v196 = vunpack.c.l.b16 %v172
    %v197 = vunpack.c.l.b16 %v173
    %v198 = vpack.c.b16 %v195, %v194
    %v199 = vpack.c.b16 %v197, %v196
    %vm202 = vcmask 261120
    %v204 = vsel %vm202, %v189, 0
    %206 = vmatprep.subr.bf16.mxu0 0
    %207 = vmatpush1.bf16.msra.mxu0 0
    %208 = vmatprep.subr.bf16.mxu0 0
    %209 = vmatpush1.bf16.msra.mxu0 0
    %210 = vmatprep.subr.bf16.mxu0 0
    %211 = vmatpush1.bf16.msra.mxu0 0
    %212 = vmatprep.subr.bf16.mxu0 0
    %213 = vmatpush1.bf16.msra.mxu0 0
    %214 = vmatprep.subr.bf16.mxu0 0
    %215 = vmatpush1.bf16.msra.mxu0 0
    %216 = vmatprep.subr.bf16.mxu0 0
    %217 = vmatpush1.bf16.msra.mxu0 0
    %218 = vmatprep.subr.bf16.mxu0 0
    %219 = vmatpush1.bf16.msra.mxu0 %v199
    %220 = vmatprep.subr.bf16.mxu0 0
    %221 = vmatpush1.bf16.msra.mxu0 %v198
    %222 = vmatprep.subr.bf16.mxu0 0
    %223 = vmatpush2.bf16.msra.mxu0 0
    %224 = vmatprep.subr.bf16.mxu0 0
    %225 = vmatpush2.bf16.msra.mxu0 0
    %226 = vmatprep.subr.bf16.mxu0 0
    %227 = vmatpush2.bf16.msra.mxu0 0
    %228 = vmatprep.subr.bf16.mxu0 0
    %229 = vmatpush2.bf16.msra.mxu0 0
    %230 = vmatprep.subr.bf16.mxu0 0
    %231 = vmatpush2.bf16.msra.mxu0 0
    %232 = vmatprep.subr.bf16.mxu0 0
    %233 = vmatpush2.bf16.msra.mxu0 0
    %234 = vmatprep.subr.bf16.mxu0 0
    %235 = vmatpush2.bf16.msra.mxu0 0
    %236 = vmatprep.subr.bf16.mxu0 0
    %237 = vmatpush2.bf16.msra.mxu0 0
    %238 = vmatprep.mubr.bf16.mxu0 0
    %239 = vmatmul.mubr.bf16.gmra.mxu0 %v204
    %v240 = vpop.f32.mrf.mxu0
    %v241 = vadd.f32 0.0, %v240
    %v242 = vpop.f32.mrf.mxu0
    %v243 = vpop.f32.mrf.mxu0
    %v244 = vpop.f32.mrf.mxu0
    %245 = vdwg.mxu0
    %v248 = vunpack.c.l.s4 1966171168
    %v249 = vunpack.c.0.s8 %v248
    %v250 = vlaneseq
    %v251 = vshrl.u32 %v250, 7
    %v252 = vsub.s32 %v249, %v251
    %v253 = vrot.slane %v241, %v252
    %v254 = vcombine.high %v253, %v253
    %v256 = vunpack.c.l.s4 1966171168
    %v257 = vunpack.c.0.s8 %v256
    %v258 = vlaneseq
    %v259 = vshrl.u32 %v258, 7
    %v260 = vsub.s32 %v257, %v259
    %v261 = vrot.slane %v253, %v260
    %v263 = vunpack.c.l.s4 1966171168
    %v264 = vunpack.c.0.s8 %v263
    %v265 = vlaneseq
    %v266 = vshrl.u32 %v265, 7
    %v267 = vsub.s32 %v264, %v266
    %v268 = vrot.slane %v254, %v267
    %v269 = vlaneseq
    %v270 = vshrl.u32 %v269, 7
    %v271 = vsub.s32 0, %v270
    %v272 = vrot.slane %v261, %v271
    %v273 = vlaneseq
    %v274 = vshrl.u32 %v273, 7
    %v275 = vsub.s32 0, %v274
    %v276 = vrot.slane %v268, %v275
    %v279 = vadd.f32 %v272, %v167
    %v280 = vadd.f32 %v276, %v168
    %v281 = vtanh.pop %v279
    %v282 = vtanh.pop %v280
    %v284 = vlaneseq
    %v285 = vshrl.u32 %v284, 7
    %v286 = vsub.s32 0, %v285
    %v287 = vrot.slane %v174, %v286
    %v289 = vmul.f32 %v281, %v287
    %v290 = vmul.f32 %v282, %v287
    %v291 = vsel %vm202, %v289, 0.0
    %292 = vadd.xlane.f32.xlu0 %v291
    %v293 = vpop.xlane.xlu0 %292
    %v294 = vsel %vm202, %v290, 0.0
    %295 = vadd.xlane.f32.xlu0 %v294
    %v296 = vpop.xlane.xlu0 %295
    %v298 = vlaneseq
    %v299 = vshrl.u32 %v298, 7
    %v300 = vsub.s32 0, %v299
    %v301 = vrot.slane %v169, %v300
    %303 = vbcast.lane.b32.xlu0 %v301, 256
    %v304 = vpop.permute.xlu0 %303
    %v305 = vlaneseq
    %v306 = vshrl.u32 %v305, 7
    %v307 = vsub.s32 1, %v306
    %v308 = vrot.slane %v169, %v307
    %310 = vbcast.lane.b32.xlu0 %v308, 256
    %v311 = vpop.permute.xlu0 %310
    %v314 = vadd.f32 %v293, %v304
    %v315 = vadd.f32 %v296, %v311
    %318 = vset.pattern.permute.xlu0 0
    %319 = vperm.xlu0 %318, %v314
    %v320 = vpop.permute.xlu0 %319
    %321 = vset.pattern.permute.xlu0 0
    %322 = vperm.xlu0 %321, %v315
    %v323 = vpop.permute.xlu0 %322
    %v324 = vlaneseq
    %v325 = vand.u32 %v324, 127
    %v326 = vlaneseq
    %v327 = vshrl.u32 %v326, 7
    %v328 = vsub.s32 %v325, %v327
    %v329 = vrot.slane %v320, %v328
    %v330 = vlaneseq
    %v331 = vshrl.u32 %v330, 7
    %v332 = vsub.s32 %v325, %v331
    %v333 = vrot.slane %v323, %v332
    %vm334 = vcmask 1041409
    %v335 = vsel %vm334, %v333, %v329
    %vm337 = vcmask 58368
    %v338 = vsel %vm337, %v335, -inf
    %339 = vmax.xlane.f32.xlu0 %v338
    %v340 = vpop.xlane.xlu0 %339
    %v342 = vlaneseq
    %v343 = vshrl.u32 %v342, 7
    %v344 = vsub.s32 0, %v343
    %v345 = vrot.slane %v340, %v344
    %v346 = vlaneseq
    %v347 = vshrl.u32 %v346, 7
    %v348 = vsub.s32 1, %v347
    %v349 = vrot.slane %v340, %v348
    %v352 = vsub.f32 %v314, %v345
    %v353 = vsub.f32 %v315, %v349
    %v354 = vmul.f32 %v352, 1.442695
    %v355 = vpow.pop %v354
    %v356 = vmul.f32 %v353, 1.442695
    %v357 = vpow.pop %v356
    %360 = vset.pattern.permute.xlu0 0
    %361 = vperm.xlu0 %360, %v355
    %v362 = vpop.permute.xlu0 %361
    %363 = vset.pattern.permute.xlu0 0
    %364 = vperm.xlu0 %363, %v357
    %v365 = vpop.permute.xlu0 %364
    %v366 = vlaneseq
    %v367 = vshrl.u32 %v366, 7
    %v368 = vsub.s32 %v325, %v367
    %v369 = vrot.slane %v362, %v368
    %v370 = vlaneseq
    %v371 = vshrl.u32 %v370, 7
    %v372 = vsub.s32 %v325, %v371
    %v373 = vrot.slane %v365, %v372
    %v374 = vsel %vm334, %v373, %v369
    %v376 = vsel %vm337, %v374, 0.0
    %377 = vadd.xlane.f32.xlu0 %v376
    %v378 = vpop.xlane.xlu0 %377
    %v379 = vrcp.pop %v378
    %v381 = vlaneseq
    %v382 = vshrl.u32 %v381, 7
    %v383 = vsub.s32 0, %v382
    %v384 = vrot.slane %v379, %v383
    %v385 = vlaneseq
    %v386 = vshrl.u32 %v385, 7
    %v387 = vsub.s32 1, %v386
    %v388 = vrot.slane %v379, %v387
    %v391 = vmul.f32 %v355, %v384
    %v392 = vmul.f32 %v357, %v388
    %v393 = vpack.c.bf16 %v391, %v391
    %v394 = vpack.c.bf16 %v392, %v392
    %v396 = vunpack.c.l.b16 %v393
    %397 = vset.pattern.permute.xlu0 0
    %398 = vperm.xlu0 %397, %v396
    %v399 = vpop.permute.xlu0 %398
    %v400 = vlaneseq
    %v401 = vshrl.u32 %v400, 7
    %v402 = vsub.s32 %v325, %v401
    %v403 = vrot.slane %v399, %v402
    %v404 = vpack.c.b16 %v403, %v403
    %vm405 = vcmask 64512
    %v407 = vsel %vm405, %v404, 0
    %vm409 = vcmask 1043456
    %v411 = vsel %vm409, %v163, 0
    %413 = vmatprep.subr.bf16.mxu0 0
    %414 = vmatpush1.bf16.msra.mxu0 0
    %415 = vmatprep.subr.bf16.mxu0 0
    %416 = vmatpush1.bf16.msra.mxu0 0
    %417 = vmatprep.subr.bf16.mxu0 0
    %418 = vmatpush1.bf16.msra.mxu0 0
    %419 = vmatprep.subr.bf16.mxu0 0
    %420 = vmatpush1.bf16.msra.mxu0 0
    %421 = vmatprep.subr.bf16.mxu0 0
    %422 = vmatpush1.bf16.msra.mxu0 0
    %423 = vmatprep.subr.bf16.mxu0 0
    %424 = vmatpush1.bf16.msra.mxu0 0
    %425 = vmatprep.subr.bf16.mxu0 0
    %426 = vmatpush1.bf16.msra.mxu0 0
    %427 = vmatprep.subr.bf16.mxu0 0
    %428 = vmatpush1.bf16.msra.mxu0 %v411
    %429 = vmatprep.subr.bf16.mxu0 0
    %430 = vmatpush2.bf16.msra.mxu0 0
    %431 = vmatprep.subr.bf16.mxu0 0
    %432 = vmatpush2.bf16.msra.mxu0 0
    %433 = vmatprep.subr.bf16.mxu0 0
    %434 = vmatpush2.bf16.msra.mxu0 0
    %435 = vmatprep.subr.bf16.mxu0 0
    %436 = vmatpush2.bf16.msra.mxu0 0
    %437 = vmatprep.subr.bf16.mxu0 0
    %438 = vmatpush2.bf16.msra.mxu0 0
    %439 = vmatprep.subr.bf16.mxu0 0
    %440 = vmatpush2.bf16.msra.mxu0 0
    %441 = vmatprep.subr.bf16.mxu0 0
    %442 = vmatpush2.bf16.msra.mxu0 0
    %443 = vmatprep.subr.bf16.mxu0 0
    %444 = vmatpush2.bf16.msra.mxu0 0
    %445 = vmatprep.mubr.bf16.mxu0 0
    %446 = vmatmul.mubr.bf16.gmra.mxu0 %v407
    %v447 = vpop.f32.mrf.mxu0
    %v448 = vadd.f32 0.0, %v447
    %v449 = vpop.f32.mrf.mxu0
    %v450 = vpop.f32.mrf.mxu0
    %v451 = vpop.f32.mrf.mxu0
    %452 = vdwg.mxu0
    %v454 = vunpack.c.l.b16 %v394
    %455 = vset.pattern.permute.xlu0 0
    %456 = vperm.xlu0 %455, %v454
    %v457 = vpop.permute.xlu0 %456
    %v458 = vlaneseq
    %v459 = vshrl.u32 %v458, 7
    %v460 = vsub.s32 %v325, %v459
    %v461 = vrot.slane %v457, %v460
    %v462 = vpack.c.b16 %v461, %v461
    %v464 = vsel %vm405, %v462, 0
    %v467 = vsel %vm409, %v164, 0
    %469 = vmatprep.subr.bf16.mxu0 0
    %470 = vmatpush1.bf16.msra.mxu0 0
    %471 = vmatprep.subr.bf16.mxu0 0
    %472 = vmatpush1.bf16.msra.mxu0 0
    %473 = vmatprep.subr.bf16.mxu0 0
    %474 = vmatpush1.bf16.msra.mxu0 0
    %475 = vmatprep.subr.bf16.mxu0 0
    %476 = vmatpush1.bf16.msra.mxu0 0
    %477 = vmatprep.subr.bf16.mxu0 0
    %478 = vmatpush1.bf16.msra.mxu0 0
    %479 = vmatprep.subr.bf16.mxu0 0
    %480 = vmatpush1.bf16.msra.mxu0 0
    %481 = vmatprep.subr.bf16.mxu0 0
    %482 = vmatpush1.bf16.msra.mxu0 0
    %483 = vmatprep.subr.bf16.mxu0 0
    %484 = vmatpush1.bf16.msra.mxu0 %v467
    %485 = vmatprep.subr.bf16.mxu0 0
    %486 = vmatpush2.bf16.msra.mxu0 0
    %487 = vmatprep.subr.bf16.mxu0 0
    %488 = vmatpush2.bf16.msra.mxu0 0
    %489 = vmatprep.subr.bf16.mxu0 0
    %490 = vmatpush2.bf16.msra.mxu0 0
    %491 = vmatprep.subr.bf16.mxu0 0
    %492 = vmatpush2.bf16.msra.mxu0 0
    %493 = vmatprep.subr.bf16.mxu0 0
    %494 = vmatpush2.bf16.msra.mxu0 0
    %495 = vmatprep.subr.bf16.mxu0 0
    %496 = vmatpush2.bf16.msra.mxu0 0
    %497 = vmatprep.subr.bf16.mxu0 0
    %498 = vmatpush2.bf16.msra.mxu0 0
    %499 = vmatprep.subr.bf16.mxu0 0
    %500 = vmatpush2.bf16.msra.mxu0 0
    %501 = vmatprep.mubr.bf16.mxu0 0
    %502 = vmatmul.mubr.bf16.gmra.mxu0 %v464
    %v503 = vpop.f32.mrf.mxu0
    %v504 = vadd.f32 0.0, %v503
    %v505 = vpop.f32.mrf.mxu0
    %v506 = vpop.f32.mrf.mxu0
    %v507 = vpop.f32.mrf.mxu0
    %508 = vdwg.mxu0
    %v509 = vld [vmem:[#allocation6] sm:$0x3]
    %v510 = vpack.c.bf16 %v448, %v448
    %v511 = vpack.c.bf16 %v504, %v504
    %v514 = vunpack.c.l.b16 %v510
    %v515 = vunpack.c.l.b16 %v511
    %v516 = vrot.slane %v515, 7
    %v517 = vsel %vm334, %v516, %v514
    %v518 = vpack.c.b16 %v517, %v517
    %v527 = vunpack.c.l.b16 %v175
    %v528 = vunpack.c.l.b16 %v176
    %v529 = vunpack.c.l.b16 %v177
    %v530 = vunpack.c.l.b16 %v178
    %v531 = vunpack.c.l.b16 %v179
    %v532 = vunpack.c.l.b16 %v180
    %v533 = vunpack.c.l.b16 %v181
    %v534 = vunpack.c.l.b16 %v182
    %v535 = vpack.c.b16 %v528, %v527
    %v536 = vpack.c.b16 %v530, %v529
    %v537 = vpack.c.b16 %v532, %v531
    %v538 = vpack.c.b16 %v534, %v533
    %vm543 = vcmask 523264
    %v545 = vsel %vm543, %v518, 0
    %547 = vmatprep.subr.bf16.mxu0 0
    %548 = vmatpush1.bf16.msra.mxu0 0
    %549 = vmatprep.subr.bf16.mxu0 0
    %550 = vmatpush1.bf16.msra.mxu0 0
    %551 = vmatprep.subr.bf16.mxu0 0
    %552 = vmatpush1.bf16.msra.mxu0 0
    %553 = vmatprep.subr.bf16.mxu0 0
    %554 = vmatpush1.bf16.msra.mxu0 0
    %555 = vmatprep.subr.bf16.mxu0 0
    %556 = vmatpush1.bf16.msra.mxu0 %v538
    %557 = vmatprep.subr.bf16.mxu0 0
    %558 = vmatpush1.bf16.msra.mxu0 %v537
    %559 = vmatprep.subr.bf16.mxu0 0
    %560 = vmatpush1.bf16.msra.mxu0 %v536
    %561 = vmatprep.subr.bf16.mxu0 0
    %562 = vmatpush1.bf16.msra.mxu0 %v535
    %563 = vmatprep.subr.bf16.mxu0 0
    %564 = vmatpush2.bf16.msra.mxu0 0
    %565 = vmatprep.subr.bf16.mxu0 0
    %566 = vmatpush2.bf16.msra.mxu0 0
    %567 = vmatprep.subr.bf16.mxu0 0
    %568 = vmatpush2.bf16.msra.mxu0 0
    %569 = vmatprep.subr.bf16.mxu0 0
    %570 = vmatpush2.bf16.msra.mxu0 0
    %571 = vmatprep.subr.bf16.mxu0 0
    %572 = vmatpush2.bf16.msra.mxu0 0
    %573 = vmatprep.subr.bf16.mxu0 0
    %574 = vmatpush2.bf16.msra.mxu0 0
    %575 = vmatprep.subr.bf16.mxu0 0
    %576 = vmatpush2.bf16.msra.mxu0 0
    %577 = vmatprep.subr.bf16.mxu0 0
    %578 = vmatpush2.bf16.msra.mxu0 0
    %579 = vmatprep.mubr.bf16.mxu0 0
    %580 = vmatmul.mubr.bf16.gmra.mxu0 %v545
    %v581 = vpop.f32.mrf.mxu0
    %v582 = vadd.f32 0.0, %v581
    %v583 = vpop.f32.mrf.mxu0
    %v584 = vpop.f32.mrf.mxu0
    %v585 = vpop.f32.mrf.mxu0
    %586 = vdwg.mxu0
    %v587 = vadd.f32 %v509, %v582
    %v589 = vlaneseq
    %v590 = vshrl.u32 %v589, 7
    %v591 = vsub.s32 0, %v590
    %v592 = vrot.slane %v187, %v591
    %v598 = vunpack.c.l.b16 %v183
    %v599 = vunpack.c.l.b16 %v184
    %v600 = vunpack.c.l.b16 %v185
    %v601 = vunpack.c.l.b16 %v186
    %v602 = vpack.c.b16 %v599, %v598
    %v603 = vpack.c.b16 %v601, %v600
    %606 = vmatprep.subr.bf16.mxu0 0
    %607 = vmatpush1.bf16.msra.mxu0 0
    %608 = vmatprep.subr.bf16.mxu0 0
    %609 = vmatpush1.bf16.msra.mxu0 0
    %610 = vmatprep.subr.bf16.mxu0 0
    %611 = vmatpush1.bf16.msra.mxu0 0
    %612 = vmatprep.subr.bf16.mxu0 0
    %613 = vmatpush1.bf16.msra.mxu0 0
    %614 = vmatprep.subr.bf16.mxu0 0
    %615 = vmatpush1.bf16.msra.mxu0 0
    %616 = vmatprep.subr.bf16.mxu0 0
    %617 = vmatpush1.bf16.msra.mxu0 0
    %618 = vmatprep.subr.bf16.mxu0 0
    %619 = vmatpush1.bf16.msra.mxu0 %v603
    %620 = vmatprep.subr.bf16.mxu0 0
    %621 = vmatpush1.bf16.msra.mxu0 %v602
    %622 = vmatprep.subr.bf16.mxu0 0
    %623 = vmatpush2.bf16.msra.mxu0 0
    %624 = vmatprep.subr.bf16.mxu0 0
    %625 = vmatpush2.bf16.msra.mxu0 0
    %626 = vmatprep.subr.bf16.mxu0 0
    %627 = vmatpush2.bf16.msra.mxu0 0
    %628 = vmatprep.subr.bf16.mxu0 0
    %629 = vmatpush2.bf16.msra.mxu0 0
    %630 = vmatprep.subr.bf16.mxu0 0
    %631 = vmatpush2.bf16.msra.mxu0 0
    %632 = vmatprep.subr.bf16.mxu0 0
    %633 = vmatpush2.bf16.msra.mxu0 0
    %634 = vmatprep.subr.bf16.mxu0 0
    %635 = vmatpush2.bf16.msra.mxu0 0
    %636 = vmatprep.subr.bf16.mxu0 0
    %637 = vmatpush2.bf16.msra.mxu0 0
    %638 = vmatprep.mubr.bf16.mxu0 0
    %639 = vmatmul.mubr.bf16.gmra.mxu0 %v204
    %v640 = vpop.f32.mrf.mxu0
    %v641 = vadd.f32 %v592, %v640
    %v642 = vpop.f32.mrf.mxu0
    %v643 = vpop.f32.mrf.mxu0
    %v644 = vpop.f32.mrf.mxu0
    %645 = vdwg.mxu0
    %v646 = vadd.f32 %v587, %v641
    %v647 = vxor.u32 %v646, 2147483648
    %v648 = vmul.f32 %v647, 1.442695
    %v649 = vpow.pop %v648
    %v650 = vadd.f32 %v649, 1.0
    %v651 = vrcp.pop %v650
    %v652 = vmul.f32 1.0, %v651
    %654 = vrot.lane.b32.xlu0 %v641, 64
    %v655 = vpop.permute.xlu0 %654
    %v657 = vmul.f32 %v652, %v655
    %659 = vrot.lane.b32.xlu0 %v657, 64
    %v660 = vpop.permute.xlu0 %659
    %v662 = vadd.f32 %v587, %v660
    %v663 = vtanh.pop %v662
    %v664 = vsub.f32 1.0, %v652
    %666 = vrot.lane.b32.xlu0 %v663, 96
    %v667 = vpop.permute.xlu0 %666
    %v669 = vmul.f32 %v664, %v667
    %671 = vrot.lane.b32.xlu0 %v188, 32
    %v672 = vpop.permute.xlu0 %671
    %v674 = vmul.f32 %v652, %v672
    %v675 = vadd.f32 %v669, %v674
    %677 = vrot.lane.b32.xlu0 %v675, 96
    %v678 = vpop.permute.xlu0 %677
    %vm680 = vcmask 254976
    %681 = vst.msk [vmem:[#allocation18] sm:$0x3] %vm680, %v678
    %v684 = vrot.slane %v504, 7
    %v685 = vsel %vm334, %v684, %v448
    %686 = vrot.lane.b32.xlu0 %v685, 32
    %v687 = vpop.permute.xlu0 %686
    %vm689 = vcmask 779520
    %690 = vst.msk [vmem:[#allocation18] sm:$0x3] %vm689, %v687
    %v691 = vld [vmem:[#allocation3] sm:$0x3]
    %693 = vrot.lane.b32.xlu0 %v691, 96
    %v694 = vpop.permute.xlu0 %693
    %vm696 = vcmask 911104
    %697 = vst.msk [vmem:[#allocation18] sm:$0x3] %vm696, %v694
    %v698 = vpack.c.bf16 %v675, %v675
    %700 = vrot.lane.b32.xlu0 %v698, 96
    %v701 = vpop.permute.xlu0 %700
    %v703 = vsel %vm202, %v701, 0
    %705 = vmatprep.subr.bf16.mxu0 0
    %706 = vmatpush1.bf16.msra.mxu0 0
    %707 = vmatprep.subr.bf16.mxu0 0
    %708 = vmatpush1.bf16.msra.mxu0 0
    %709 = vmatprep.subr.bf16.mxu0 0
    %710 = vmatpush1.bf16.msra.mxu0 0
    %711 = vmatprep.subr.bf16.mxu0 0
    %712 = vmatpush1.bf16.msra.mxu0 0
    %713 = vmatprep.subr.bf16.mxu0 0
    %714 = vmatpush1.bf16.msra.mxu0 0
    %715 = vmatprep.subr.bf16.mxu0 0
    %716 = vmatpush1.bf16.msra.mxu0 0
    %717 = vmatprep.subr.bf16.mxu0 0
    %718 = vmatpush1.bf16.msra.mxu0 %v199
    %719 = vmatprep.subr.bf16.mxu0 0
    %720 = vmatpush1.bf16.msra.mxu0 %v198
    %721 = vmatprep.subr.bf16.mxu0 0
    %722 = vmatpush2.bf16.msra.mxu0 0
    %723 = vmatprep.subr.bf16.mxu0 0
    %724 = vmatpush2.bf16.msra.mxu0 0
    %725 = vmatprep.subr.bf16.mxu0 0
    %726 = vmatpush2.bf16.msra.mxu0 0
    %727 = vmatprep.subr.bf16.mxu0 0
    %728 = vmatpush2.bf16.msra.mxu0 0
    %729 = vmatprep.subr.bf16.mxu0 0
    %730 = vmatpush2.bf16.msra.mxu0 0
    %731 = vmatprep.subr.bf16.mxu0 0
    %732 = vmatpush2.bf16.msra.mxu0 0
    %733 = vmatprep.subr.bf16.mxu0 0
    %734 = vmatpush2.bf16.msra.mxu0 0
    %735 = vmatprep.subr.bf16.mxu0 0
    %736 = vmatpush2.bf16.msra.mxu0 0
    %737 = vmatprep.mubr.bf16.mxu0 0
    %738 = vmatmul.mubr.bf16.gmra.mxu0 %v703
    %v739 = vpop.f32.mrf.mxu0
    %v740 = vadd.f32 0.0, %v739
    %v741 = vpop.f32.mrf.mxu0
    %v742 = vpop.f32.mrf.mxu0
    %v743 = vpop.f32.mrf.mxu0
    %744 = vdwg.mxu0
    %v747 = vunpack.c.l.s4 1966171168
    %v748 = vunpack.c.0.s8 %v747
    %v749 = vlaneseq
    %v750 = vshrl.u32 %v749, 7
    %v751 = vsub.s32 %v748, %v750
    %v752 = vrot.slane %v740, %v751
    %v753 = vcombine.high %v752, %v752
    %v755 = vunpack.c.l.s4 1966171168
    %v756 = vunpack.c.0.s8 %v755
    %v757 = vlaneseq
    %v758 = vshrl.u32 %v757, 7
    %v759 = vsub.s32 %v756, %v758
    %v760 = vrot.slane %v752, %v759
    %v762 = vunpack.c.l.s4 1966171168
    %v763 = vunpack.c.0.s8 %v762
    %v764 = vlaneseq
    %v765 = vshrl.u32 %v764, 7
    %v766 = vsub.s32 %v763, %v765
    %v767 = vrot.slane %v753, %v766
    %v768 = vlaneseq
    %v769 = vshrl.u32 %v768, 7
    %v770 = vsub.s32 0, %v769
    %v771 = vrot.slane %v760, %v770
    %v772 = vlaneseq
    %v773 = vshrl.u32 %v772, 7
    %v774 = vsub.s32 0, %v773
    %v775 = vrot.slane %v767, %v774
    %v778 = vadd.f32 %v771, %v167
    %v779 = vadd.f32 %v775, %v168
    %v780 = vtanh.pop %v778
    %v781 = vtanh.pop %v779
    %v782 = vmul.f32 %v780, %v287
    %v783 = vmul.f32 %v781, %v287
    %v784 = vsel %vm202, %v782, 0.0
    %785 = vadd.xlane.f32.xlu0 %v784
    %v786 = vpop.xlane.xlu0 %785
    %v787 = vsel %vm202, %v783, 0.0
    %788 = vadd.xlane.f32.xlu0 %v787
    %v789 = vpop.xlane.xlu0 %788
    %v790 = vadd.f32 %v786, %v304
    %v791 = vadd.f32 %v789, %v311
    %794 = vset.pattern.permute.xlu0 0
    %795 = vperm.xlu0 %794, %v790
    %v796 = vpop.permute.xlu0 %795
    %797 = vset.pattern.permute.xlu0 0
    %798 = vperm.xlu0 %797, %v791
    %v799 = vpop.permute.xlu0 %798
    %v800 = vlaneseq
    %v801 = vshrl.u32 %v800, 7
    %v802 = vsub.s32 %v325, %v801
    %v803 = vrot.slane %v796, %v802
    %v804 = vlaneseq
    %v805 = vshrl.u32 %v804, 7
    %v806 = vsub.s32 %v325, %v805
    %v807 = vrot.slane %v799, %v806
    %v808 = vsel %vm334, %v807, %v803
    %v810 = vsel %vm337, %v808, -inf
    %811 = vmax.xlane.f32.xlu0 %v810
    %v812 = vpop.xlane.xlu0 %811
    %v814 = vlaneseq
    %v815 = vshrl.u32 %v814, 7
    %v816 = vsub.s32 0, %v815
    %v817 = vrot.slane %v812, %v816
    %v818 = vlaneseq
    %v819 = vshrl.u32 %v818, 7
    %v820 = vsub.s32 1, %v819
    %v821 = vrot.slane %v812, %v820
    %v824 = vsub.f32 %v790, %v817
    %v825 = vsub.f32 %v791, %v821
    %v826 = vmul.f32 %v824, 1.442695
    %v827 = vpow.pop %v826
    %v828 = vmul.f32 %v825, 1.442695
    %v829 = vpow.pop %v828
    %832 = vset.pattern.permute.xlu0 0
    %833 = vperm.xlu0 %832, %v827
    %v834 = vpop.permute.xlu0 %833
    %835 = vset.pattern.permute.xlu0 0
    %836 = vperm.xlu0 %835, %v829
    %v837 = vpop.permute.xlu0 %836
    %v838 = vlaneseq
    %v839 = vshrl.u32 %v838, 7
    %v840 = vsub.s32 %v325, %v839
    %v841 = vrot.slane %v834, %v840
    %v842 = vlaneseq
    %v843 = vshrl.u32 %v842, 7
    %v844 = vsub.s32 %v325, %v843
    %v845 = vrot.slane %v837, %v844
    %v846 = vsel %vm334, %v845, %v841
    %v848 = vsel %vm337, %v846, 0.0
    %849 = vadd.xlane.f32.xlu0 %v848
    %v850 = vpop.xlane.xlu0 %849
    %v851 = vrcp.pop %v850
    %v853 = vlaneseq
    %v854 = vshrl.u32 %v853, 7
    %v855 = vsub.s32 0, %v854
    %v856 = vrot.slane %v851, %v855
    %v857 = vlaneseq
    %v858 = vshrl.u32 %v857, 7
    %v859 = vsub.s32 1, %v858
    %v860 = vrot.slane %v851, %v859
    %v863 = vmul.f32 %v827, %v856
    %v864 = vmul.f32 %v829, %v860
    %v865 = vpack.c.bf16 %v863, %v863
    %v866 = vpack.c.bf16 %v864, %v864
    %v868 = vunpack.c.l.b16 %v865
    %869 = vset.pattern.permute.xlu0 0
    %870 = vperm.xlu0 %869, %v868
    %v871 = vpop.permute.xlu0 %870
    %v872 = vlaneseq
    %v873 = vshrl.u32 %v872, 7
    %v874 = vsub.s32 %v325, %v873
    %v875 = vrot.slane %v871, %v874
    %v876 = vpack.c.b16 %v875, %v875
    %v878 = vsel %vm405, %v876, 0
    %880 = vmatprep.subr.bf16.mxu0 0
    %881 = vmatpush1.bf16.msra.mxu0 0
    %882 = vmatprep.subr.bf16.mxu0 0
    %883 = vmatpush1.bf16.msra.mxu0 0
    %884 = vmatprep.subr.bf16.mxu0 0
    %885 = vmatpush1.bf16.msra.mxu0 0
    %886 = vmatprep.subr.bf16.mxu0 0
    %887 = vmatpush1.bf16.msra.mxu0 0
    %888 = vmatprep.subr.bf16.mxu0 0
    %889 = vmatpush1.bf16.msra.mxu0 0
    %890 = vmatprep.subr.bf16.mxu0 0
    %891 = vmatpush1.bf16.msra.mxu0 0
    %892 = vmatprep.subr.bf16.mxu0 0
    %893 = vmatpush1.bf16.msra.mxu0 0
    %894 = vmatprep.subr.bf16.mxu0 0
    %895 = vmatpush1.bf16.msra.mxu0 %v411
    %896 = vmatprep.subr.bf16.mxu0 0
    %897 = vmatpush2.bf16.msra.mxu0 0
    %898 = vmatprep.subr.bf16.mxu0 0
    %899 = vmatpush2.bf16.msra.mxu0 0
    %900 = vmatprep.subr.bf16.mxu0 0
    %901 = vmatpush2.bf16.msra.mxu0 0
    %902 = vmatprep.subr.bf16.mxu0 0
    %903 = vmatpush2.bf16.msra.mxu0 0
    %904 = vmatprep.subr.bf16.mxu0 0
    %905 = vmatpush2.bf16.msra.mxu0 0
    %906 = vmatprep.subr.bf16.mxu0 0
    %907 = vmatpush2.bf16.msra.mxu0 0
    %908 = vmatprep.subr.bf16.mxu0 0
    %909 = vmatpush2.bf16.msra.mxu0 0
    %910 = vmatprep.subr.bf16.mxu0 0
    %911 = vmatpush2.bf16.msra.mxu0 0
    %912 = vmatprep.mubr.bf16.mxu0 0
    %913 = vmatmul.mubr.bf16.gmra.mxu0 %v878
    %v914 = vpop.f32.mrf.mxu0
    %v915 = vadd.f32 0.0, %v914
    %v916 = vpop.f32.mrf.mxu0
    %v917 = vpop.f32.mrf.mxu0
    %v918 = vpop.f32.mrf.mxu0
    %919 = vdwg.mxu0
    %v921 = vunpack.c.l.b16 %v866
    %922 = vset.pattern.permute.xlu0 0
    %923 = vperm.xlu0 %922, %v921
    %v924 = vpop.permute.xlu0 %923
    %v925 = vlaneseq
    %v926 = vshrl.u32 %v925, 7
    %v927 = vsub.s32 %v325, %v926
    %v928 = vrot.slane %v924, %v927
    %v929 = vpack.c.b16 %v928, %v928
    %v931 = vsel %vm405, %v929, 0
    %933 = vmatprep.subr.bf16.mxu0 0
    %934 = vmatpush1.bf16.msra.mxu0 0
    %935 = vmatprep.subr.bf16.mxu0 0
    %936 = vmatpush1.bf16.msra.mxu0 0
    %937 = vmatprep.subr.bf16.mxu0 0
    %938 = vmatpush1.bf16.msra.mxu0 0
    %939 = vmatprep.subr.bf16.mxu0 0
    %940 = vmatpush1.bf16.msra.mxu0 0
    %941 = vmatprep.subr.bf16.mxu0 0
    %942 = vmatpush1.bf16.msra.mxu0 0
    %943 = vmatprep.subr.bf16.mxu0 0
    %944 = vmatpush1.bf16.msra.mxu0 0
    %945 = vmatprep.subr.bf16.mxu0 0
    %946 = vmatpush1.bf16.msra.mxu0 0
    %947 = vmatprep.subr.bf16.mxu0 0
    %948 = vmatpush1.bf16.msra.mxu0 %v467
    %949 = vmatprep.subr.bf16.mxu0 0
    %950 = vmatpush2.bf16.msra.mxu0 0
    %951 = vmatprep.subr.bf16.mxu0 0
    %952 = vmatpush2.bf16.msra.mxu0 0
    %953 = vmatprep.subr.bf16.mxu0 0
    %954 = vmatpush2.bf16.msra.mxu0 0
    %955 = vmatprep.subr.bf16.mxu0 0
    %956 = vmatpush2.bf16.msra.mxu0 0
    %957 = vmatprep.subr.bf16.mxu0 0
    %958 = vmatpush2.bf16.msra.mxu0 0
    %959 = vmatprep.subr.bf16.mxu0 0
    %960 = vmatpush2.bf16.msra.mxu0 0
    %961 = vmatprep.subr.bf16.mxu0 0
    %962 = vmatpush2.bf16.msra.mxu0 0
    %963 = vmatprep.subr.bf16.mxu0 0
    %964 = vmatpush2.bf16.msra.mxu0 0
    %965 = vmatprep.mubr.bf16.mxu0 0
    %966 = vmatmul.mubr.bf16.gmra.mxu0 %v931
    %v967 = vpop.f32.mrf.mxu0
    %v968 = vadd.f32 0.0, %v967
    %v969 = vpop.f32.mrf.mxu0
    %v970 = vpop.f32.mrf.mxu0
    %v971 = vpop.f32.mrf.mxu0
    %972 = vdwg.mxu0
    %s973 = scalar_lea.vmem [#allocation6], 2
    %v974 = vld [vmem:[%s973] sm:$0x3]
    %v975 = vpack.c.bf16 %v915, %v915
    %v976 = vpack.c.bf16 %v968, %v968
    %v979 = vunpack.c.l.b16 %v975
    %v980 = vunpack.c.l.b16 %v976
    %v981 = vrot.slane %v980, 7
    %v982 = vsel %vm334, %v981, %v979
    %v983 = vpack.c.b16 %v982, %v982
    %v985 = vsel %vm543, %v983, 0
    %987 = vmatprep.subr.bf16.mxu0 0
    %988 = vmatpush1.bf16.msra.mxu0 0
    %989 = vmatprep.subr.bf16.mxu0 0
    %990 = vmatpush1.bf16.msra.mxu0 0
    %991 = vmatprep.subr.bf16.mxu0 0
    %992 = vmatpush1.bf16.msra.mxu0 0
    %993 = vmatprep.subr.bf16.mxu0 0
    %994 = vmatpush1.bf16.msra.mxu0 0
    %995 = vmatprep.subr.bf16.mxu0 0
    %996 = vmatpush1.bf16.msra.mxu0 %v538
    %997 = vmatprep.subr.bf16.mxu0 0
    %998 = vmatpush1.bf16.msra.mxu0 %v537
    %999 = vmatprep.subr.bf16.mxu0 0
    %1000 = vmatpush1.bf16.msra.mxu0 %v536
    %1001 = vmatprep.subr.bf16.mxu0 0
    %1002 = vmatpush1.bf16.msra.mxu0 %v535
    %1003 = vmatprep.subr.bf16.mxu0 0
    %1004 = vmatpush2.bf16.msra.mxu0 0
    %1005 = vmatprep.subr.bf16.mxu0 0
    %1006 = vmatpush2.bf16.msra.mxu0 0
    %1007 = vmatprep.subr.bf16.mxu0 0
    %1008 = vmatpush2.bf16.msra.mxu0 0
    %1009 = vmatprep.subr.bf16.mxu0 0
    %1010 = vmatpush2.bf16.msra.mxu0 0
    %1011 = vmatprep.subr.bf16.mxu0 0
    %1012 = vmatpush2.bf16.msra.mxu0 0
    %1013 = vmatprep.subr.bf16.mxu0 0
    %1014 = vmatpush2.bf16.msra.mxu0 0
    %1015 = vmatprep.subr.bf16.mxu0 0
    %1016 = vmatpush2.bf16.msra.mxu0 0
    %1017 = vmatprep.subr.bf16.mxu0 0
    %1018 = vmatpush2.bf16.msra.mxu0 0
    %1019 = vmatprep.mubr.bf16.mxu0 0
    %1020 = vmatmul.mubr.bf16.gmra.mxu0 %v985
    %v1021 = vpop.f32.mrf.mxu0
    %v1022 = vadd.f32 0.0, %v1021
    %v1023 = vpop.f32.mrf.mxu0
    %v1024 = vpop.f32.mrf.mxu0
    %v1025 = vpop.f32.mrf.mxu0
    %1026 = vdwg.mxu0
    %v1027 = vadd.f32 %v974, %v1022
    %1028 = vmatprep.subr.bf16.mxu0 0
    %1029 = vmatpush1.bf16.msra.mxu0 0
    %1030 = vmatprep.subr.bf16.mxu0 0
    %1031 = vmatpush1.bf16.msra.mxu0 0
    %1032 = vmatprep.subr.bf16.mxu0 0
    %1033 = vmatpush1.bf16.msra.mxu0 0
    %1034 = vmatprep.subr.bf16.mxu0 0
    %1035 = vmatpush1.bf16.msra.mxu0 0
    %1036 = vmatprep.subr.bf16.mxu0 0
    %1037 = vmatpush1.bf16.msra.mxu0 0
    %1038 = vmatprep.subr.bf16.mxu0 0
    %1039 = vmatpush1.bf16.msra.mxu0 0
    %1040 = vmatprep.subr.bf16.mxu0 0
    %1041 = vmatpush1.bf16.msra.mxu0 %v603
    %1042 = vmatprep.subr.bf16.mxu0 0
    %1043 = vmatpush1.bf16.msra.mxu0 %v602
    %1044 = vmatprep.subr.bf16.mxu0 0
    %1045 = vmatpush2.bf16.msra.mxu0 0
    %1046 = vmatprep.subr.bf16.mxu0 0
    %1047 = vmatpush2.bf16.msra.mxu0 0
    %1048 = vmatprep.subr.bf16.mxu0 0
    %1049 = vmatpush2.bf16.msra.mxu0 0
    %1050 = vmatprep.subr.bf16.mxu0 0
    %1051 = vmatpush2.bf16.msra.mxu0 0
    %1052 = vmatprep.subr.bf16.mxu0 0
    %1053 = vmatpush2.bf16.msra.mxu0 0
    %1054 = vmatprep.subr.bf16.mxu0 0
    %1055 = vmatpush2.bf16.msra.mxu0 0
    %1056 = vmatprep.subr.bf16.mxu0 0
    %1057 = vmatpush2.bf16.msra.mxu0 0
    %1058 = vmatprep.subr.bf16.mxu0 0
    %1059 = vmatpush2.bf16.msra.mxu0 0
    %1060 = vmatprep.mubr.bf16.mxu0 0
    %1061 = vmatmul.mubr.bf16.gmra.mxu0 %v703
    %v1062 = vpop.f32.mrf.mxu0
    %v1063 = vadd.f32 %v592, %v1062
    %v1064 = vpop.f32.mrf.mxu0
    %v1065 = vpop.f32.mrf.mxu0
    %v1066 = vpop.f32.mrf.mxu0
    %1067 = vdwg.mxu0
    %v1068 = vadd.f32 %v1027, %v1063
    %v1069 = vxor.u32 %v1068, 2147483648
    %v1070 = vmul.f32 %v1069, 1.442695
    %v1071 = vpow.pop %v1070
    %v1072 = vadd.f32 %v1071, 1.0
    %v1073 = vrcp.pop %v1072
    %v1074 = vmul.f32 1.0, %v1073
    %1076 = vrot.lane.b32.xlu0 %v1063, 64
    %v1077 = vpop.permute.xlu0 %1076
    %v1079 = vmul.f32 %v1074, %v1077
    %1081 = vrot.lane.b32.xlu0 %v1079, 64
    %v1082 = vpop.permute.xlu0 %1081
    %v1084 = vadd.f32 %v1027, %v1082
    %v1085 = vtanh.pop %v1084
    %v1086 = vsub.f32 1.0, %v1074
    %1088 = vrot.lane.b32.xlu0 %v1085, 96
    %v1089 = vpop.permute.xlu0 %1088
    %v1091 = vmul.f32 %v1086, %v1089
    %v1092 = vmul.f32 %v1074, %v675
    %v1093 = vadd.f32 %v1091, %v1092
    %1095 = vrot.lane.b32.xlu0 %v1093, 96
    %v1096 = vpop.permute.xlu0 %1095
    %s1098 = scalar_lea.vmem [#allocation18], 2
    %1099 = vst.msk [vmem:[%s1098] sm:$0x3] %vm680, %v1096
    %v1102 = vrot.slane %v968, 7
    %v1103 = vsel %vm334, %v1102, %v915
    %1104 = vrot.lane.b32.xlu0 %v1103, 32
    %v1105 = vpop.permute.xlu0 %1104
    %1107 = vst.msk [vmem:[%s1098] sm:$0x3] %vm689, %v1105
    %s1108 = scalar_lea.vmem [#allocation3], 2
    %v1109 = vld [vmem:[%s1108] sm:$0x3]
    %1111 = vrot.lane.b32.xlu0 %v1109, 96
    %v1112 = vpop.permute.xlu0 %1111
    %1114 = vst.msk [vmem:[%s1098] sm:$0x3] %vm696, %v1112
    %v1115 = vpack.c.bf16 %v1093, %v1093
    %1117 = vrot.lane.b32.xlu0 %v1115, 96
    %v1118 = vpop.permute.xlu0 %1117
    %v1120 = vsel %vm202, %v1118, 0
    %1122 = vmatprep.subr.bf16.mxu0 0
    %1123 = vmatpush1.bf16.msra.mxu0 0
    %1124 = vmatprep.subr.bf16.mxu0 0
    %1125 = vmatpush1.bf16.msra.mxu0 0
    %1126 = vmatprep.subr.bf16.mxu0 0
    %1127 = vmatpush1.bf16.msra.mxu0 0
    %1128 = vmatprep.subr.bf16.mxu0 0
    %1129 = vmatpush1.bf16.msra.mxu0 0
    %1130 = vmatprep.subr.bf16.mxu0 0
    %1131 = vmatpush1.bf16.msra.mxu0 0
    %1132 = vmatprep.subr.bf16.mxu0 0
    %1133 = vmatpush1.bf16.msra.mxu0 0
    %1134 = vmatprep.subr.bf16.mxu0 0
    %1135 = vmatpush1.bf16.msra.mxu0 %v199
    %1136 = vmatprep.subr.bf16.mxu0 0
    %1137 = vmatpush1.bf16.msra.mxu0 %v198
    %1138 = vmatprep.subr.bf16.mxu0 0
    %1139 = vmatpush2.bf16.msra.mxu0 0
    %1140 = vmatprep.subr.bf16.mxu0 0
    %1141 = vmatpush2.bf16.msra.mxu0 0
    %1142 = vmatprep.subr.bf16.mxu0 0
    %1143 = vmatpush2.bf16.msra.mxu0 0
    %1144 = vmatprep.subr.bf16.mxu0 0
    %1145 = vmatpush2.bf16.msra.mxu0 0
    %1146 = vmatprep.subr.bf16.mxu0 0
    %1147 = vmatpush2.bf16.msra.mxu0 0
    %1148 = vmatprep.subr.bf16.mxu0 0
    %1149 = vmatpush2.bf16.msra.mxu0 0
    %1150 = vmatprep.subr.bf16.mxu0 0
    %1151 = vmatpush2.bf16.msra.mxu0 0
    %1152 = vmatprep.subr.bf16.mxu0 0
    %1153 = vmatpush2.bf16.msra.mxu0 0
    %1154 = vmatprep.mubr.bf16.mxu0 0
    %1155 = vmatmul.mubr.bf16.gmra.mxu0 %v1120
    %v1156 = vpop.f32.mrf.mxu0
    %v1157 = vadd.f32 0.0, %v1156
    %v1158 = vpop.f32.mrf.mxu0
    %v1159 = vpop.f32.mrf.mxu0
    %v1160 = vpop.f32.mrf.mxu0
    %1161 = vdwg.mxu0
    %v1164 = vunpack.c.l.s4 1966171168
    %v1165 = vunpack.c.0.s8 %v1164
    %v1166 = vlaneseq
    %v1167 = vshrl.u32 %v1166, 7
    %v1168 = vsub.s32 %v1165, %v1167
    %v1169 = vrot.slane %v1157, %v1168
    %v1170 = vcombine.high %v1169, %v1169
    %v1172 = vunpack.c.l.s4 1966171168
    %v1173 = vunpack.c.0.s8 %v1172
    %v1174 = vlaneseq
    %v1175 = vshrl.u32 %v1174, 7
    %v1176 = vsub.s32 %v1173, %v1175
    %v1177 = vrot.slane %v1169, %v1176
    %v1179 = vunpack.c.l.s4 1966171168
    %v1180 = vunpack.c.0.s8 %v1179
    %v1181 = vlaneseq
    %v1182 = vshrl.u32 %v1181, 7
    %v1183 = vsub.s32 %v1180, %v1182
    %v1184 = vrot.slane %v1170, %v1183
    %v1185 = vlaneseq
    %v1186 = vshrl.u32 %v1185, 7
    %v1187 = vsub.s32 0, %v1186
    %v1188 = vrot.slane %v1177, %v1187
    %v1189 = vlaneseq
    %v1190 = vshrl.u32 %v1189, 7
    %v1191 = vsub.s32 0, %v1190
    %v1192 = vrot.slane %v1184, %v1191
    %v1195 = vadd.f32 %v1188, %v167
    %v1196 = vadd.f32 %v1192, %v168
    %v1197 = vtanh.pop %v1195
    %v1198 = vtanh.pop %v1196
    %v1199 = vmul.f32 %v1197, %v287
    %v1200 = vmul.f32 %v1198, %v287
    %v1201 = vsel %vm202, %v1199, 0.0
    %1202 = vadd.xlane.f32.xlu0 %v1201
    %v1203 = vpop.xlane.xlu0 %1202
    %v1204 = vsel %vm202, %v1200, 0.0
    %1205 = vadd.xlane.f32.xlu0 %v1204
    %v1206 = vpop.xlane.xlu0 %1205
    %v1207 = vadd.f32 %v1203, %v304
    %v1208 = vadd.f32 %v1206, %v311
    %1211 = vset.pattern.permute.xlu0 0
    %1212 = vperm.xlu0 %1211, %v1207
    %v1213 = vpop.permute.xlu0 %1212
    %1214 = vset.pattern.permute.xlu0 0
    %1215 = vperm.xlu0 %1214, %v1208
    %v1216 = vpop.permute.xlu0 %1215
    %v1217 = vlaneseq
    %v1218 = vshrl.u32 %v1217, 7
    %v1219 = vsub.s32 %v325, %v1218
    %v1220 = vrot.slane %v1213, %v1219
    %v1221 = vlaneseq
    %v1222 = vshrl.u32 %v1221, 7
    %v1223 = vsub.s32 %v325, %v1222
    %v1224 = vrot.slane %v1216, %v1223
    %v1225 = vsel %vm334, %v1224, %v1220
    %v1227 = vsel %vm337, %v1225, -inf
    %1228 = vmax.xlane.f32.xlu0 %v1227
    %v1229 = vpop.xlane.xlu0 %1228
    %v1231 = vlaneseq
    %v1232 = vshrl.u32 %v1231, 7
    %v1233 = vsub.s32 0, %v1232
    %v1234 = vrot.slane %v1229, %v1233
    %v1235 = vlaneseq
    %v1236 = vshrl.u32 %v1235, 7
    %v1237 = vsub.s32 1, %v1236
    %v1238 = vrot.slane %v1229, %v1237
    %v1241 = vsub.f32 %v1207, %v1234
    %v1242 = vsub.f32 %v1208, %v1238
    %v1243 = vmul.f32 %v1241, 1.442695
    %v1244 = vpow.pop %v1243
    %v1245 = vmul.f32 %v1242, 1.442695
    %v1246 = vpow.pop %v1245
    %1249 = vset.pattern.permute.xlu0 0
    %1250 = vperm.xlu0 %1249, %v1244
    %v1251 = vpop.permute.xlu0 %1250
    %1252 = vset.pattern.permute.xlu0 0
    %1253 = vperm.xlu0 %1252, %v1246
    %v1254 = vpop.permute.xlu0 %1253
    %v1255 = vlaneseq
    %v1256 = vshrl.u32 %v1255, 7
    %v1257 = vsub.s32 %v325, %v1256
    %v1258 = vrot.slane %v1251, %v1257
    %v1259 = vlaneseq
    %v1260 = vshrl.u32 %v1259, 7
    %v1261 = vsub.s32 %v325, %v1260
    %v1262 = vrot.slane %v1254, %v1261
    %v1263 = vsel %vm334, %v1262, %v1258
    %v1265 = vsel %vm337, %v1263, 0.0
    %1266 = vadd.xlane.f32.xlu0 %v1265
    %v1267 = vpop.xlane.xlu0 %1266
    %v1268 = vrcp.pop %v1267
    %v1270 = vlaneseq
    %v1271 = vshrl.u32 %v1270, 7
    %v1272 = vsub.s32 0, %v1271
    %v1273 = vrot.slane %v1268, %v1272
    %v1274 = vlaneseq
    %v1275 = vshrl.u32 %v1274, 7
    %v1276 = vsub.s32 1, %v1275
    %v1277 = vrot.slane %v1268, %v1276
    %v1280 = vmul.f32 %v1244, %v1273
    %v1281 = vmul.f32 %v1246, %v1277
    %v1282 = vpack.c.bf16 %v1280, %v1280
    %v1283 = vpack.c.bf16 %v1281, %v1281
    %v1285 = vunpack.c.l.b16 %v1282
    %1286 = vset.pattern.permute.xlu0 0
    %1287 = vperm.xlu0 %1286, %v1285
    %v1288 = vpop.permute.xlu0 %1287
    %v1289 = vlaneseq
    %v1290 = vshrl.u32 %v1289, 7
    %v1291 = vsub.s32 %v325, %v1290
    %v1292 = vrot.slane %v1288, %v1291
    %v1293 = vpack.c.b16 %v1292, %v1292
    %v1295 = vsel %vm405, %v1293, 0
    %1297 = vmatprep.subr.bf16.mxu0 0
    %1298 = vmatpush1.bf16.msra.mxu0 0
    %1299 = vmatprep.subr.bf16.mxu0 0
    %1300 = vmatpush1.bf16.msra.mxu0 0
    %1301 = vmatprep.subr.bf16.mxu0 0
    %1302 = vmatpush1.bf16.msra.mxu0 0
    %1303 = vmatprep.subr.bf16.mxu0 0
    %1304 = vmatpush1.bf16.msra.mxu0 0
    %1305 = vmatprep.subr.bf16.mxu0 0
    %1306 = vmatpush1.bf16.msra.mxu0 0
    %1307 = vmatprep.subr.bf16.mxu0 0
    %1308 = vmatpush1.bf16.msra.mxu0 0
    %1309 = vmatprep.subr.bf16.mxu0 0
    %1310 = vmatpush1.bf16.msra.mxu0 0
    %1311 = vmatprep.subr.bf16.mxu0 0
    %1312 = vmatpush1.bf16.msra.mxu0 %v411
    %1313 = vmatprep.subr.bf16.mxu0 0
    %1314 = vmatpush2.bf16.msra.mxu0 0
    %1315 = vmatprep.subr.bf16.mxu0 0
    %1316 = vmatpush2.bf16.msra.mxu0 0
    %1317 = vmatprep.subr.bf16.mxu0 0
    %1318 = vmatpush2.bf16.msra.mxu0 0
    %1319 = vmatprep.subr.bf16.mxu0 0
    %1320 = vmatpush2.bf16.msra.mxu0 0
    %1321 = vmatprep.subr.bf16.mxu0 0
    %1322 = vmatpush2.bf16.msra.mxu0 0
    %1323 = vmatprep.subr.bf16.mxu0 0
    %1324 = vmatpush2.bf16.msra.mxu0 0
    %1325 = vmatprep.subr.bf16.mxu0 0
    %1326 = vmatpush2.bf16.msra.mxu0 0
    %1327 = vmatprep.subr.bf16.mxu0 0
    %1328 = vmatpush2.bf16.msra.mxu0 0
    %1329 = vmatprep.mubr.bf16.mxu0 0
    %1330 = vmatmul.mubr.bf16.gmra.mxu0 %v1295
    %v1331 = vpop.f32.mrf.mxu0
    %v1332 = vadd.f32 0.0, %v1331
    %v1333 = vpop.f32.mrf.mxu0
    %v1334 = vpop.f32.mrf.mxu0
    %v1335 = vpop.f32.mrf.mxu0
    %1336 = vdwg.mxu0
    %v1338 = vunpack.c.l.b16 %v1283
    %1339 = vset.pattern.permute.xlu0 0
    %1340 = vperm.xlu0 %1339, %v1338
    %v1341 = vpop.permute.xlu0 %1340
    %v1342 = vlaneseq
    %v1343 = vshrl.u32 %v1342, 7
    %v1344 = vsub.s32 %v325, %v1343
    %v1345 = vrot.slane %v1341, %v1344
    %v1346 = vpack.c.b16 %v1345, %v1345
    %v1348 = vsel %vm405, %v1346, 0
    %1350 = vmatprep.subr.bf16.mxu0 0
    %1351 = vmatpush1.bf16.msra.mxu0 0
    %1352 = vmatprep.subr.bf16.mxu0 0
    %1353 = vmatpush1.bf16.msra.mxu0 0
    %1354 = vmatprep.subr.bf16.mxu0 0
    %1355 = vmatpush1.bf16.msra.mxu0 0
    %1356 = vmatprep.subr.bf16.mxu0 0
    %1357 = vmatpush1.bf16.msra.mxu0 0
    %1358 = vmatprep.subr.bf16.mxu0 0
    %1359 = vmatpush1.bf16.msra.mxu0 0
    %1360 = vmatprep.subr.bf16.mxu0 0
    %1361 = vmatpush1.bf16.msra.mxu0 0
    %1362 = vmatprep.subr.bf16.mxu0 0
    %1363 = vmatpush1.bf16.msra.mxu0 0
    %1364 = vmatprep.subr.bf16.mxu0 0
    %1365 = vmatpush1.bf16.msra.mxu0 %v467
    %1366 = vmatprep.subr.bf16.mxu0 0
    %1367 = vmatpush2.bf16.msra.mxu0 0
    %1368 = vmatprep.subr.bf16.mxu0 0
    %1369 = vmatpush2.bf16.msra.mxu0 0
    %1370 = vmatprep.subr.bf16.mxu0 0
    %1371 = vmatpush2.bf16.msra.mxu0 0
    %1372 = vmatprep.subr.bf16.mxu0 0
    %1373 = vmatpush2.bf16.msra.mxu0 0
    %1374 = vmatprep.subr.bf16.mxu0 0
    %1375 = vmatpush2.bf16.msra.mxu0 0
    %1376 = vmatprep.subr.bf16.mxu0 0
    %1377 = vmatpush2.bf16.msra.mxu0 0
    %1378 = vmatprep.subr.bf16.mxu0 0
    %1379 = vmatpush2.bf16.msra.mxu0 0
    %1380 = vmatprep.subr.bf16.mxu0 0
    %1381 = vmatpush2.bf16.msra.mxu0 0
    %1382 = vmatprep.mubr.bf16.mxu0 0
    %1383 = vmatmul.mubr.bf16.gmra.mxu0 %v1348
    %v1384 = vpop.f32.mrf.mxu0
    %v1385 = vadd.f32 0.0, %v1384
    %v1386 = vpop.f32.mrf.mxu0
    %v1387 = vpop.f32.mrf.mxu0
    %v1388 = vpop.f32.mrf.mxu0
    %1389 = vdwg.mxu0
    %s1390 = scalar_lea.vmem [#allocation6], 4
    %v1391 = vld [vmem:[%s1390] sm:$0x3]
    %v1392 = vpack.c.bf16 %v1332, %v1332
    %v1393 = vpack.c.bf16 %v1385, %v1385
    %v1396 = vunpack.c.l.b16 %v1392
    %v1397 = vunpack.c.l.b16 %v1393
    %v1398 = vrot.slane %v1397, 7
    %v1399 = vsel %vm334, %v1398, %v1396
    %v1400 = vpack.c.b16 %v1399, %v1399
    %v1402 = vsel %vm543, %v1400, 0
    %1404 = vmatprep.subr.bf16.mxu0 0
    %1405 = vmatpush1.bf16.msra.mxu0 0
    %1406 = vmatprep.subr.bf16.mxu0 0
    %1407 = vmatpush1.bf16.msra.mxu0 0
    %1408 = vmatprep.subr.bf16.mxu0 0
    %1409 = vmatpush1.bf16.msra.mxu0 0
    %1410 = vmatprep.subr.bf16.mxu0 0
    %1411 = vmatpush1.bf16.msra.mxu0 0
    %1412 = vmatprep.subr.bf16.mxu0 0
    %1413 = vmatpush1.bf16.msra.mxu0 %v538
    %1414 = vmatprep.subr.bf16.mxu0 0
    %1415 = vmatpush1.bf16.msra.mxu0 %v537
    %1416 = vmatprep.subr.bf16.mxu0 0
    %1417 = vmatpush1.bf16.msra.mxu0 %v536
    %1418 = vmatprep.subr.bf16.mxu0 0
    %1419 = vmatpush1.bf16.msra.mxu0 %v535
    %1420 = vmatprep.subr.bf16.mxu0 0
    %1421 = vmatpush2.bf16.msra.mxu0 0
    %1422 = vmatprep.subr.bf16.mxu0 0
    %1423 = vmatpush2.bf16.msra.mxu0 0
    %1424 = vmatprep.subr.bf16.mxu0 0
    %1425 = vmatpush2.bf16.msra.mxu0 0
    %1426 = vmatprep.subr.bf16.mxu0 0
    %1427 = vmatpush2.bf16.msra.mxu0 0
    %1428 = vmatprep.subr.bf16.mxu0 0
    %1429 = vmatpush2.bf16.msra.mxu0 0
    %1430 = vmatprep.subr.bf16.mxu0 0
    %1431 = vmatpush2.bf16.msra.mxu0 0
    %1432 = vmatprep.subr.bf16.mxu0 0
    %1433 = vmatpush2.bf16.msra.mxu0 0
    %1434 = vmatprep.subr.bf16.mxu0 0
    %1435 = vmatpush2.bf16.msra.mxu0 0
    %1436 = vmatprep.mubr.bf16.mxu0 0
    %1437 = vmatmul.mubr.bf16.gmra.mxu0 %v1402
    %v1438 = vpop.f32.mrf.mxu0
    %v1439 = vadd.f32 0.0, %v1438
    %v1440 = vpop.f32.mrf.mxu0
    %v1441 = vpop.f32.mrf.mxu0
    %v1442 = vpop.f32.mrf.mxu0
    %1443 = vdwg.mxu0
    %v1444 = vadd.f32 %v1391, %v1439
    %1445 = vmatprep.subr.bf16.mxu0 0
    %1446 = vmatpush1.bf16.msra.mxu0 0
    %1447 = vmatprep.subr.bf16.mxu0 0
    %1448 = vmatpush1.bf16.msra.mxu0 0
    %1449 = vmatprep.subr.bf16.mxu0 0
    %1450 = vmatpush1.bf16.msra.mxu0 0
    %1451 = vmatprep.subr.bf16.mxu0 0
    %1452 = vmatpush1.bf16.msra.mxu0 0
    %1453 = vmatprep.subr.bf16.mxu0 0
    %1454 = vmatpush1.bf16.msra.mxu0 0
    %1455 = vmatprep.subr.bf16.mxu0 0
    %1456 = vmatpush1.bf16.msra.mxu0 0
    %1457 = vmatprep.subr.bf16.mxu0 0
    %1458 = vmatpush1.bf16.msra.mxu0 %v603
    %1459 = vmatprep.subr.bf16.mxu0 0
    %1460 = vmatpush1.bf16.msra.mxu0 %v602
    %1461 = vmatprep.subr.bf16.mxu0 0
    %1462 = vmatpush2.bf16.msra.mxu0 0
    %1463 = vmatprep.subr.bf16.mxu0 0
    %1464 = vmatpush2.bf16.msra.mxu0 0
    %1465 = vmatprep.subr.bf16.mxu0 0
    %1466 = vmatpush2.bf16.msra.mxu0 0
    %1467 = vmatprep.subr.bf16.mxu0 0
    %1468 = vmatpush2.bf16.msra.mxu0 0
    %1469 = vmatprep.subr.bf16.mxu0 0
    %1470 = vmatpush2.bf16.msra.mxu0 0
    %1471 = vmatprep.subr.bf16.mxu0 0
    %1472 = vmatpush2.bf16.msra.mxu0 0
    %1473 = vmatprep.subr.bf16.mxu0 0
    %1474 = vmatpush2.bf16.msra.mxu0 0
    %1475 = vmatprep.subr.bf16.mxu0 0
    %1476 = vmatpush2.bf16.msra.mxu0 0
    %1477 = vmatprep.mubr.bf16.mxu0 0
    %1478 = vmatmul.mubr.bf16.gmra.mxu0 %v1120
    %v1479 = vpop.f32.mrf.mxu0
    %v1480 = vadd.f32 %v592, %v1479
    %v1481 = vpop.f32.mrf.mxu0
    %v1482 = vpop.f32.mrf.mxu0
    %v1483 = vpop.f32.mrf.mxu0
    %1484 = vdwg.mxu0
    %v1485 = vadd.f32 %v1444, %v1480
    %v1486 = vxor.u32 %v1485, 2147483648
    %v1487 = vmul.f32 %v1486, 1.442695
    %v1488 = vpow.pop %v1487
    %v1489 = vadd.f32 %v1488, 1.0
    %v1490 = vrcp.pop %v1489
    %v1491 = vmul.f32 1.0, %v1490
    %1493 = vrot.lane.b32.xlu0 %v1480, 64
    %v1494 = vpop.permute.xlu0 %1493
    %v1496 = vmul.f32 %v1491, %v1494
    %1498 = vrot.lane.b32.xlu0 %v1496, 64
    %v1499 = vpop.permute.xlu0 %1498
    %v1501 = vadd.f32 %v1444, %v1499
    %v1502 = vtanh.pop %v1501
    %v1503 = vsub.f32 1.0, %v1491
    %1505 = vrot.lane.b32.xlu0 %v1502, 96
    %v1506 = vpop.permute.xlu0 %1505
    %v1508 = vmul.f32 %v1503, %v1506
    %v1509 = vmul.f32 %v1491, %v1093
    %v1510 = vadd.f32 %v1508, %v1509
    %1512 = vrot.lane.b32.xlu0 %v1510, 96
    %v1513 = vpop.permute.xlu0 %1512
    %s1515 = scalar_lea.vmem [#allocation18], 4
    %1516 = vst.msk [vmem:[%s1515] sm:$0x3] %vm680, %v1513
    %v1519 = vrot.slane %v1385, 7
    %v1520 = vsel %vm334, %v1519, %v1332
    %1521 = vrot.lane.b32.xlu0 %v1520, 32
    %v1522 = vpop.permute.xlu0 %1521
    %1524 = vst.msk [vmem:[%s1515] sm:$0x3] %vm689, %v1522
    %s1525 = scalar_lea.vmem [#allocation3], 4
    %v1526 = vld [vmem:[%s1525] sm:$0x3]
    %1528 = vrot.lane.b32.xlu0 %v1526, 96
    %v1529 = vpop.permute.xlu0 %1528
    %1531 = vst.msk [vmem:[%s1515] sm:$0x3] %vm696, %v1529
    %v1532 = vpack.c.bf16 %v1510, %v1510
    %1534 = vrot.lane.b32.xlu0 %v1532, 96
    %v1535 = vpop.permute.xlu0 %1534
    %v1537 = vsel %vm202, %v1535, 0
    %1539 = vmatprep.subr.bf16.mxu0 0
    %1540 = vmatpush1.bf16.msra.mxu0 0
    %1541 = vmatprep.subr.bf16.mxu0 0
    %1542 = vmatpush1.bf16.msra.mxu0 0
    %1543 = vmatprep.subr.bf16.mxu0 0
    %1544 = vmatpush1.bf16.msra.mxu0 0
    %1545 = vmatprep.subr.bf16.mxu0 0
    %1546 = vmatpush1.bf16.msra.mxu0 0
    %1547 = vmatprep.subr.bf16.mxu0 0
    %1548 = vmatpush1.bf16.msra.mxu0 0
    %1549 = vmatprep.subr.bf16.mxu0 0
    %1550 = vmatpush1.bf16.msra.mxu0 0
    %1551 = vmatprep.subr.bf16.mxu0 0
    %1552 = vmatpush1.bf16.msra.mxu0 %v199
    %1553 = vmatprep.subr.bf16.mxu0 0
    %1554 = vmatpush1.bf16.msra.mxu0 %v198
    %1555 = vmatprep.subr.bf16.mxu0 0
    %1556 = vmatpush2.bf16.msra.mxu0 0
    %1557 = vmatprep.subr.bf16.mxu0 0
    %1558 = vmatpush2.bf16.msra.mxu0 0
    %1559 = vmatprep.subr.bf16.mxu0 0
    %1560 = vmatpush2.bf16.msra.mxu0 0
    %1561 = vmatprep.subr.bf16.mxu0 0
    %1562 = vmatpush2.bf16.msra.mxu0 0
    %1563 = vmatprep.subr.bf16.mxu0 0
    %1564 = vmatpush2.bf16.msra.mxu0 0
    %1565 = vmatprep.subr.bf16.mxu0 0
    %1566 = vmatpush2.bf16.msra.mxu0 0
    %1567 = vmatprep.subr.bf16.mxu0 0
    %1568 = vmatpush2.bf16.msra.mxu0 0
    %1569 = vmatprep.subr.bf16.mxu0 0
    %1570 = vmatpush2.bf16.msra.mxu0 0
    %1571 = vmatprep.mubr.bf16.mxu0 0
    %1572 = vmatmul.mubr.bf16.gmra.mxu0 %v1537
    %v1573 = vpop.f32.mrf.mxu0
    %v1574 = vadd.f32 0.0, %v1573
    %v1575 = vpop.f32.mrf.mxu0
    %v1576 = vpop.f32.mrf.mxu0
    %v1577 = vpop.f32.mrf.mxu0
    %1578 = vdwg.mxu0
    %v1581 = vunpack.c.l.s4 1966171168
    %v1582 = vunpack.c.0.s8 %v1581
    %v1583 = vlaneseq
    %v1584 = vshrl.u32 %v1583, 7
    %v1585 = vsub.s32 %v1582, %v1584
    %v1586 = vrot.slane %v1574, %v1585
    %v1587 = vcombine.high %v1586, %v1586
    %v1589 = vunpack.c.l.s4 1966171168
    %v1590 = vunpack.c.0.s8 %v1589
    %v1591 = vlaneseq
    %v1592 = vshrl.u32 %v1591, 7
    %v1593 = vsub.s32 %v1590, %v1592
    %v1594 = vrot.slane %v1586, %v1593
    %v1596 = vunpack.c.l.s4 1966171168
    %v1597 = vunpack.c.0.s8 %v1596
    %v1598 = vlaneseq
    %v1599 = vshrl.u32 %v1598, 7
    %v1600 = vsub.s32 %v1597, %v1599
    %v1601 = vrot.slane %v1587, %v1600
    %v1602 = vlaneseq
    %v1603 = vshrl.u32 %v1602, 7
    %v1604 = vsub.s32 0, %v1603
    %v1605 = vrot.slane %v1594, %v1604
    %v1606 = vlaneseq
    %v1607 = vshrl.u32 %v1606, 7
    %v1608 = vsub.s32 0, %v1607
    %v1609 = vrot.slane %v1601, %v1608
    %v1612 = vadd.f32 %v1605, %v167
    %v1613 = vadd.f32 %v1609, %v168
    %v1614 = vtanh.pop %v1612
    %v1615 = vtanh.pop %v1613
    %v1616 = vmul.f32 %v1614, %v287
    %v1617 = vmul.f32 %v1615, %v287
    %v1618 = vsel %vm202, %v1616, 0.0
    %1619 = vadd.xlane.f32.xlu0 %v1618
    %v1620 = vpop.xlane.xlu0 %1619
    %v1621 = vsel %vm202, %v1617, 0.0
    %1622 = vadd.xlane.f32.xlu0 %v1621
    %v1623 = vpop.xlane.xlu0 %1622
    %v1624 = vadd.f32 %v1620, %v304
    %v1625 = vadd.f32 %v1623, %v311
    %1628 = vset.pattern.permute.xlu0 0
    %1629 = vperm.xlu0 %1628, %v1624
    %v1630 = vpop.permute.xlu0 %1629
    %1631 = vset.pattern.permute.xlu0 0
    %1632 = vperm.xlu0 %1631, %v1625
    %v1633 = vpop.permute.xlu0 %1632
    %v1634 = vlaneseq
    %v1635 = vshrl.u32 %v1634, 7
    %v1636 = vsub.s32 %v325, %v1635
    %v1637 = vrot.slane %v1630, %v1636
    %v1638 = vlaneseq
    %v1639 = vshrl.u32 %v1638, 7
    %v1640 = vsub.s32 %v325, %v1639
    %v1641 = vrot.slane %v1633, %v1640
    %v1642 = vsel %vm334, %v1641, %v1637
    %v1644 = vsel %vm337, %v1642, -inf
    %1645 = vmax.xlane.f32.xlu0 %v1644
    %v1646 = vpop.xlane.xlu0 %1645
    %v1648 = vlaneseq
    %v1649 = vshrl.u32 %v1648, 7
    %v1650 = vsub.s32 0, %v1649
    %v1651 = vrot.slane %v1646, %v1650
    %v1652 = vlaneseq
    %v1653 = vshrl.u32 %v1652, 7
    %v1654 = vsub.s32 1, %v1653
    %v1655 = vrot.slane %v1646, %v1654
    %v1658 = vsub.f32 %v1624, %v1651
    %v1659 = vsub.f32 %v1625, %v1655
    %v1660 = vmul.f32 %v1658, 1.442695
    %v1661 = vpow.pop %v1660
    %v1662 = vmul.f32 %v1659, 1.442695
    %v1663 = vpow.pop %v1662
    %1666 = vset.pattern.permute.xlu0 0
    %1667 = vperm.xlu0 %1666, %v1661
    %v1668 = vpop.permute.xlu0 %1667
    %1669 = vset.pattern.permute.xlu0 0
    %1670 = vperm.xlu0 %1669, %v1663
    %v1671 = vpop.permute.xlu0 %1670
    %v1672 = vlaneseq
    %v1673 = vshrl.u32 %v1672, 7
    %v1674 = vsub.s32 %v325, %v1673
    %v1675 = vrot.slane %v1668, %v1674
    %v1676 = vlaneseq
    %v1677 = vshrl.u32 %v1676, 7
    %v1678 = vsub.s32 %v325, %v1677
    %v1679 = vrot.slane %v1671, %v1678
    %v1680 = vsel %vm334, %v1679, %v1675
    %v1682 = vsel %vm337, %v1680, 0.0
    %1683 = vadd.xlane.f32.xlu0 %v1682
    %v1684 = vpop.xlane.xlu0 %1683
    %v1685 = vrcp.pop %v1684
    %v1687 = vlaneseq
    %v1688 = vshrl.u32 %v1687, 7
    %v1689 = vsub.s32 0, %v1688
    %v1690 = vrot.slane %v1685, %v1689
    %v1691 = vlaneseq
    %v1692 = vshrl.u32 %v1691, 7
    %v1693 = vsub.s32 1, %v1692
    %v1694 = vrot.slane %v1685, %v1693
    %v1697 = vmul.f32 %v1661, %v1690
    %v1698 = vmul.f32 %v1663, %v1694
    %v1699 = vpack.c.bf16 %v1697, %v1697
    %v1700 = vpack.c.bf16 %v1698, %v1698
    %v1702 = vunpack.c.l.b16 %v1699
    %1703 = vset.pattern.permute.xlu0 0
    %1704 = vperm.xlu0 %1703, %v1702
    %v1705 = vpop.permute.xlu0 %1704
    %v1706 = vlaneseq
    %v1707 = vshrl.u32 %v1706, 7
    %v1708 = vsub.s32 %v325, %v1707
    %v1709 = vrot.slane %v1705, %v1708
    %v1710 = vpack.c.b16 %v1709, %v1709
    %v1712 = vsel %vm405, %v1710, 0
    %1714 = vmatprep.subr.bf16.mxu0 0
    %1715 = vmatpush1.bf16.msra.mxu0 0
    %1716 = vmatprep.subr.bf16.mxu0 0
    %1717 = vmatpush1.bf16.msra.mxu0 0
    %1718 = vmatprep.subr.bf16.mxu0 0
    %1719 = vmatpush1.bf16.msra.mxu0 0
    %1720 = vmatprep.subr.bf16.mxu0 0
    %1721 = vmatpush1.bf16.msra.mxu0 0
    %1722 = vmatprep.subr.bf16.mxu0 0
    %1723 = vmatpush1.bf16.msra.mxu0 0
    %1724 = vmatprep.subr.bf16.mxu0 0
    %1725 = vmatpush1.bf16.msra.mxu0 0
    %1726 = vmatprep.subr.bf16.mxu0 0
    %1727 = vmatpush1.bf16.msra.mxu0 0
    %1728 = vmatprep.subr.bf16.mxu0 0
    %1729 = vmatpush1.bf16.msra.mxu0 %v411
    %1730 = vmatprep.subr.bf16.mxu0 0
    %1731 = vmatpush2.bf16.msra.mxu0 0
    %1732 = vmatprep.subr.bf16.mxu0 0
    %1733 = vmatpush2.bf16.msra.mxu0 0
    %1734 = vmatprep.subr.bf16.mxu0 0
    %1735 = vmatpush2.bf16.msra.mxu0 0
    %1736 = vmatprep.subr.bf16.mxu0 0
    %1737 = vmatpush2.bf16.msra.mxu0 0
    %1738 = vmatprep.subr.bf16.mxu0 0
    %1739 = vmatpush2.bf16.msra.mxu0 0
    %1740 = vmatprep.subr.bf16.mxu0 0
    %1741 = vmatpush2.bf16.msra.mxu0 0
    %1742 = vmatprep.subr.bf16.mxu0 0
    %1743 = vmatpush2.bf16.msra.mxu0 0
    %1744 = vmatprep.subr.bf16.mxu0 0
    %1745 = vmatpush2.bf16.msra.mxu0 0
    %1746 = vmatprep.mubr.bf16.mxu0 0
    %1747 = vmatmul.mubr.bf16.gmra.mxu0 %v1712
    %v1748 = vpop.f32.mrf.mxu0
    %v1749 = vadd.f32 0.0, %v1748
    %v1750 = vpop.f32.mrf.mxu0
    %v1751 = vpop.f32.mrf.mxu0
    %v1752 = vpop.f32.mrf.mxu0
    %1753 = vdwg.mxu0
    %v1755 = vunpack.c.l.b16 %v1700
    %1756 = vset.pattern.permute.xlu0 0
    %1757 = vperm.xlu0 %1756, %v1755
    %v1758 = vpop.permute.xlu0 %1757
    %v1759 = vlaneseq
    %v1760 = vshrl.u32 %v1759, 7
    %v1761 = vsub.s32 %v325, %v1760
    %v1762 = vrot.slane %v1758, %v1761
    %v1763 = vpack.c.b16 %v1762, %v1762
    %v1765 = vsel %vm405, %v1763, 0
    %1767 = vmatprep.subr.bf16.mxu0 0
    %1768 = vmatpush1.bf16.msra.mxu0 0
    %1769 = vmatprep.subr.bf16.mxu0 0
    %1770 = vmatpush1.bf16.msra.mxu0 0
    %1771 = vmatprep.subr.bf16.mxu0 0
    %1772 = vmatpush1.bf16.msra.mxu0 0
    %1773 = vmatprep.subr.bf16.mxu0 0
    %1774 = vmatpush1.bf16.msra.mxu0 0
    %1775 = vmatprep.subr.bf16.mxu0 0
    %1776 = vmatpush1.bf16.msra.mxu0 0
    %1777 = vmatprep.subr.bf16.mxu0 0
    %1778 = vmatpush1.bf16.msra.mxu0 0
    %1779 = vmatprep.subr.bf16.mxu0 0
    %1780 = vmatpush1.bf16.msra.mxu0 0
    %1781 = vmatprep.subr.bf16.mxu0 0
    %1782 = vmatpush1.bf16.msra.mxu0 %v467
    %1783 = vmatprep.subr.bf16.mxu0 0
    %1784 = vmatpush2.bf16.msra.mxu0 0
    %1785 = vmatprep.subr.bf16.mxu0 0
    %1786 = vmatpush2.bf16.msra.mxu0 0
    %1787 = vmatprep.subr.bf16.mxu0 0
    %1788 = vmatpush2.bf16.msra.mxu0 0
    %1789 = vmatprep.subr.bf16.mxu0 0
    %1790 = vmatpush2.bf16.msra.mxu0 0
    %1791 = vmatprep.subr.bf16.mxu0 0
    %1792 = vmatpush2.bf16.msra.mxu0 0
    %1793 = vmatprep.subr.bf16.mxu0 0
    %1794 = vmatpush2.bf16.msra.mxu0 0
    %1795 = vmatprep.subr.bf16.mxu0 0
    %1796 = vmatpush2.bf16.msra.mxu0 0
    %1797 = vmatprep.subr.bf16.mxu0 0
    %1798 = vmatpush2.bf16.msra.mxu0 0
    %1799 = vmatprep.mubr.bf16.mxu0 0
    %1800 = vmatmul.mubr.bf16.gmra.mxu0 %v1765
    %v1801 = vpop.f32.mrf.mxu0
    %v1802 = vadd.f32 0.0, %v1801
    %v1803 = vpop.f32.mrf.mxu0
    %v1804 = vpop.f32.mrf.mxu0
    %v1805 = vpop.f32.mrf.mxu0
    %1806 = vdwg.mxu0
    %s1807 = scalar_lea.vmem [#allocation6], 6
    %v1808 = vld [vmem:[%s1807] sm:$0x3]
    %v1809 = vpack.c.bf16 %v1749, %v1749
    %v1810 = vpack.c.bf16 %v1802, %v1802
    %v1813 = vunpack.c.l.b16 %v1809
    %v1814 = vunpack.c.l.b16 %v1810
    %v1815 = vrot.slane %v1814, 7
    %v1816 = vsel %vm334, %v1815, %v1813
    %v1817 = vpack.c.b16 %v1816, %v1816
    %v1819 = vsel %vm543, %v1817, 0
    %1821 = vmatprep.subr.bf16.mxu0 0
    %1822 = vmatpush1.bf16.msra.mxu0 0
    %1823 = vmatprep.subr.bf16.mxu0 0
    %1824 = vmatpush1.bf16.msra.mxu0 0
    %1825 = vmatprep.subr.bf16.mxu0 0
    %1826 = vmatpush1.bf16.msra.mxu0 0
    %1827 = vmatprep.subr.bf16.mxu0 0
    %1828 = vmatpush1.bf16.msra.mxu0 0
    %1829 = vmatprep.subr.bf16.mxu0 0
    %1830 = vmatpush1.bf16.msra.mxu0 %v538
    %1831 = vmatprep.subr.bf16.mxu0 0
    %1832 = vmatpush1.bf16.msra.mxu0 %v537
    %1833 = vmatprep.subr.bf16.mxu0 0
    %1834 = vmatpush1.bf16.msra.mxu0 %v536
    %1835 = vmatprep.subr.bf16.mxu0 0
    %1836 = vmatpush1.bf16.msra.mxu0 %v535
    %1837 = vmatprep.subr.bf16.mxu0 0
    %1838 = vmatpush2.bf16.msra.mxu0 0
    %1839 = vmatprep.subr.bf16.mxu0 0
    %1840 = vmatpush2.bf16.msra.mxu0 0
    %1841 = vmatprep.subr.bf16.mxu0 0
    %1842 = vmatpush2.bf16.msra.mxu0 0
    %1843 = vmatprep.subr.bf16.mxu0 0
    %1844 = vmatpush2.bf16.msra.mxu0 0
    %1845 = vmatprep.subr.bf16.mxu0 0
    %1846 = vmatpush2.bf16.msra.mxu0 0
    %1847 = vmatprep.subr.bf16.mxu0 0
    %1848 = vmatpush2.bf16.msra.mxu0 0
    %1849 = vmatprep.subr.bf16.mxu0 0
    %1850 = vmatpush2.bf16.msra.mxu0 0
    %1851 = vmatprep.subr.bf16.mxu0 0
    %1852 = vmatpush2.bf16.msra.mxu0 0
    %1853 = vmatprep.mubr.bf16.mxu0 0
    %1854 = vmatmul.mubr.bf16.gmra.mxu0 %v1819
    %v1855 = vpop.f32.mrf.mxu0
    %v1856 = vadd.f32 0.0, %v1855
    %v1857 = vpop.f32.mrf.mxu0
    %v1858 = vpop.f32.mrf.mxu0
    %v1859 = vpop.f32.mrf.mxu0
    %1860 = vdwg.mxu0
    %v1861 = vadd.f32 %v1808, %v1856
    %1862 = vmatprep.subr.bf16.mxu0 0
    %1863 = vmatpush1.bf16.msra.mxu0 0
    %1864 = vmatprep.subr.bf16.mxu0 0
    %1865 = vmatpush1.bf16.msra.mxu0 0
    %1866 = vmatprep.subr.bf16.mxu0 0
    %1867 = vmatpush1.bf16.msra.mxu0 0
    %1868 = vmatprep.subr.bf16.mxu0 0
    %1869 = vmatpush1.bf16.msra.mxu0 0
    %1870 = vmatprep.subr.bf16.mxu0 0
    %1871 = vmatpush1.bf16.msra.mxu0 0
    %1872 = vmatprep.subr.bf16.mxu0 0
    %1873 = vmatpush1.bf16.msra.mxu0 0
    %1874 = vmatprep.subr.bf16.mxu0 0
    %1875 = vmatpush1.bf16.msra.mxu0 %v603
    %1876 = vmatprep.subr.bf16.mxu0 0
    %1877 = vmatpush1.bf16.msra.mxu0 %v602
    %1878 = vmatprep.subr.bf16.mxu0 0
    %1879 = vmatpush2.bf16.msra.mxu0 0
    %1880 = vmatprep.subr.bf16.mxu0 0
    %1881 = vmatpush2.bf16.msra.mxu0 0
    %1882 = vmatprep.subr.bf16.mxu0 0
    %1883 = vmatpush2.bf16.msra.mxu0 0
    %1884 = vmatprep.subr.bf16.mxu0 0
    %1885 = vmatpush2.bf16.msra.mxu0 0
    %1886 = vmatprep.subr.bf16.mxu0 0
    %1887 = vmatpush2.bf16.msra.mxu0 0
    %1888 = vmatprep.subr.bf16.mxu0 0
    %1889 = vmatpush2.bf16.msra.mxu0 0
    %1890 = vmatprep.subr.bf16.mxu0 0
    %1891 = vmatpush2.bf16.msra.mxu0 0
    %1892 = vmatprep.subr.bf16.mxu0 0
    %1893 = vmatpush2.bf16.msra.mxu0 0
    %1894 = vmatprep.mubr.bf16.mxu0 0
    %1895 = vmatmul.mubr.bf16.gmra.mxu0 %v1537
    %v1896 = vpop.f32.mrf.mxu0
    %v1897 = vadd.f32 %v592, %v1896
    %v1898 = vpop.f32.mrf.mxu0
    %v1899 = vpop.f32.mrf.mxu0
    %v1900 = vpop.f32.mrf.mxu0
    %1901 = vdwg.mxu0
    %v1902 = vadd.f32 %v1861, %v1897
    %v1903 = vxor.u32 %v1902, 2147483648
    %v1904 = vmul.f32 %v1903, 1.442695
    %v1905 = vpow.pop %v1904
    %v1906 = vadd.f32 %v1905, 1.0
    %v1907 = vrcp.pop %v1906
    %v1908 = vmul.f32 1.0, %v1907
    %1910 = vrot.lane.b32.xlu0 %v1897, 64
    %v1911 = vpop.permute.xlu0 %1910
    %v1913 = vmul.f32 %v1908, %v1911
    %1915 = vrot.lane.b32.xlu0 %v1913, 64
    %v1916 = vpop.permute.xlu0 %1915
    %v1918 = vadd.f32 %v1861, %v1916
    %v1919 = vtanh.pop %v1918
    %v1920 = vsub.f32 1.0, %v1908
    %1922 = vrot.lane.b32.xlu0 %v1919, 96
    %v1923 = vpop.permute.xlu0 %1922
    %v1925 = vmul.f32 %v1920, %v1923
    %v1926 = vmul.f32 %v1908, %v1510
    %v1927 = vadd.f32 %v1925, %v1926
    %1929 = vrot.lane.b32.xlu0 %v1927, 96
    %v1930 = vpop.permute.xlu0 %1929
    %s1932 = scalar_lea.vmem [#allocation18], 6
    %1933 = vst.msk [vmem:[%s1932] sm:$0x3] %vm680, %v1930
    %v1936 = vrot.slane %v1802, 7
    %v1937 = vsel %vm334, %v1936, %v1749
    %1938 = vrot.lane.b32.xlu0 %v1937, 32
    %v1939 = vpop.permute.xlu0 %1938
    %1941 = vst.msk [vmem:[%s1932] sm:$0x3] %vm689, %v1939
    %s1942 = scalar_lea.vmem [#allocation3], 6
    %v1943 = vld [vmem:[%s1942] sm:$0x3]
    %1945 = vrot.lane.b32.xlu0 %v1943, 96
    %v1946 = vpop.permute.xlu0 %1945
    %1948 = vst.msk [vmem:[%s1932] sm:$0x3] %vm696, %v1946
    %v1949 = vpack.c.bf16 %v1927, %v1927
    %1951 = vrot.lane.b32.xlu0 %v1949, 96
    %v1952 = vpop.permute.xlu0 %1951
    %v1954 = vsel %vm202, %v1952, 0
    %1956 = vmatprep.subr.bf16.mxu0 0
    %1957 = vmatpush1.bf16.msra.mxu0 0
    %1958 = vmatprep.subr.bf16.mxu0 0
    %1959 = vmatpush1.bf16.msra.mxu0 0
    %1960 = vmatprep.subr.bf16.mxu0 0
    %1961 = vmatpush1.bf16.msra.mxu0 0
    %1962 = vmatprep.subr.bf16.mxu0 0
    %1963 = vmatpush1.bf16.msra.mxu0 0
    %1964 = vmatprep.subr.bf16.mxu0 0
    %1965 = vmatpush1.bf16.msra.mxu0 0
    %1966 = vmatprep.subr.bf16.mxu0 0
    %1967 = vmatpush1.bf16.msra.mxu0 0
    %1968 = vmatprep.subr.bf16.mxu0 0
    %1969 = vmatpush1.bf16.msra.mxu0 %v199
    %1970 = vmatprep.subr.bf16.mxu0 0
    %1971 = vmatpush1.bf16.msra.mxu0 %v198
    %1972 = vmatprep.subr.bf16.mxu0 0
    %1973 = vmatpush2.bf16.msra.mxu0 0
    %1974 = vmatprep.subr.bf16.mxu0 0
    %1975 = vmatpush2.bf16.msra.mxu0 0
    %1976 = vmatprep.subr.bf16.mxu0 0
    %1977 = vmatpush2.bf16.msra.mxu0 0
    %1978 = vmatprep.subr.bf16.mxu0 0
    %1979 = vmatpush2.bf16.msra.mxu0 0
    %1980 = vmatprep.subr.bf16.mxu0 0
    %1981 = vmatpush2.bf16.msra.mxu0 0
    %1982 = vmatprep.subr.bf16.mxu0 0
    %1983 = vmatpush2.bf16.msra.mxu0 0
    %1984 = vmatprep.subr.bf16.mxu0 0
    %1985 = vmatpush2.bf16.msra.mxu0 0
    %1986 = vmatprep.subr.bf16.mxu0 0
    %1987 = vmatpush2.bf16.msra.mxu0 0
    %1988 = vmatprep.mubr.bf16.mxu0 0
    %1989 = vmatmul.mubr.bf16.gmra.mxu0 %v1954
    %v1990 = vpop.f32.mrf.mxu0
    %v1991 = vadd.f32 0.0, %v1990
    %v1992 = vpop.f32.mrf.mxu0
    %v1993 = vpop.f32.mrf.mxu0
    %v1994 = vpop.f32.mrf.mxu0
    %1995 = vdwg.mxu0
    %v1998 = vunpack.c.l.s4 1966171168
    %v1999 = vunpack.c.0.s8 %v1998
    %v2000 = vlaneseq
    %v2001 = vshrl.u32 %v2000, 7
    %v2002 = vsub.s32 %v1999, %v2001
    %v2003 = vrot.slane %v1991, %v2002
    %v2004 = vcombine.high %v2003, %v2003
    %v2006 = vunpack.c.l.s4 1966171168
    %v2007 = vunpack.c.0.s8 %v2006
    %v2008 = vlaneseq
    %v2009 = vshrl.u32 %v2008, 7
    %v2010 = vsub.s32 %v2007, %v2009
    %v2011 = vrot.slane %v2003, %v2010
    %v2013 = vunpack.c.l.s4 1966171168
    %v2014 = vunpack.c.0.s8 %v2013
    %v2015 = vlaneseq
    %v2016 = vshrl.u32 %v2015, 7
    %v2017 = vsub.s32 %v2014, %v2016
    %v2018 = vrot.slane %v2004, %v2017
    %v2019 = vlaneseq
    %v2020 = vshrl.u32 %v2019, 7
    %v2021 = vsub.s32 0, %v2020
    %v2022 = vrot.slane %v2011, %v2021
    %v2023 = vlaneseq
    %v2024 = vshrl.u32 %v2023, 7
    %v2025 = vsub.s32 0, %v2024
    %v2026 = vrot.slane %v2018, %v2025
    %v2029 = vadd.f32 %v2022, %v167
    %v2030 = vadd.f32 %v2026, %v168
    %v2031 = vtanh.pop %v2029
    %v2032 = vtanh.pop %v2030
    %v2033 = vmul.f32 %v2031, %v287
    %v2034 = vmul.f32 %v2032, %v287
    %v2035 = vsel %vm202, %v2033, 0.0
    %2036 = vadd.xlane.f32.xlu0 %v2035
    %v2037 = vpop.xlane.xlu0 %2036
    %v2038 = vsel %vm202, %v2034, 0.0
    %2039 = vadd.xlane.f32.xlu0 %v2038
    %v2040 = vpop.xlane.xlu0 %2039
    %v2041 = vadd.f32 %v2037, %v304
    %v2042 = vadd.f32 %v2040, %v311
    %2045 = vset.pattern.permute.xlu0 0
    %2046 = vperm.xlu0 %2045, %v2041
    %v2047 = vpop.permute.xlu0 %2046
    %2048 = vset.pattern.permute.xlu0 0
    %2049 = vperm.xlu0 %2048, %v2042
    %v2050 = vpop.permute.xlu0 %2049
    %v2051 = vlaneseq
    %v2052 = vshrl.u32 %v2051, 7
    %v2053 = vsub.s32 %v325, %v2052
    %v2054 = vrot.slane %v2047, %v2053
    %v2055 = vlaneseq
    %v2056 = vshrl.u32 %v2055, 7
    %v2057 = vsub.s32 %v325, %v2056
    %v2058 = vrot.slane %v2050, %v2057
    %v2059 = vsel %vm334, %v2058, %v2054
    %v2061 = vsel %vm337, %v2059, -inf
    %2062 = vmax.xlane.f32.xlu0 %v2061
    %v2063 = vpop.xlane.xlu0 %2062
    %v2065 = vlaneseq
    %v2066 = vshrl.u32 %v2065, 7
    %v2067 = vsub.s32 0, %v2066
    %v2068 = vrot.slane %v2063, %v2067
    %v2069 = vlaneseq
    %v2070 = vshrl.u32 %v2069, 7
    %v2071 = vsub.s32 1, %v2070
    %v2072 = vrot.slane %v2063, %v2071
    %v2075 = vsub.f32 %v2041, %v2068
    %v2076 = vsub.f32 %v2042, %v2072
    %v2077 = vmul.f32 %v2075, 1.442695
    %v2078 = vpow.pop %v2077
    %v2079 = vmul.f32 %v2076, 1.442695
    %v2080 = vpow.pop %v2079
    %2083 = vset.pattern.permute.xlu0 0
    %2084 = vperm.xlu0 %2083, %v2078
    %v2085 = vpop.permute.xlu0 %2084
    %2086 = vset.pattern.permute.xlu0 0
    %2087 = vperm.xlu0 %2086, %v2080
    %v2088 = vpop.permute.xlu0 %2087
    %v2089 = vlaneseq
    %v2090 = vshrl.u32 %v2089, 7
    %v2091 = vsub.s32 %v325, %v2090
    %v2092 = vrot.slane %v2085, %v2091
    %v2093 = vlaneseq
    %v2094 = vshrl.u32 %v2093, 7
    %v2095 = vsub.s32 %v325, %v2094
    %v2096 = vrot.slane %v2088, %v2095
    %v2097 = vsel %vm334, %v2096, %v2092
    %v2099 = vsel %vm337, %v2097, 0.0
    %2100 = vadd.xlane.f32.xlu0 %v2099
    %v2101 = vpop.xlane.xlu0 %2100
    %v2102 = vrcp.pop %v2101
    %v2104 = vlaneseq
    %v2105 = vshrl.u32 %v2104, 7
    %v2106 = vsub.s32 0, %v2105
    %v2107 = vrot.slane %v2102, %v2106
    %v2108 = vlaneseq
    %v2109 = vshrl.u32 %v2108, 7
    %v2110 = vsub.s32 1, %v2109
    %v2111 = vrot.slane %v2102, %v2110
    %v2114 = vmul.f32 %v2078, %v2107
    %v2115 = vmul.f32 %v2080, %v2111
    %v2116 = vpack.c.bf16 %v2114, %v2114
    %v2117 = vpack.c.bf16 %v2115, %v2115
    %v2119 = vunpack.c.l.b16 %v2116
    %2120 = vset.pattern.permute.xlu0 0
    %2121 = vperm.xlu0 %2120, %v2119
    %v2122 = vpop.permute.xlu0 %2121
    %v2123 = vlaneseq
    %v2124 = vshrl.u32 %v2123, 7
    %v2125 = vsub.s32 %v325, %v2124
    %v2126 = vrot.slane %v2122, %v2125
    %v2127 = vpack.c.b16 %v2126, %v2126
    %v2129 = vsel %vm405, %v2127, 0
    %2131 = vmatprep.subr.bf16.mxu0 0
    %2132 = vmatpush1.bf16.msra.mxu0 0
    %2133 = vmatprep.subr.bf16.mxu0 0
    %2134 = vmatpush1.bf16.msra.mxu0 0
    %2135 = vmatprep.subr.bf16.mxu0 0
    %2136 = vmatpush1.bf16.msra.mxu0 0
    %2137 = vmatprep.subr.bf16.mxu0 0
    %2138 = vmatpush1.bf16.msra.mxu0 0
    %2139 = vmatprep.subr.bf16.mxu0 0
    %2140 = vmatpush1.bf16.msra.mxu0 0
    %2141 = vmatprep.subr.bf16.mxu0 0
    %2142 = vmatpush1.bf16.msra.mxu0 0
    %2143 = vmatprep.subr.bf16.mxu0 0
    %2144 = vmatpush1.bf16.msra.mxu0 0
    %2145 = vmatprep.subr.bf16.mxu0 0
    %2146 = vmatpush1.bf16.msra.mxu0 %v411
    %2147 = vmatprep.subr.bf16.mxu0 0
    %2148 = vmatpush2.bf16.msra.mxu0 0
    %2149 = vmatprep.subr.bf16.mxu0 0
    %2150 = vmatpush2.bf16.msra.mxu0 0
    %2151 = vmatprep.subr.bf16.mxu0 0
    %2152 = vmatpush2.bf16.msra.mxu0 0
    %2153 = vmatprep.subr.bf16.mxu0 0
    %2154 = vmatpush2.bf16.msra.mxu0 0
    %2155 = vmatprep.subr.bf16.mxu0 0
    %2156 = vmatpush2.bf16.msra.mxu0 0
    %2157 = vmatprep.subr.bf16.mxu0 0
    %2158 = vmatpush2.bf16.msra.mxu0 0
    %2159 = vmatprep.subr.bf16.mxu0 0
    %2160 = vmatpush2.bf16.msra.mxu0 0
    %2161 = vmatprep.subr.bf16.mxu0 0
    %2162 = vmatpush2.bf16.msra.mxu0 0
    %2163 = vmatprep.mubr.bf16.mxu0 0
    %2164 = vmatmul.mubr.bf16.gmra.mxu0 %v2129
    %v2165 = vpop.f32.mrf.mxu0
    %v2166 = vadd.f32 0.0, %v2165
    %v2167 = vpop.f32.mrf.mxu0
    %v2168 = vpop.f32.mrf.mxu0
    %v2169 = vpop.f32.mrf.mxu0
    %2170 = vdwg.mxu0
    %v2172 = vunpack.c.l.b16 %v2117
    %2173 = vset.pattern.permute.xlu0 0
    %2174 = vperm.xlu0 %2173, %v2172
    %v2175 = vpop.permute.xlu0 %2174
    %v2176 = vlaneseq
    %v2177 = vshrl.u32 %v2176, 7
    %v2178 = vsub.s32 %v325, %v2177
    %v2179 = vrot.slane %v2175, %v2178
    %v2180 = vpack.c.b16 %v2179, %v2179
    %v2182 = vsel %vm405, %v2180, 0
    %2184 = vmatprep.subr.bf16.mxu0 0
    %2185 = vmatpush1.bf16.msra.mxu0 0
    %2186 = vmatprep.subr.bf16.mxu0 0
    %2187 = vmatpush1.bf16.msra.mxu0 0
    %2188 = vmatprep.subr.bf16.mxu0 0
    %2189 = vmatpush1.bf16.msra.mxu0 0
    %2190 = vmatprep.subr.bf16.mxu0 0
    %2191 = vmatpush1.bf16.msra.mxu0 0
    %2192 = vmatprep.subr.bf16.mxu0 0
    %2193 = vmatpush1.bf16.msra.mxu0 0
    %2194 = vmatprep.subr.bf16.mxu0 0
    %2195 = vmatpush1.bf16.msra.mxu0 0
    %2196 = vmatprep.subr.bf16.mxu0 0
    %2197 = vmatpush1.bf16.msra.mxu0 0
    %2198 = vmatprep.subr.bf16.mxu0 0
    %2199 = vmatpush1.bf16.msra.mxu0 %v467
    %2200 = vmatprep.subr.bf16.mxu0 0
    %2201 = vmatpush2.bf16.msra.mxu0 0
    %2202 = vmatprep.subr.bf16.mxu0 0
    %2203 = vmatpush2.bf16.msra.mxu0 0
    %2204 = vmatprep.subr.bf16.mxu0 0
    %2205 = vmatpush2.bf16.msra.mxu0 0
    %2206 = vmatprep.subr.bf16.mxu0 0
    %2207 = vmatpush2.bf16.msra.mxu0 0
    %2208 = vmatprep.subr.bf16.mxu0 0
    %2209 = vmatpush2.bf16.msra.mxu0 0
    %2210 = vmatprep.subr.bf16.mxu0 0
    %2211 = vmatpush2.bf16.msra.mxu0 0
    %2212 = vmatprep.subr.bf16.mxu0 0
    %2213 = vmatpush2.bf16.msra.mxu0 0
    %2214 = vmatprep.subr.bf16.mxu0 0
    %2215 = vmatpush2.bf16.msra.mxu0 0
    %2216 = vmatprep.mubr.bf16.mxu0 0
    %2217 = vmatmul.mubr.bf16.gmra.mxu0 %v2182
    %v2218 = vpop.f32.mrf.mxu0
    %v2219 = vadd.f32 0.0, %v2218
    %v2220 = vpop.f32.mrf.mxu0
    %v2221 = vpop.f32.mrf.mxu0
    %v2222 = vpop.f32.mrf.mxu0
    %2223 = vdwg.mxu0
    %s2224 = scalar_lea.vmem [#allocation6], 8
    %v2225 = vld [vmem:[%s2224] sm:$0x3]
    %v2226 = vpack.c.bf16 %v2166, %v2166
    %v2227 = vpack.c.bf16 %v2219, %v2219
    %v2230 = vunpack.c.l.b16 %v2226
    %v2231 = vunpack.c.l.b16 %v2227
    %v2232 = vrot.slane %v2231, 7
    %v2233 = vsel %vm334, %v2232, %v2230
    %v2234 = vpack.c.b16 %v2233, %v2233
    %v2236 = vsel %vm543, %v2234, 0
    %2238 = vmatprep.subr.bf16.mxu0 0
    %2239 = vmatpush1.bf16.msra.mxu0 0
    %2240 = vmatprep.subr.bf16.mxu0 0
    %2241 = vmatpush1.bf16.msra.mxu0 0
    %2242 = vmatprep.subr.bf16.mxu0 0
    %2243 = vmatpush1.bf16.msra.mxu0 0
    %2244 = vmatprep.subr.bf16.mxu0 0
    %2245 = vmatpush1.bf16.msra.mxu0 0
    %2246 = vmatprep.subr.bf16.mxu0 0
    %2247 = vmatpush1.bf16.msra.mxu0 %v538
    %2248 = vmatprep.subr.bf16.mxu0 0
    %2249 = vmatpush1.bf16.msra.mxu0 %v537
    %2250 = vmatprep.subr.bf16.mxu0 0
    %2251 = vmatpush1.bf16.msra.mxu0 %v536
    %2252 = vmatprep.subr.bf16.mxu0 0
    %2253 = vmatpush1.bf16.msra.mxu0 %v535
    %2254 = vmatprep.subr.bf16.mxu0 0
    %2255 = vmatpush2.bf16.msra.mxu0 0
    %2256 = vmatprep.subr.bf16.mxu0 0
    %2257 = vmatpush2.bf16.msra.mxu0 0
    %2258 = vmatprep.subr.bf16.mxu0 0
    %2259 = vmatpush2.bf16.msra.mxu0 0
    %2260 = vmatprep.subr.bf16.mxu0 0
    %2261 = vmatpush2.bf16.msra.mxu0 0
    %2262 = vmatprep.subr.bf16.mxu0 0
    %2263 = vmatpush2.bf16.msra.mxu0 0
    %2264 = vmatprep.subr.bf16.mxu0 0
    %2265 = vmatpush2.bf16.msra.mxu0 0
    %2266 = vmatprep.subr.bf16.mxu0 0
    %2267 = vmatpush2.bf16.msra.mxu0 0
    %2268 = vmatprep.subr.bf16.mxu0 0
    %2269 = vmatpush2.bf16.msra.mxu0 0
    %2270 = vmatprep.mubr.bf16.mxu0 0
    %2271 = vmatmul.mubr.bf16.gmra.mxu0 %v2236
    %v2272 = vpop.f32.mrf.mxu0
    %v2273 = vadd.f32 0.0, %v2272
    %v2274 = vpop.f32.mrf.mxu0
    %v2275 = vpop.f32.mrf.mxu0
    %v2276 = vpop.f32.mrf.mxu0
    %2277 = vdwg.mxu0
    %v2278 = vadd.f32 %v2225, %v2273
    %2279 = vmatprep.subr.bf16.mxu0 0
    %2280 = vmatpush1.bf16.msra.mxu0 0
    %2281 = vmatprep.subr.bf16.mxu0 0
    %2282 = vmatpush1.bf16.msra.mxu0 0
    %2283 = vmatprep.subr.bf16.mxu0 0
    %2284 = vmatpush1.bf16.msra.mxu0 0
    %2285 = vmatprep.subr.bf16.mxu0 0
    %2286 = vmatpush1.bf16.msra.mxu0 0
    %2287 = vmatprep.subr.bf16.mxu0 0
    %2288 = vmatpush1.bf16.msra.mxu0 0
    %2289 = vmatprep.subr.bf16.mxu0 0
    %2290 = vmatpush1.bf16.msra.mxu0 0
    %2291 = vmatprep.subr.bf16.mxu0 0
    %2292 = vmatpush1.bf16.msra.mxu0 %v603
    %2293 = vmatprep.subr.bf16.mxu0 0
    %2294 = vmatpush1.bf16.msra.mxu0 %v602
    %2295 = vmatprep.subr.bf16.mxu0 0
    %2296 = vmatpush2.bf16.msra.mxu0 0
    %2297 = vmatprep.subr.bf16.mxu0 0
    %2298 = vmatpush2.bf16.msra.mxu0 0
    %2299 = vmatprep.subr.bf16.mxu0 0
    %2300 = vmatpush2.bf16.msra.mxu0 0
    %2301 = vmatprep.subr.bf16.mxu0 0
    %2302 = vmatpush2.bf16.msra.mxu0 0
    %2303 = vmatprep.subr.bf16.mxu0 0
    %2304 = vmatpush2.bf16.msra.mxu0 0
    %2305 = vmatprep.subr.bf16.mxu0 0
    %2306 = vmatpush2.bf16.msra.mxu0 0
    %2307 = vmatprep.subr.bf16.mxu0 0
    %2308 = vmatpush2.bf16.msra.mxu0 0
    %2309 = vmatprep.subr.bf16.mxu0 0
    %2310 = vmatpush2.bf16.msra.mxu0 0
    %2311 = vmatprep.mubr.bf16.mxu0 0
    %2312 = vmatmul.mubr.bf16.gmra.mxu0 %v1954
    %v2313 = vpop.f32.mrf.mxu0
    %v2314 = vadd.f32 %v592, %v2313
    %v2315 = vpop.f32.mrf.mxu0
    %v2316 = vpop.f32.mrf.mxu0
    %v2317 = vpop.f32.mrf.mxu0
    %2318 = vdwg.mxu0
    %v2319 = vadd.f32 %v2278, %v2314
    %v2320 = vxor.u32 %v2319, 2147483648
    %v2321 = vmul.f32 %v2320, 1.442695
    %v2322 = vpow.pop %v2321
    %v2323 = vadd.f32 %v2322, 1.0
    %v2324 = vrcp.pop %v2323
    %v2325 = vmul.f32 1.0, %v2324
    %2327 = vrot.lane.b32.xlu0 %v2314, 64
    %v2328 = vpop.permute.xlu0 %2327
    %v2330 = vmul.f32 %v2325, %v2328
    %2332 = vrot.lane.b32.xlu0 %v2330, 64
    %v2333 = vpop.permute.xlu0 %2332
    %v2335 = vadd.f32 %v2278, %v2333
    %v2336 = vtanh.pop %v2335
    %v2337 = vsub.f32 1.0, %v2325
    %2339 = vrot.lane.b32.xlu0 %v2336, 96
    %v2340 = vpop.permute.xlu0 %2339
    %v2342 = vmul.f32 %v2337, %v2340
    %v2343 = vmul.f32 %v2325, %v1927
    %v2344 = vadd.f32 %v2342, %v2343
    %2346 = vrot.lane.b32.xlu0 %v2344, 96
    %v2347 = vpop.permute.xlu0 %2346
    %s2349 = scalar_lea.vmem [#allocation18], 8
    %2350 = vst.msk [vmem:[%s2349] sm:$0x3] %vm680, %v2347
    %v2353 = vrot.slane %v2219, 7
    %v2354 = vsel %vm334, %v2353, %v2166
    %2355 = vrot.lane.b32.xlu0 %v2354, 32
    %v2356 = vpop.permute.xlu0 %2355
    %2358 = vst.msk [vmem:[%s2349] sm:$0x3] %vm689, %v2356
    %s2359 = scalar_lea.vmem [#allocation3], 8
    %v2360 = vld [vmem:[%s2359] sm:$0x3]
    %2362 = vrot.lane.b32.xlu0 %v2360, 96
    %v2363 = vpop.permute.xlu0 %2362
    %2365 = vst.msk [vmem:[%s2349] sm:$0x3] %vm696, %v2363
    %v2366 = vpack.c.bf16 %v2344, %v2344
    %2368 = vrot.lane.b32.xlu0 %v2366, 96
    %v2369 = vpop.permute.xlu0 %2368
    %v2371 = vsel %vm202, %v2369, 0
    %2373 = vmatprep.subr.bf16.mxu0 0
    %2374 = vmatpush1.bf16.msra.mxu0 0
    %2375 = vmatprep.subr.bf16.mxu0 0
    %2376 = vmatpush1.bf16.msra.mxu0 0
    %2377 = vmatprep.subr.bf16.mxu0 0
    %2378 = vmatpush1.bf16.msra.mxu0 0
    %2379 = vmatprep.subr.bf16.mxu0 0
    %2380 = vmatpush1.bf16.msra.mxu0 0
    %2381 = vmatprep.subr.bf16.mxu0 0
    %2382 = vmatpush1.bf16.msra.mxu0 0
    %2383 = vmatprep.subr.bf16.mxu0 0
    %2384 = vmatpush1.bf16.msra.mxu0 0
    %2385 = vmatprep.subr.bf16.mxu0 0
    %2386 = vmatpush1.bf16.msra.mxu0 %v199
    %2387 = vmatprep.subr.bf16.mxu0 0
    %2388 = vmatpush1.bf16.msra.mxu0 %v198
    %2389 = vmatprep.subr.bf16.mxu0 0
    %2390 = vmatpush2.bf16.msra.mxu0 0
    %2391 = vmatprep.subr.bf16.mxu0 0
    %2392 = vmatpush2.bf16.msra.mxu0 0
    %2393 = vmatprep.subr.bf16.mxu0 0
    %2394 = vmatpush2.bf16.msra.mxu0 0
    %2395 = vmatprep.subr.bf16.mxu0 0
    %2396 = vmatpush2.bf16.msra.mxu0 0
    %2397 = vmatprep.subr.bf16.mxu0 0
    %2398 = vmatpush2.bf16.msra.mxu0 0
    %2399 = vmatprep.subr.bf16.mxu0 0
    %2400 = vmatpush2.bf16.msra.mxu0 0
    %2401 = vmatprep.subr.bf16.mxu0 0
    %2402 = vmatpush2.bf16.msra.mxu0 0
    %2403 = vmatprep.subr.bf16.mxu0 0
    %2404 = vmatpush2.bf16.msra.mxu0 0
    %2405 = vmatprep.mubr.bf16.mxu0 0
    %2406 = vmatmul.mubr.bf16.gmra.mxu0 %v2371
    %v2407 = vpop.f32.mrf.mxu0
    %v2408 = vadd.f32 0.0, %v2407
    %v2409 = vpop.f32.mrf.mxu0
    %v2410 = vpop.f32.mrf.mxu0
    %v2411 = vpop.f32.mrf.mxu0
    %2412 = vdwg.mxu0
    %v2415 = vunpack.c.l.s4 1966171168
    %v2416 = vunpack.c.0.s8 %v2415
    %v2417 = vlaneseq
    %v2418 = vshrl.u32 %v2417, 7
    %v2419 = vsub.s32 %v2416, %v2418
    %v2420 = vrot.slane %v2408, %v2419
    %v2421 = vcombine.high %v2420, %v2420
    %v2423 = vunpack.c.l.s4 1966171168
    %v2424 = vunpack.c.0.s8 %v2423
    %v2425 = vlaneseq
    %v2426 = vshrl.u32 %v2425, 7
    %v2427 = vsub.s32 %v2424, %v2426
    %v2428 = vrot.slane %v2420, %v2427
    %v2430 = vunpack.c.l.s4 1966171168
    %v2431 = vunpack.c.0.s8 %v2430
    %v2432 = vlaneseq
    %v2433 = vshrl.u32 %v2432, 7
    %v2434 = vsub.s32 %v2431, %v2433
    %v2435 = vrot.slane %v2421, %v2434
    %v2436 = vlaneseq
    %v2437 = vshrl.u32 %v2436, 7
    %v2438 = vsub.s32 0, %v2437
    %v2439 = vrot.slane %v2428, %v2438
    %v2440 = vlaneseq
    %v2441 = vshrl.u32 %v2440, 7
    %v2442 = vsub.s32 0, %v2441
    %v2443 = vrot.slane %v2435, %v2442
    %v2446 = vadd.f32 %v2439, %v167
    %v2447 = vadd.f32 %v2443, %v168
    %v2448 = vtanh.pop %v2446
    %v2449 = vtanh.pop %v2447
    %v2450 = vmul.f32 %v2448, %v287
    %v2451 = vmul.f32 %v2449, %v287
    %v2452 = vsel %vm202, %v2450, 0.0
    %2453 = vadd.xlane.f32.xlu0 %v2452
    %v2454 = vpop.xlane.xlu0 %2453
    %v2455 = vsel %vm202, %v2451, 0.0
    %2456 = vadd.xlane.f32.xlu0 %v2455
    %v2457 = vpop.xlane.xlu0 %2456
    %v2458 = vadd.f32 %v2454, %v304
    %v2459 = vadd.f32 %v2457, %v311
    %2462 = vset.pattern.permute.xlu0 0
    %2463 = vperm.xlu0 %2462, %v2458
    %v2464 = vpop.permute.xlu0 %2463
    %2465 = vset.pattern.permute.xlu0 0
    %2466 = vperm.xlu0 %2465, %v2459
    %v2467 = vpop.permute.xlu0 %2466
    %v2468 = vlaneseq
    %v2469 = vshrl.u32 %v2468, 7
    %v2470 = vsub.s32 %v325, %v2469
    %v2471 = vrot.slane %v2464, %v2470
    %v2472 = vlaneseq
    %v2473 = vshrl.u32 %v2472, 7
    %v2474 = vsub.s32 %v325, %v2473
    %v2475 = vrot.slane %v2467, %v2474
    %v2476 = vsel %vm334, %v2475, %v2471
    %v2478 = vsel %vm337, %v2476, -inf
    %2479 = vmax.xlane.f32.xlu0 %v2478
    %v2480 = vpop.xlane.xlu0 %2479
    %v2482 = vlaneseq
    %v2483 = vshrl.u32 %v2482, 7
    %v2484 = vsub.s32 0, %v2483
    %v2485 = vrot.slane %v2480, %v2484
    %v2486 = vlaneseq
    %v2487 = vshrl.u32 %v2486, 7
    %v2488 = vsub.s32 1, %v2487
    %v2489 = vrot.slane %v2480, %v2488
    %v2492 = vsub.f32 %v2458, %v2485
    %v2493 = vsub.f32 %v2459, %v2489
    %v2494 = vmul.f32 %v2492, 1.442695
    %v2495 = vpow.pop %v2494
    %v2496 = vmul.f32 %v2493, 1.442695
    %v2497 = vpow.pop %v2496
    %2500 = vset.pattern.permute.xlu0 0
    %2501 = vperm.xlu0 %2500, %v2495
    %v2502 = vpop.permute.xlu0 %2501
    %2503 = vset.pattern.permute.xlu0 0
    %2504 = vperm.xlu0 %2503, %v2497
    %v2505 = vpop.permute.xlu0 %2504
    %v2506 = vlaneseq
    %v2507 = vshrl.u32 %v2506, 7
    %v2508 = vsub.s32 %v325, %v2507
    %v2509 = vrot.slane %v2502, %v2508
    %v2510 = vlaneseq
    %v2511 = vshrl.u32 %v2510, 7
    %v2512 = vsub.s32 %v325, %v2511
    %v2513 = vrot.slane %v2505, %v2512
    %v2514 = vsel %vm334, %v2513, %v2509
    %v2516 = vsel %vm337, %v2514, 0.0
    %2517 = vadd.xlane.f32.xlu0 %v2516
    %v2518 = vpop.xlane.xlu0 %2517
    %v2519 = vrcp.pop %v2518
    %v2521 = vlaneseq
    %v2522 = vshrl.u32 %v2521, 7
    %v2523 = vsub.s32 0, %v2522
    %v2524 = vrot.slane %v2519, %v2523
    %v2525 = vlaneseq
    %v2526 = vshrl.u32 %v2525, 7
    %v2527 = vsub.s32 1, %v2526
    %v2528 = vrot.slane %v2519, %v2527
    %v2531 = vmul.f32 %v2495, %v2524
    %v2532 = vmul.f32 %v2497, %v2528
    %v2533 = vpack.c.bf16 %v2531, %v2531
    %v2534 = vpack.c.bf16 %v2532, %v2532
    %v2536 = vunpack.c.l.b16 %v2533
    %2537 = vset.pattern.permute.xlu0 0
    %2538 = vperm.xlu0 %2537, %v2536
    %v2539 = vpop.permute.xlu0 %2538
    %v2540 = vlaneseq
    %v2541 = vshrl.u32 %v2540, 7
    %v2542 = vsub.s32 %v325, %v2541
    %v2543 = vrot.slane %v2539, %v2542
    %v2544 = vpack.c.b16 %v2543, %v2543
    %v2546 = vsel %vm405, %v2544, 0
    %2548 = vmatprep.subr.bf16.mxu0 0
    %2549 = vmatpush1.bf16.msra.mxu0 0
    %2550 = vmatprep.subr.bf16.mxu0 0
    %2551 = vmatpush1.bf16.msra.mxu0 0
    %2552 = vmatprep.subr.bf16.mxu0 0
    %2553 = vmatpush1.bf16.msra.mxu0 0
    %2554 = vmatprep.subr.bf16.mxu0 0
    %2555 = vmatpush1.bf16.msra.mxu0 0
    %2556 = vmatprep.subr.bf16.mxu0 0
    %2557 = vmatpush1.bf16.msra.mxu0 0
    %2558 = vmatprep.subr.bf16.mxu0 0
    %2559 = vmatpush1.bf16.msra.mxu0 0
    %2560 = vmatprep.subr.bf16.mxu0 0
    %2561 = vmatpush1.bf16.msra.mxu0 0
    %2562 = vmatprep.subr.bf16.mxu0 0
    %2563 = vmatpush1.bf16.msra.mxu0 %v411
    %2564 = vmatprep.subr.bf16.mxu0 0
    %2565 = vmatpush2.bf16.msra.mxu0 0
    %2566 = vmatprep.subr.bf16.mxu0 0
    %2567 = vmatpush2.bf16.msra.mxu0 0
    %2568 = vmatprep.subr.bf16.mxu0 0
    %2569 = vmatpush2.bf16.msra.mxu0 0
    %2570 = vmatprep.subr.bf16.mxu0 0
    %2571 = vmatpush2.bf16.msra.mxu0 0
    %2572 = vmatprep.subr.bf16.mxu0 0
    %2573 = vmatpush2.bf16.msra.mxu0 0
    %2574 = vmatprep.subr.bf16.mxu0 0
    %2575 = vmatpush2.bf16.msra.mxu0 0
    %2576 = vmatprep.subr.bf16.mxu0 0
    %2577 = vmatpush2.bf16.msra.mxu0 0
    %2578 = vmatprep.subr.bf16.mxu0 0
    %2579 = vmatpush2.bf16.msra.mxu0 0
    %2580 = vmatprep.mubr.bf16.mxu0 0
    %2581 = vmatmul.mubr.bf16.gmra.mxu0 %v2546
    %v2582 = vpop.f32.mrf.mxu0
    %v2583 = vadd.f32 0.0, %v2582
    %v2584 = vpop.f32.mrf.mxu0
    %v2585 = vpop.f32.mrf.mxu0
    %v2586 = vpop.f32.mrf.mxu0
    %2587 = vdwg.mxu0
    %v2589 = vunpack.c.l.b16 %v2534
    %2590 = vset.pattern.permute.xlu0 0
    %2591 = vperm.xlu0 %2590, %v2589
    %v2592 = vpop.permute.xlu0 %2591
    %v2593 = vlaneseq
    %v2594 = vshrl.u32 %v2593, 7
    %v2595 = vsub.s32 %v325, %v2594
    %v2596 = vrot.slane %v2592, %v2595
    %v2597 = vpack.c.b16 %v2596, %v2596
    %v2599 = vsel %vm405, %v2597, 0
    %2601 = vmatprep.subr.bf16.mxu0 0
    %2602 = vmatpush1.bf16.msra.mxu0 0
    %2603 = vmatprep.subr.bf16.mxu0 0
    %2604 = vmatpush1.bf16.msra.mxu0 0
    %2605 = vmatprep.subr.bf16.mxu0 0
    %2606 = vmatpush1.bf16.msra.mxu0 0
    %2607 = vmatprep.subr.bf16.mxu0 0
    %2608 = vmatpush1.bf16.msra.mxu0 0
    %2609 = vmatprep.subr.bf16.mxu0 0
    %2610 = vmatpush1.bf16.msra.mxu0 0
    %2611 = vmatprep.subr.bf16.mxu0 0
    %2612 = vmatpush1.bf16.msra.mxu0 0
    %2613 = vmatprep.subr.bf16.mxu0 0
    %2614 = vmatpush1.bf16.msra.mxu0 0
    %2615 = vmatprep.subr.bf16.mxu0 0
    %2616 = vmatpush1.bf16.msra.mxu0 %v467
    %2617 = vmatprep.subr.bf16.mxu0 0
    %2618 = vmatpush2.bf16.msra.mxu0 0
    %2619 = vmatprep.subr.bf16.mxu0 0
    %2620 = vmatpush2.bf16.msra.mxu0 0
    %2621 = vmatprep.subr.bf16.mxu0 0
    %2622 = vmatpush2.bf16.msra.mxu0 0
    %2623 = vmatprep.subr.bf16.mxu0 0
    %2624 = vmatpush2.bf16.msra.mxu0 0
    %2625 = vmatprep.subr.bf16.mxu0 0
    %2626 = vmatpush2.bf16.msra.mxu0 0
    %2627 = vmatprep.subr.bf16.mxu0 0
    %2628 = vmatpush2.bf16.msra.mxu0 0
    %2629 = vmatprep.subr.bf16.mxu0 0
    %2630 = vmatpush2.bf16.msra.mxu0 0
    %2631 = vmatprep.subr.bf16.mxu0 0
    %2632 = vmatpush2.bf16.msra.mxu0 0
    %2633 = vmatprep.mubr.bf16.mxu0 0
    %2634 = vmatmul.mubr.bf16.gmra.mxu0 %v2599
    %v2635 = vpop.f32.mrf.mxu0
    %v2636 = vadd.f32 0.0, %v2635
    %v2637 = vpop.f32.mrf.mxu0
    %v2638 = vpop.f32.mrf.mxu0
    %v2639 = vpop.f32.mrf.mxu0
    %2640 = vdwg.mxu0
    %s2641 = scalar_lea.vmem [#allocation6], 10
    %v2642 = vld [vmem:[%s2641] sm:$0x3]
    %v2643 = vpack.c.bf16 %v2583, %v2583
    %v2644 = vpack.c.bf16 %v2636, %v2636
    %v2647 = vunpack.c.l.b16 %v2643
    %v2648 = vunpack.c.l.b16 %v2644
    %v2649 = vrot.slane %v2648, 7
    %v2650 = vsel %vm334, %v2649, %v2647
    %v2651 = vpack.c.b16 %v2650, %v2650
    %v2653 = vsel %vm543, %v2651, 0
    %2655 = vmatprep.subr.bf16.mxu0 0
    %2656 = vmatpush1.bf16.msra.mxu0 0
    %2657 = vmatprep.subr.bf16.mxu0 0
    %2658 = vmatpush1.bf16.msra.mxu0 0
    %2659 = vmatprep.subr.bf16.mxu0 0
    %2660 = vmatpush1.bf16.msra.mxu0 0
    %2661 = vmatprep.subr.bf16.mxu0 0
    %2662 = vmatpush1.bf16.msra.mxu0 0
    %2663 = vmatprep.subr.bf16.mxu0 0
    %2664 = vmatpush1.bf16.msra.mxu0 %v538
    %2665 = vmatprep.subr.bf16.mxu0 0
    %2666 = vmatpush1.bf16.msra.mxu0 %v537
    %2667 = vmatprep.subr.bf16.mxu0 0
    %2668 = vmatpush1.bf16.msra.mxu0 %v536
    %2669 = vmatprep.subr.bf16.mxu0 0
    %2670 = vmatpush1.bf16.msra.mxu0 %v535
    %2671 = vmatprep.subr.bf16.mxu0 0
    %2672 = vmatpush2.bf16.msra.mxu0 0
    %2673 = vmatprep.subr.bf16.mxu0 0
    %2674 = vmatpush2.bf16.msra.mxu0 0
    %2675 = vmatprep.subr.bf16.mxu0 0
    %2676 = vmatpush2.bf16.msra.mxu0 0
    %2677 = vmatprep.subr.bf16.mxu0 0
    %2678 = vmatpush2.bf16.msra.mxu0 0
    %2679 = vmatprep.subr.bf16.mxu0 0
    %2680 = vmatpush2.bf16.msra.mxu0 0
    %2681 = vmatprep.subr.bf16.mxu0 0
    %2682 = vmatpush2.bf16.msra.mxu0 0
    %2683 = vmatprep.subr.bf16.mxu0 0
    %2684 = vmatpush2.bf16.msra.mxu0 0
    %2685 = vmatprep.subr.bf16.mxu0 0
    %2686 = vmatpush2.bf16.msra.mxu0 0
    %2687 = vmatprep.mubr.bf16.mxu0 0
    %2688 = vmatmul.mubr.bf16.gmra.mxu0 %v2653
    %v2689 = vpop.f32.mrf.mxu0
    %v2690 = vadd.f32 0.0, %v2689
    %v2691 = vpop.f32.mrf.mxu0
    %v2692 = vpop.f32.mrf.mxu0
    %v2693 = vpop.f32.mrf.mxu0
    %2694 = vdwg.mxu0
    %v2695 = vadd.f32 %v2642, %v2690
    %2696 = vmatprep.subr.bf16.mxu0 0
    %2697 = vmatpush1.bf16.msra.mxu0 0
    %2698 = vmatprep.subr.bf16.mxu0 0
    %2699 = vmatpush1.bf16.msra.mxu0 0
    %2700 = vmatprep.subr.bf16.mxu0 0
    %2701 = vmatpush1.bf16.msra.mxu0 0
    %2702 = vmatprep.subr.bf16.mxu0 0
    %2703 = vmatpush1.bf16.msra.mxu0 0
    %2704 = vmatprep.subr.bf16.mxu0 0
    %2705 = vmatpush1.bf16.msra.mxu0 0
    %2706 = vmatprep.subr.bf16.mxu0 0
    %2707 = vmatpush1.bf16.msra.mxu0 0
    %2708 = vmatprep.subr.bf16.mxu0 0
    %2709 = vmatpush1.bf16.msra.mxu0 %v603
    %2710 = vmatprep.subr.bf16.mxu0 0
    %2711 = vmatpush1.bf16.msra.mxu0 %v602
    %2712 = vmatprep.subr.bf16.mxu0 0
    %2713 = vmatpush2.bf16.msra.mxu0 0
    %2714 = vmatprep.subr.bf16.mxu0 0
    %2715 = vmatpush2.bf16.msra.mxu0 0
    %2716 = vmatprep.subr.bf16.mxu0 0
    %2717 = vmatpush2.bf16.msra.mxu0 0
    %2718 = vmatprep.subr.bf16.mxu0 0
    %2719 = vmatpush2.bf16.msra.mxu0 0
    %2720 = vmatprep.subr.bf16.mxu0 0
    %2721 = vmatpush2.bf16.msra.mxu0 0
    %2722 = vmatprep.subr.bf16.mxu0 0
    %2723 = vmatpush2.bf16.msra.mxu0 0
    %2724 = vmatprep.subr.bf16.mxu0 0
    %2725 = vmatpush2.bf16.msra.mxu0 0
    %2726 = vmatprep.subr.bf16.mxu0 0
    %2727 = vmatpush2.bf16.msra.mxu0 0
    %2728 = vmatprep.mubr.bf16.mxu0 0
    %2729 = vmatmul.mubr.bf16.gmra.mxu0 %v2371
    %v2730 = vpop.f32.mrf.mxu0
    %v2731 = vadd.f32 %v592, %v2730
    %v2732 = vpop.f32.mrf.mxu0
    %v2733 = vpop.f32.mrf.mxu0
    %v2734 = vpop.f32.mrf.mxu0
    %2735 = vdwg.mxu0
    %v2736 = vadd.f32 %v2695, %v2731
    %v2737 = vxor.u32 %v2736, 2147483648
    %v2738 = vmul.f32 %v2737, 1.442695
    %v2739 = vpow.pop %v2738
    %v2740 = vadd.f32 %v2739, 1.0
    %v2741 = vrcp.pop %v2740
    %v2742 = vmul.f32 1.0, %v2741
    %2744 = vrot.lane.b32.xlu0 %v2731, 64
    %v2745 = vpop.permute.xlu0 %2744
    %v2747 = vmul.f32 %v2742, %v2745
    %2749 = vrot.lane.b32.xlu0 %v2747, 64
    %v2750 = vpop.permute.xlu0 %2749
    %v2752 = vadd.f32 %v2695, %v2750
    %v2753 = vtanh.pop %v2752
    %v2754 = vsub.f32 1.0, %v2742
    %2756 = vrot.lane.b32.xlu0 %v2753, 96
    %v2757 = vpop.permute.xlu0 %2756
    %v2759 = vmul.f32 %v2754, %v2757
    %v2760 = vmul.f32 %v2742, %v2344
    %v2761 = vadd.f32 %v2759, %v2760
    %2763 = vrot.lane.b32.xlu0 %v2761, 96
    %v2764 = vpop.permute.xlu0 %2763
    %s2766 = scalar_lea.vmem [#allocation18], 10
    %2767 = vst.msk [vmem:[%s2766] sm:$0x3] %vm680, %v2764
    %v2770 = vrot.slane %v2636, 7
    %v2771 = vsel %vm334, %v2770, %v2583
    %2772 = vrot.lane.b32.xlu0 %v2771, 32
    %v2773 = vpop.permute.xlu0 %2772
    %2775 = vst.msk [vmem:[%s2766] sm:$0x3] %vm689, %v2773
    %s2776 = scalar_lea.vmem [#allocation3], 10
    %v2777 = vld [vmem:[%s2776] sm:$0x3]
    %2779 = vrot.lane.b32.xlu0 %v2777, 96
    %v2780 = vpop.permute.xlu0 %2779
    %2782 = vst.msk [vmem:[%s2766] sm:$0x3] %vm696, %v2780
    %v2783 = vpack.c.bf16 %v2761, %v2761
    %2785 = vrot.lane.b32.xlu0 %v2783, 96
    %v2786 = vpop.permute.xlu0 %2785
    %v2788 = vsel %vm202, %v2786, 0
    %2790 = vmatprep.subr.bf16.mxu0 0
    %2791 = vmatpush1.bf16.msra.mxu0 0
    %2792 = vmatprep.subr.bf16.mxu0 0
    %2793 = vmatpush1.bf16.msra.mxu0 0
    %2794 = vmatprep.subr.bf16.mxu0 0
    %2795 = vmatpush1.bf16.msra.mxu0 0
    %2796 = vmatprep.subr.bf16.mxu0 0
    %2797 = vmatpush1.bf16.msra.mxu0 0
    %2798 = vmatprep.subr.bf16.mxu0 0
    %2799 = vmatpush1.bf16.msra.mxu0 0
    %2800 = vmatprep.subr.bf16.mxu0 0
    %2801 = vmatpush1.bf16.msra.mxu0 0
    %2802 = vmatprep.subr.bf16.mxu0 0
    %2803 = vmatpush1.bf16.msra.mxu0 %v199
    %2804 = vmatprep.subr.bf16.mxu0 0
    %2805 = vmatpush1.bf16.msra.mxu0 %v198
    %2806 = vmatprep.subr.bf16.mxu0 0
    %2807 = vmatpush2.bf16.msra.mxu0 0
    %2808 = vmatprep.subr.bf16.mxu0 0
    %2809 = vmatpush2.bf16.msra.mxu0 0
    %2810 = vmatprep.subr.bf16.mxu0 0
    %2811 = vmatpush2.bf16.msra.mxu0 0
    %2812 = vmatprep.subr.bf16.mxu0 0
    %2813 = vmatpush2.bf16.msra.mxu0 0
    %2814 = vmatprep.subr.bf16.mxu0 0
    %2815 = vmatpush2.bf16.msra.mxu0 0
    %2816 = vmatprep.subr.bf16.mxu0 0
    %2817 = vmatpush2.bf16.msra.mxu0 0
    %2818 = vmatprep.subr.bf16.mxu0 0
    %2819 = vmatpush2.bf16.msra.mxu0 0
    %2820 = vmatprep.subr.bf16.mxu0 0
    %2821 = vmatpush2.bf16.msra.mxu0 0
    %2822 = vmatprep.mubr.bf16.mxu0 0
    %2823 = vmatmul.mubr.bf16.gmra.mxu0 %v2788
    %v2824 = vpop.f32.mrf.mxu0
    %v2825 = vadd.f32 0.0, %v2824
    %v2826 = vpop.f32.mrf.mxu0
    %v2827 = vpop.f32.mrf.mxu0
    %v2828 = vpop.f32.mrf.mxu0
    %2829 = vdwg.mxu0
    %v2832 = vunpack.c.l.s4 1966171168
    %v2833 = vunpack.c.0.s8 %v2832
    %v2834 = vlaneseq
    %v2835 = vshrl.u32 %v2834, 7
    %v2836 = vsub.s32 %v2833, %v2835
    %v2837 = vrot.slane %v2825, %v2836
    %v2838 = vcombine.high %v2837, %v2837
    %v2840 = vunpack.c.l.s4 1966171168
    %v2841 = vunpack.c.0.s8 %v2840
    %v2842 = vlaneseq
    %v2843 = vshrl.u32 %v2842, 7
    %v2844 = vsub.s32 %v2841, %v2843
    %v2845 = vrot.slane %v2837, %v2844
    %v2847 = vunpack.c.l.s4 1966171168
    %v2848 = vunpack.c.0.s8 %v2847
    %v2849 = vlaneseq
    %v2850 = vshrl.u32 %v2849, 7
    %v2851 = vsub.s32 %v2848, %v2850
    %v2852 = vrot.slane %v2838, %v2851
    %v2853 = vlaneseq
    %v2854 = vshrl.u32 %v2853, 7
    %v2855 = vsub.s32 0, %v2854
    %v2856 = vrot.slane %v2845, %v2855
    %v2857 = vlaneseq
    %v2858 = vshrl.u32 %v2857, 7
    %v2859 = vsub.s32 0, %v2858
    %v2860 = vrot.slane %v2852, %v2859
    %v2863 = vadd.f32 %v2856, %v167
    %v2864 = vadd.f32 %v2860, %v168
    %v2865 = vtanh.pop %v2863
    %v2866 = vtanh.pop %v2864
    %v2867 = vmul.f32 %v2865, %v287
    %v2868 = vmul.f32 %v2866, %v287
    %v2869 = vsel %vm202, %v2867, 0.0
    %2870 = vadd.xlane.f32.xlu0 %v2869
    %v2871 = vpop.xlane.xlu0 %2870
    %v2872 = vsel %vm202, %v2868, 0.0
    %2873 = vadd.xlane.f32.xlu0 %v2872
    %v2874 = vpop.xlane.xlu0 %2873
    %v2875 = vadd.f32 %v2871, %v304
    %v2876 = vadd.f32 %v2874, %v311
    %2879 = vset.pattern.permute.xlu0 0
    %2880 = vperm.xlu0 %2879, %v2875
    %v2881 = vpop.permute.xlu0 %2880
    %2882 = vset.pattern.permute.xlu0 0
    %2883 = vperm.xlu0 %2882, %v2876
    %v2884 = vpop.permute.xlu0 %2883
    %v2885 = vlaneseq
    %v2886 = vshrl.u32 %v2885, 7
    %v2887 = vsub.s32 %v325, %v2886
    %v2888 = vrot.slane %v2881, %v2887
    %v2889 = vlaneseq
    %v2890 = vshrl.u32 %v2889, 7
    %v2891 = vsub.s32 %v325, %v2890
    %v2892 = vrot.slane %v2884, %v2891
    %v2893 = vsel %vm334, %v2892, %v2888
    %v2895 = vsel %vm337, %v2893, -inf
    %2896 = vmax.xlane.f32.xlu0 %v2895
    %v2897 = vpop.xlane.xlu0 %2896
    %v2899 = vlaneseq
    %v2900 = vshrl.u32 %v2899, 7
    %v2901 = vsub.s32 0, %v2900
    %v2902 = vrot.slane %v2897, %v2901
    %v2903 = vlaneseq
    %v2904 = vshrl.u32 %v2903, 7
    %v2905 = vsub.s32 1, %v2904
    %v2906 = vrot.slane %v2897, %v2905
    %v2909 = vsub.f32 %v2875, %v2902
    %v2910 = vsub.f32 %v2876, %v2906
    %v2911 = vmul.f32 %v2909, 1.442695
    %v2912 = vpow.pop %v2911
    %v2913 = vmul.f32 %v2910, 1.442695
    %v2914 = vpow.pop %v2913
    %2917 = vset.pattern.permute.xlu0 0
    %2918 = vperm.xlu0 %2917, %v2912
    %v2919 = vpop.permute.xlu0 %2918
    %2920 = vset.pattern.permute.xlu0 0
    %2921 = vperm.xlu0 %2920, %v2914
    %v2922 = vpop.permute.xlu0 %2921
    %v2923 = vlaneseq
    %v2924 = vshrl.u32 %v2923, 7
    %v2925 = vsub.s32 %v325, %v2924
    %v2926 = vrot.slane %v2919, %v2925
    %v2927 = vlaneseq
    %v2928 = vshrl.u32 %v2927, 7
    %v2929 = vsub.s32 %v325, %v2928
    %v2930 = vrot.slane %v2922, %v2929
    %v2931 = vsel %vm334, %v2930, %v2926
    %v2933 = vsel %vm337, %v2931, 0.0
    %2934 = vadd.xlane.f32.xlu0 %v2933
    %v2935 = vpop.xlane.xlu0 %2934
    %v2936 = vrcp.pop %v2935
    %v2938 = vlaneseq
    %v2939 = vshrl.u32 %v2938, 7
    %v2940 = vsub.s32 0, %v2939
    %v2941 = vrot.slane %v2936, %v2940
    %v2942 = vlaneseq
    %v2943 = vshrl.u32 %v2942, 7
    %v2944 = vsub.s32 1, %v2943
    %v2945 = vrot.slane %v2936, %v2944
    %v2948 = vmul.f32 %v2912, %v2941
    %v2949 = vmul.f32 %v2914, %v2945
    %v2950 = vpack.c.bf16 %v2948, %v2948
    %v2951 = vpack.c.bf16 %v2949, %v2949
    %v2953 = vunpack.c.l.b16 %v2950
    %2954 = vset.pattern.permute.xlu0 0
    %2955 = vperm.xlu0 %2954, %v2953
    %v2956 = vpop.permute.xlu0 %2955
    %v2957 = vlaneseq
    %v2958 = vshrl.u32 %v2957, 7
    %v2959 = vsub.s32 %v325, %v2958
    %v2960 = vrot.slane %v2956, %v2959
    %v2961 = vpack.c.b16 %v2960, %v2960
    %v2963 = vsel %vm405, %v2961, 0
    %2965 = vmatprep.subr.bf16.mxu0 0
    %2966 = vmatpush1.bf16.msra.mxu0 0
    %2967 = vmatprep.subr.bf16.mxu0 0
    %2968 = vmatpush1.bf16.msra.mxu0 0
    %2969 = vmatprep.subr.bf16.mxu0 0
    %2970 = vmatpush1.bf16.msra.mxu0 0
    %2971 = vmatprep.subr.bf16.mxu0 0
    %2972 = vmatpush1.bf16.msra.mxu0 0
    %2973 = vmatprep.subr.bf16.mxu0 0
    %2974 = vmatpush1.bf16.msra.mxu0 0
    %2975 = vmatprep.subr.bf16.mxu0 0
    %2976 = vmatpush1.bf16.msra.mxu0 0
    %2977 = vmatprep.subr.bf16.mxu0 0
    %2978 = vmatpush1.bf16.msra.mxu0 0
    %2979 = vmatprep.subr.bf16.mxu0 0
    %2980 = vmatpush1.bf16.msra.mxu0 %v411
    %2981 = vmatprep.subr.bf16.mxu0 0
    %2982 = vmatpush2.bf16.msra.mxu0 0
    %2983 = vmatprep.subr.bf16.mxu0 0
    %2984 = vmatpush2.bf16.msra.mxu0 0
    %2985 = vmatprep.subr.bf16.mxu0 0
    %2986 = vmatpush2.bf16.msra.mxu0 0
    %2987 = vmatprep.subr.bf16.mxu0 0
    %2988 = vmatpush2.bf16.msra.mxu0 0
    %2989 = vmatprep.subr.bf16.mxu0 0
    %2990 = vmatpush2.bf16.msra.mxu0 0
    %2991 = vmatprep.subr.bf16.mxu0 0
    %2992 = vmatpush2.bf16.msra.mxu0 0
    %2993 = vmatprep.subr.bf16.mxu0 0
    %2994 = vmatpush2.bf16.msra.mxu0 0
    %2995 = vmatprep.subr.bf16.mxu0 0
    %2996 = vmatpush2.bf16.msra.mxu0 0
    %2997 = vmatprep.mubr.bf16.mxu0 0
    %2998 = vmatmul.mubr.bf16.gmra.mxu0 %v2963
    %v2999 = vpop.f32.mrf.mxu0
    %v3000 = vadd.f32 0.0, %v2999
    %v3001 = vpop.f32.mrf.mxu0
    %v3002 = vpop.f32.mrf.mxu0
    %v3003 = vpop.f32.mrf.mxu0
    %3004 = vdwg.mxu0
    %v3006 = vunpack.c.l.b16 %v2951
    %3007 = vset.pattern.permute.xlu0 0
    %3008 = vperm.xlu0 %3007, %v3006
    %v3009 = vpop.permute.xlu0 %3008
    %v3010 = vlaneseq
    %v3011 = vshrl.u32 %v3010, 7
    %v3012 = vsub.s32 %v325, %v3011
    %v3013 = vrot.slane %v3009, %v3012
    %v3014 = vpack.c.b16 %v3013, %v3013
    %v3016 = vsel %vm405, %v3014, 0
    %3018 = vmatprep.subr.bf16.mxu0 0
    %3019 = vmatpush1.bf16.msra.mxu0 0
    %3020 = vmatprep.subr.bf16.mxu0 0
    %3021 = vmatpush1.bf16.msra.mxu0 0
    %3022 = vmatprep.subr.bf16.mxu0 0
    %3023 = vmatpush1.bf16.msra.mxu0 0
    %3024 = vmatprep.subr.bf16.mxu0 0
    %3025 = vmatpush1.bf16.msra.mxu0 0
    %3026 = vmatprep.subr.bf16.mxu0 0
    %3027 = vmatpush1.bf16.msra.mxu0 0
    %3028 = vmatprep.subr.bf16.mxu0 0
    %3029 = vmatpush1.bf16.msra.mxu0 0
    %3030 = vmatprep.subr.bf16.mxu0 0
    %3031 = vmatpush1.bf16.msra.mxu0 0
    %3032 = vmatprep.subr.bf16.mxu0 0
    %3033 = vmatpush1.bf16.msra.mxu0 %v467
    %3034 = vmatprep.subr.bf16.mxu0 0
    %3035 = vmatpush2.bf16.msra.mxu0 0
    %3036 = vmatprep.subr.bf16.mxu0 0
    %3037 = vmatpush2.bf16.msra.mxu0 0
    %3038 = vmatprep.subr.bf16.mxu0 0
    %3039 = vmatpush2.bf16.msra.mxu0 0
    %3040 = vmatprep.subr.bf16.mxu0 0
    %3041 = vmatpush2.bf16.msra.mxu0 0
    %3042 = vmatprep.subr.bf16.mxu0 0
    %3043 = vmatpush2.bf16.msra.mxu0 0
    %3044 = vmatprep.subr.bf16.mxu0 0
    %3045 = vmatpush2.bf16.msra.mxu0 0
    %3046 = vmatprep.subr.bf16.mxu0 0
    %3047 = vmatpush2.bf16.msra.mxu0 0
    %3048 = vmatprep.subr.bf16.mxu0 0
    %3049 = vmatpush2.bf16.msra.mxu0 0
    %3050 = vmatprep.mubr.bf16.mxu0 0
    %3051 = vmatmul.mubr.bf16.gmra.mxu0 %v3016
    %v3052 = vpop.f32.mrf.mxu0
    %v3053 = vadd.f32 0.0, %v3052
    %v3054 = vpop.f32.mrf.mxu0
    %v3055 = vpop.f32.mrf.mxu0
    %v3056 = vpop.f32.mrf.mxu0
    %3057 = vdwg.mxu0
    %s3058 = scalar_lea.vmem [#allocation6], 12
    %v3059 = vld [vmem:[%s3058] sm:$0x3]
    %v3060 = vpack.c.bf16 %v3000, %v3000
    %v3061 = vpack.c.bf16 %v3053, %v3053
    %v3064 = vunpack.c.l.b16 %v3060
    %v3065 = vunpack.c.l.b16 %v3061
    %v3066 = vrot.slane %v3065, 7
    %v3067 = vsel %vm334, %v3066, %v3064
    %v3068 = vpack.c.b16 %v3067, %v3067
    %v3070 = vsel %vm543, %v3068, 0
    %3072 = vmatprep.subr.bf16.mxu0 0
    %3073 = vmatpush1.bf16.msra.mxu0 0
    %3074 = vmatprep.subr.bf16.mxu0 0
    %3075 = vmatpush1.bf16.msra.mxu0 0
    %3076 = vmatprep.subr.bf16.mxu0 0
    %3077 = vmatpush1.bf16.msra.mxu0 0
    %3078 = vmatprep.subr.bf16.mxu0 0
    %3079 = vmatpush1.bf16.msra.mxu0 0
    %3080 = vmatprep.subr.bf16.mxu0 0
    %3081 = vmatpush1.bf16.msra.mxu0 %v538
    %3082 = vmatprep.subr.bf16.mxu0 0
    %3083 = vmatpush1.bf16.msra.mxu0 %v537
    %3084 = vmatprep.subr.bf16.mxu0 0
    %3085 = vmatpush1.bf16.msra.mxu0 %v536
    %3086 = vmatprep.subr.bf16.mxu0 0
    %3087 = vmatpush1.bf16.msra.mxu0 %v535
    %3088 = vmatprep.subr.bf16.mxu0 0
    %3089 = vmatpush2.bf16.msra.mxu0 0
    %3090 = vmatprep.subr.bf16.mxu0 0
    %3091 = vmatpush2.bf16.msra.mxu0 0
    %3092 = vmatprep.subr.bf16.mxu0 0
    %3093 = vmatpush2.bf16.msra.mxu0 0
    %3094 = vmatprep.subr.bf16.mxu0 0
    %3095 = vmatpush2.bf16.msra.mxu0 0
    %3096 = vmatprep.subr.bf16.mxu0 0
    %3097 = vmatpush2.bf16.msra.mxu0 0
    %3098 = vmatprep.subr.bf16.mxu0 0
    %3099 = vmatpush2.bf16.msra.mxu0 0
    %3100 = vmatprep.subr.bf16.mxu0 0
    %3101 = vmatpush2.bf16.msra.mxu0 0
    %3102 = vmatprep.subr.bf16.mxu0 0
    %3103 = vmatpush2.bf16.msra.mxu0 0
    %3104 = vmatprep.mubr.bf16.mxu0 0
    %3105 = vmatmul.mubr.bf16.gmra.mxu0 %v3070
    %v3106 = vpop.f32.mrf.mxu0
    %v3107 = vadd.f32 0.0, %v3106
    %v3108 = vpop.f32.mrf.mxu0
    %v3109 = vpop.f32.mrf.mxu0
    %v3110 = vpop.f32.mrf.mxu0
    %3111 = vdwg.mxu0
    %v3112 = vadd.f32 %v3059, %v3107
    %3113 = vmatprep.subr.bf16.mxu0 0
    %3114 = vmatpush1.bf16.msra.mxu0 0
    %3115 = vmatprep.subr.bf16.mxu0 0
    %3116 = vmatpush1.bf16.msra.mxu0 0
    %3117 = vmatprep.subr.bf16.mxu0 0
    %3118 = vmatpush1.bf16.msra.mxu0 0
    %3119 = vmatprep.subr.bf16.mxu0 0
    %3120 = vmatpush1.bf16.msra.mxu0 0
    %3121 = vmatprep.subr.bf16.mxu0 0
    %3122 = vmatpush1.bf16.msra.mxu0 0
    %3123 = vmatprep.subr.bf16.mxu0 0
    %3124 = vmatpush1.bf16.msra.mxu0 0
    %3125 = vmatprep.subr.bf16.mxu0 0
    %3126 = vmatpush1.bf16.msra.mxu0 %v603
    %3127 = vmatprep.subr.bf16.mxu0 0
    %3128 = vmatpush1.bf16.msra.mxu0 %v602
    %3129 = vmatprep.subr.bf16.mxu0 0
    %3130 = vmatpush2.bf16.msra.mxu0 0
    %3131 = vmatprep.subr.bf16.mxu0 0
    %3132 = vmatpush2.bf16.msra.mxu0 0
    %3133 = vmatprep.subr.bf16.mxu0 0
    %3134 = vmatpush2.bf16.msra.mxu0 0
    %3135 = vmatprep.subr.bf16.mxu0 0
    %3136 = vmatpush2.bf16.msra.mxu0 0
    %3137 = vmatprep.subr.bf16.mxu0 0
    %3138 = vmatpush2.bf16.msra.mxu0 0
    %3139 = vmatprep.subr.bf16.mxu0 0
    %3140 = vmatpush2.bf16.msra.mxu0 0
    %3141 = vmatprep.subr.bf16.mxu0 0
    %3142 = vmatpush2.bf16.msra.mxu0 0
    %3143 = vmatprep.subr.bf16.mxu0 0
    %3144 = vmatpush2.bf16.msra.mxu0 0
    %3145 = vmatprep.mubr.bf16.mxu0 0
    %3146 = vmatmul.mubr.bf16.gmra.mxu0 %v2788
    %v3147 = vpop.f32.mrf.mxu0
    %v3148 = vadd.f32 %v592, %v3147
    %v3149 = vpop.f32.mrf.mxu0
    %v3150 = vpop.f32.mrf.mxu0
    %v3151 = vpop.f32.mrf.mxu0
    %3152 = vdwg.mxu0
    %v3153 = vadd.f32 %v3112, %v3148
    %v3154 = vxor.u32 %v3153, 2147483648
    %v3155 = vmul.f32 %v3154, 1.442695
    %v3156 = vpow.pop %v3155
    %v3157 = vadd.f32 %v3156, 1.0
    %v3158 = vrcp.pop %v3157
    %v3159 = vmul.f32 1.0, %v3158
    %3161 = vrot.lane.b32.xlu0 %v3148, 64
    %v3162 = vpop.permute.xlu0 %3161
    %v3164 = vmul.f32 %v3159, %v3162
    %3166 = vrot.lane.b32.xlu0 %v3164, 64
    %v3167 = vpop.permute.xlu0 %3166
    %v3169 = vadd.f32 %v3112, %v3167
    %v3170 = vtanh.pop %v3169
    %v3171 = vsub.f32 1.0, %v3159
    %3173 = vrot.lane.b32.xlu0 %v3170, 96
    %v3174 = vpop.permute.xlu0 %3173
    %v3176 = vmul.f32 %v3171, %v3174
    %v3177 = vmul.f32 %v3159, %v2761
    %v3178 = vadd.f32 %v3176, %v3177
    %3180 = vrot.lane.b32.xlu0 %v3178, 96
    %v3181 = vpop.permute.xlu0 %3180
    %s3183 = scalar_lea.vmem [#allocation18], 12
    %3184 = vst.msk [vmem:[%s3183] sm:$0x3] %vm680, %v3181
    %v3187 = vrot.slane %v3053, 7
    %v3188 = vsel %vm334, %v3187, %v3000
    %3189 = vrot.lane.b32.xlu0 %v3188, 32
    %v3190 = vpop.permute.xlu0 %3189
    %3192 = vst.msk [vmem:[%s3183] sm:$0x3] %vm689, %v3190
    %s3193 = scalar_lea.vmem [#allocation3], 12
    %v3194 = vld [vmem:[%s3193] sm:$0x3]
    %3196 = vrot.lane.b32.xlu0 %v3194, 96
    %v3197 = vpop.permute.xlu0 %3196
    %3199 = vst.msk [vmem:[%s3183] sm:$0x3] %vm696, %v3197
    %3200 = vst.msk [vmem:[#allocation2] sm:$0x3] %vm680, %v3181
    // Predicated region
    $region86: #{tpu_custom_call.1} parent=1 // pred_check
      _
    $region87: #{tpu_custom_call.1} parent=1 // pred_check_branch
      %3202 = sbr.rel (0) target = $region89
    $region88: #{tpu_custom_call.1} parent=1 // pred_region
      %s3204 = ssub.s32 224, 224
      %3205 = vsyncadd [#allocation5], %s3204
      %s3206 = sshll.u32 [#allocation18], 4
      %s3207 = int_to_ptr.vmem [resolvable:$true] %s3206
      %3212 = dma.vmem_to_hbm [thread:$0]  %s3207, 224, %s11, [#allocation5], 32, 32, 2
    $region89: #{tpu_custom_call.1} parent=1 // pred_fallthru
      _
    // Predicated region
    $region90: #{tpu_custom_call.1} parent=1 // pred_check
      _
    $region91: #{tpu_custom_call.1} parent=1 // pred_check_branch
      %3214 = sbr.rel (0) target = $region93
    $region92: #{tpu_custom_call.1} parent=1 // pred_region
      %3215 = dma.done [#allocation5], 224
    $region93: #{tpu_custom_call.1} parent=1 // pred_fallthru
      _
    %3216 = vsyncpa [#allocation4], 1
    %3217 = vsyncpa [#allocation7], 1
    %3218 = vsyncpa [#allocation10], 1
    %3219 = vsyncpa [#allocation13], 1
    %3220 = vsyncpa [#allocation16], 1
    %3221 = vsyncpa [#allocation5], 1

</llo_original>
